<compile_context>
chip_gen: v7x
topology: tpu7x:2x2x1
jax: 0.10.0
libtpu: 0.0.40
codegen_flags: <defaults>
</compile_context>

<pallas_src>
import numpy as np
import jax
import jax.numpy as jnp
from jax import lax
from jax.experimental import pallas as pl
from jax.experimental.pallas import tpu as pltpu

EPS = 1e-5            # torch.nn.InstanceNorm3d default eps
KSIZE = 3
STRIDE = 2
PAD = 1
COUT = 32


def _round_up(x, m):
    return (x + m - 1) // m * m


def _vmem_limit_bytes():
    # Generation-aware scoped-VMEM limit (v7x has 64 MiB, v5e/v6e 128 MiB).
    try:
        cap = int(pltpu.get_tpu_info().vmem_capacity_bytes)
    except Exception:
        cap = 64 * 1024 * 1024
    return max(16 << 20, min(cap * 5 // 8, 100 << 20))


# ----------------------------------------------------------------------------
# Kernel 1: per-(N,C) InstanceNorm statistics (single pass sum / sumsq).
# x reshaped to (N*C, S); outputs mean and rsqrt(var + eps), each (N*C, 1).
# Reduction axis S is tiled (grid axis "arbitrary", accumulated in the
# resident output blocks).
# ----------------------------------------------------------------------------
def _choose_s_tile(S):
    limit = 1 << 15
    if S <= limit:
        return S, S
    for ts in (1 << 15, 1 << 14, 1 << 13, 4096, 2048, 1024, 512, 256, 128):
        if S % ts == 0:
            return ts, S
    ts = 1 << 15
    return ts, _round_up(S, ts)


def instance_norm_stats(x_ncdhw):
    N, C, D, H, W = x_ncdhw.shape
    R, S = N * C, D * H * W
    x2 = x_ncdhw.reshape(R, S).astype(jnp.float32)

    TR = 8
    Rp = _round_up(R, TR)
    TS, Sp = _choose_s_tile(S)
    if Sp != S:
        x2 = jnp.pad(x2, ((0, 0), (0, Sp - S)))     # zeros don't change sums
    if Rp != R:
        x2 = jnp.pad(x2, ((0, Rp - R), (0, 0)))
    ns = Sp // TS
    inv_S = 1.0 / float(S)

    def kernel(x_ref, mean_ref, inv_ref):
        si = pl.program_id(1)

        @pl.when(si == 0)
        def _():
            mean_ref[...] = jnp.zeros_like(mean_ref)
            inv_ref[...] = jnp.zeros_like(inv_ref)

        xt = x_ref[...]
        mean_ref[...] += jnp.sum(xt, axis=-1, keepdims=True)
        inv_ref[...] += jnp.sum(xt * xt, axis=-1, keepdims=True)

        @pl.when(si == ns - 1)
        def _():
            m = mean_ref[...] * inv_S
            q = inv_ref[...] * inv_S
            mean_ref[...] = m
            inv_ref[...] = lax.rsqrt(jnp.maximum(q - m * m, 0.0) + EPS)

    mean, inv = pl.pallas_call(
        kernel,
        out_shape=(jax.ShapeDtypeStruct((Rp, 1), jnp.float32),
                   jax.ShapeDtypeStruct((Rp, 1), jnp.float32)),
        grid=(Rp // TR, ns),
        in_specs=[pl.BlockSpec((TR, TS), lambda r, s: (r, s))],
        out_specs=(pl.BlockSpec((TR, 1), lambda r, s: (r, 0)),
                   pl.BlockSpec((TR, 1), lambda r, s: (r, 0))),
        compiler_params=pltpu.CompilerParams(
            dimension_semantics=("parallel", "arbitrary"),
            vmem_limit_bytes=_vmem_limit_bytes()),
        cost_estimate=pl.CostEstimate(
            flops=int(3 * R * S), transcendentals=int(R),
            bytes_accessed=int(4 * R * S)),
    )(x2)
    return mean[:R].reshape(N, C, 1), inv[:R].reshape(N, C, 1)


# ----------------------------------------------------------------------------
# Kernel 2: fused InstanceNorm-apply + ReLU + dual-branch Conv3d (s=2) + bias
# + sum + ReLU, as one in-kernel im2col + deep GEMM per (n, output-depth).
#
# Input layout (built once in plain JAX, ~1 pass over x):
#   xflat[n, pd, ph*2+pw, c, hq*Wq+wq] = xpad[n, c, pd, 2*hq+ph, 2*wq+pw]
# With that phase-split flattening, the tap (kd,kh,kw) needed for output
# column j = ho*Wq + wo is the static lane slice [s : s+L_out] (s = oh*Wq+ow)
# of the (C, L_in) phase slab -> no strided gathers inside the kernel.
# Output is the lane-dense transposed GEMM result (Cout, L_out) per step.
# ----------------------------------------------------------------------------
def resnet_encoder_half_forward(x_ncdhw, params, *, gemm_dtype=jnp.bfloat16):
    w1, b1 = params["w1"], params["b1"]          # (Cout, C, 3, 3, 3), (Cout,)
    w2, b2 = params["w2"], params["b2"]
    N, C, D, H, W = x_ncdhw.shape
    cout = w1.shape[0]

    Do = (D + 2 * PAD - KSIZE) // STRIDE + 1
    Ho = (H + 2 * PAD - KSIZE) // STRIDE + 1
    Wo = (W + 2 * PAD - KSIZE) // STRIDE + 1
    Hq, Wq = Ho + 1, Wo + 1
    Lr = Hq * Wq                                 # real flattened plane length
    L_out = _round_up(Ho * Wq, 128)              # GEMM width / step (lane-dense)
    L_in = _round_up(L_out + Wq + 1, 128)        # covers all tap shifts
    Dp = D + 2
    K = 2 * (KSIZE ** 3) * C                     # fused contraction depth

    # ---- per-(N,C) InstanceNorm statistics (Pallas, single pass) -----------
    mean, inv = instance_norm_stats(x_ncdhw)     # (N, C, 1) f32 each

    # ---- phase-split, zero-padded, flattened input layout (plain JAX) ------
    xp = jnp.pad(x_ncdhw, ((0, 0), (0, 0), (1, 1),
                           (1, 2 * Hq - H - 1), (1, 2 * Wq - W - 1)))
    xflat = (xp.reshape(N, C, Dp, Hq, 2, Wq, 2)
               .transpose(0, 2, 4, 6, 1, 3, 5)
               .reshape(N, Dp, 4, C, Lr))
    xflat = jnp.pad(xflat, ((0, 0), (0, 0), (0, 0), (0, 0), (0, L_in - Lr)))
    xflat = xflat.astype(gemm_dtype)

    # ---- interior masks (conv zero-padding) for the normalized branch ------
    j = np.arange(L_out)
    masks = np.zeros((KSIZE * KSIZE, L_out), np.float32)
    for kh in range(KSIZE):
        for kw in range(KSIZE):
            ph, oh = kh % 2, kh // 2
            pw, ow = kw % 2, kw // 2
            q = j + oh * Wq + ow
            hq, wq = q // Wq, q % Wq
            h = 2 * hq + ph
            w = 2 * wq + pw
            ok = (q < Lr) & (h >= 1) & (h <= H) & (w >= 1) & (w <= W)
            masks[kh * KSIZE + kw] = ok.astype(np.float32)
    masks = jnp.asarray(masks)

    # ---- fused weights / bias (rows: branch-major, tap-major, then c) ------
    w1t = jnp.transpose(w1, (0, 2, 3, 4, 1)).reshape(cout, K // 2)
    w2t = jnp.transpose(w2, (0, 2, 3, 4, 1)).reshape(cout, K // 2)
    wmat = jnp.concatenate([w1t, w2t], axis=1).astype(gemm_dtype)   # (Cout, K)
    bsum = (b1 + b2).reshape(cout, 1).astype(jnp.float32)

    off_raw = (KSIZE ** 3) * C

    def kernel(mean_ref, inv_ref, mask_ref, w_ref, b_ref,
               x0_ref, x1_ref, x2_ref, o_ref, p_ref):
        do = pl.program_id(1)
        mu = mean_ref[0]                          # (C, 1) f32
        rs = inv_ref[0]                           # (C, 1) f32
        xrefs = (x0_ref, x1_ref, x2_ref)

        for kd in range(KSIZE):
            pd = 2 * do + kd                      # padded input depth plane
            dscale = jnp.where(jnp.logical_and(pd >= 1, pd <= D),
                               jnp.float32(1.0), jnp.float32(0.0))
            for kh in range(KSIZE):
                for kw in range(KSIZE):
                    ph, oh = kh % 2, kh // 2
                    pw, ow = kw % 2, kw // 2
                    s = oh * Wq + ow
                    p = ph * 2 + pw
                    # static (C, L_out) slice of the phase slab in VMEM
                    raw = xrefs[kd][0, 0, p, :, s:s + L_out]
                    mrow = mask_ref[kh * KSIZE + kw:kh * KSIZE + kw + 1, :]
                    nrm = (jnp.maximum((raw.astype(jnp.float32) - mu) * rs,
                                       0.0) * (mrow * dscale))
                    tap = (kd * KSIZE + kh) * KSIZE + kw
                    p_ref[tap * C:(tap + 1) * C, :] = nrm.astype(p_ref.dtype)
                    p_ref[off_raw + tap * C:off_raw + (tap + 1) * C, :] = (
                        raw.astype(p_ref.dtype))

        acc = jnp.dot(w_ref[...], p_ref[...],
                      preferred_element_type=jnp.float32)
        acc = acc + b_ref[...]
        o_ref[0, 0] = jnp.maximum(acc, 0.0).astype(o_ref.dtype)

    def x_map(kd):
        return lambda n, do, kd=kd: (n, 2 * do + kd, 0, 0, 0)

    itemsize = jnp.dtype(gemm_dtype).itemsize
    out = pl.pallas_call(
        kernel,
        out_shape=jax.ShapeDtypeStruct((N, Do, cout, L_out), x_ncdhw.dtype),
        grid=(N, Do),
        in_specs=[
            pl.BlockSpec((1, C, 1), lambda n, do: (n, 0, 0)),          # mean
            pl.BlockSpec((1, C, 1), lambda n, do: (n, 0, 0)),          # rsqrt
            pl.BlockSpec((KSIZE * KSIZE, L_out), lambda n, do: (0, 0)),  # masks
            pl.BlockSpec((cout, K), lambda n, do: (0, 0)),             # weights
            pl.BlockSpec((cout, 1), lambda n, do: (0, 0)),             # bias
            pl.BlockSpec((1, 1, 4, C, L_in), x_map(0)),                # kd = 0
            pl.BlockSpec((1, 1, 4, C, L_in), x_map(1)),                # kd = 1
            pl.BlockSpec((1, 1, 4, C, L_in), x_map(2)),                # kd = 2
        ],
        out_specs=pl.BlockSpec((1, 1, cout, L_out),
                               lambda n, do: (n, do, 0, 0)),
        scratch_shapes=[pltpu.VMEM((K, L_out), gemm_dtype)],
        compiler_params=pltpu.CompilerParams(
            dimension_semantics=("parallel", "parallel"),
            vmem_limit_bytes=_vmem_limit_bytes()),
        cost_estimate=pl.CostEstimate(
            flops=int(2 * cout * K * L_out * N * Do),
            transcendentals=0,
            bytes_accessed=int(N * Do * (3 * 4 * C * L_in * itemsize
                                         + cout * L_out * 4)
                               + cout * K * itemsize)),
    )(mean, inv, masks, wmat, bsum, xflat, xflat, xflat)

    # Drop the column-alignment garbage and go back to NCDHW.
    out = out[..., :Ho * Wq].reshape(N, Do, cout, Ho, Wq)[..., :Wo]
    return jnp.transpose(out, (0, 2, 1, 3, 4))


# ----------------------------------------------------------------------------
# Pure-JAX reference (for validation)
# ----------------------------------------------------------------------------
def reference_forward(x, params):
    mean = jnp.mean(x, axis=(2, 3, 4), keepdims=True)
    var = jnp.mean((x - mean) ** 2, axis=(2, 3, 4), keepdims=True)
    xn = jnp.maximum((x - mean) / jnp.sqrt(var + EPS), 0.0)
    dn = lax.conv_dimension_numbers(x.shape, params["w1"].shape,
                                    ("NCDHW", "OIDHW", "NCDHW"))
    c1 = lax.conv_general_dilated(xn, params["w1"], (STRIDE,) * 3,
                                  [(PAD, PAD)] * 3, dimension_numbers=dn)
    c1 = c1 + params["b1"].reshape(1, -1, 1, 1, 1)
    c2 = lax.conv_general_dilated(x, params["w2"], (STRIDE,) * 3,
                                  [(PAD, PAD)] * 3, dimension_numbers=dn)
    c2 = c2 + params["b2"].reshape(1, -1, 1, 1, 1)
    return jnp.maximum(c1 + c2, 0.0)


def init_params(key, num_channels):
    k1, k2, k3, k4 = jax.random.split(key, 4)
    fan_in = num_channels * KSIZE ** 3
    scale = 1.0 / np.sqrt(fan_in)
    return {
        "w1": scale * jax.random.normal(k1, (COUT, num_channels, 3, 3, 3),
                                        jnp.float32),
        "b1": scale * jax.random.normal(k2, (COUT,), jnp.float32),
        "w2": scale * jax.random.normal(k3, (COUT, num_channels, 3, 3, 3),
                                        jnp.float32),
        "b2": scale * jax.random.normal(k4, (COUT,), jnp.float32),
    }


if __name__ == "__main__":
    key = jax.random.PRNGKey(0)
    kx, kp = jax.random.split(key)
    num_channels = 4
    # NCDHW like torch Conv3d input: (batch=2, C=4, D=H=W=8)
    x = jax.random.normal(kx, (2, num_channels, 8, 8, 8), jnp.float32)
    params = init_params(kp, num_channels)

    fwd = jax.jit(resnet_encoder_half_forward)
    out = jax.block_until_ready(fwd(x, params))
    ref = jax.block_until_ready(reference_forward(x, params))

    assert out.shape == (2, COUT, 4, 4, 4), out.shape
    # bf16 GEMM operands (f32 accumulate) -> slightly looser tolerance.
    np.testing.assert_allclose(np.asarray(out), np.asarray(ref),
                               rtol=2e-2, atol=2e-2)
    print("KERNEL_OK")
</pallas_src>

<mosaic_0001>
module attributes {stable_mosaic.version = 11 : i64} {
  func.func @kernel(%arg0: i32, %arg1: i32, %arg2: memref<8x512xf32, #tpu.memory_space<vmem>>, %arg3: memref<8x1xf32, #tpu.memory_space<vmem>>, %arg4: memref<8x1xf32, #tpu.memory_space<vmem>>) attributes {dimension_semantics = [#tpu.dimension_semantics<parallel>, #tpu.dimension_semantics<arbitrary>], iteration_bounds = array<i64: 1, 1>, scalar_prefetch = 0 : i64, scratch_operands = 0 : i64, tpu.core_type = #tpu.core_type<tc>, window_params = [{transform_indices = @transform_0, window_bounds = array<i64: 8, 512>}, {transform_indices = @transform_1, window_bounds = array<i64: 8, 1>}, {transform_indices = @transform_2, window_bounds = array<i64: 8, 1>}]} {
    %c0_i32 = arith.constant 0 : i32
    %0 = arith.cmpi eq, %arg1, %c0_i32 : i32
    %1 = arith.extui %0 : i1 to i32
    %c0_i32_0 = arith.constant 0 : i32
    %2 = arith.cmpi ne, %1, %c0_i32_0 : i32
    scf.if %2 {
      %cst_13 = arith.constant 0.000000e+00 : f32
      %18 = vector.broadcast %cst_13 : f32 to vector<8x1xf32>
      %c0_14 = arith.constant 0 : index
      %c0_15 = arith.constant 0 : index
      %19 = vector.load %arg3[%c0_14, %c0_15] : memref<8x1xf32, #tpu.memory_space<vmem>>, vector<8x1xf32>
      tpu.vector_store %arg3[%c0_14, %c0_15], %18 {strides = array<i32>} : memref<8x1xf32, #tpu.memory_space<vmem>>, vector<8x1xf32>,
      %cst_16 = arith.constant 0.000000e+00 : f32
      %20 = vector.broadcast %cst_16 : f32 to vector<8x1xf32>
      %c0_17 = arith.constant 0 : index
      %c0_18 = arith.constant 0 : index
      %21 = vector.load %arg4[%c0_17, %c0_18] : memref<8x1xf32, #tpu.memory_space<vmem>>, vector<8x1xf32>
      tpu.vector_store %arg4[%c0_17, %c0_18], %20 {strides = array<i32>} : memref<8x1xf32, #tpu.memory_space<vmem>>, vector<8x1xf32>,
    } else {
    }
    %c0 = arith.constant 0 : index
    %c0_1 = arith.constant 0 : index
    %3 = vector.load %arg2[%c0, %c0_1] : memref<8x512xf32, #tpu.memory_space<vmem>>, vector<8x512xf32>
    %c0_2 = arith.constant 0 : index
    %c0_3 = arith.constant 0 : index
    %4 = vector.load %arg3[%c0_2, %c0_3] : memref<8x1xf32, #tpu.memory_space<vmem>>, vector<8x1xf32>
    %cst = arith.constant dense<0.000000e+00> : vector<8xf32>
    %5 = vector.multi_reduction <add>, %3, %cst [1] : vector<8x512xf32> to vector<8xf32>
    %6 = vector.shape_cast %5 : vector<8xf32> to vector<8x1xf32>
    %7 = arith.addf %4, %6 : vector<8x1xf32>
    %c0_4 = arith.constant 0 : index
    %c0_5 = arith.constant 0 : index
    %8 = vector.load %arg3[%c0_4, %c0_5] : memref<8x1xf32, #tpu.memory_space<vmem>>, vector<8x1xf32>
    tpu.vector_store %arg3[%c0_4, %c0_5], %7 {strides = array<i32>} : memref<8x1xf32, #tpu.memory_space<vmem>>, vector<8x1xf32>,
    %c0_6 = arith.constant 0 : index
    %c0_7 = arith.constant 0 : index
    %9 = vector.load %arg4[%c0_6, %c0_7] : memref<8x1xf32, #tpu.memory_space<vmem>>, vector<8x1xf32>
    %10 = arith.mulf %3, %3 : vector<8x512xf32>
    %cst_8 = arith.constant dense<0.000000e+00> : vector<8xf32>
    %11 = vector.multi_reduction <add>, %10, %cst_8 [1] : vector<8x512xf32> to vector<8xf32>
    %12 = vector.shape_cast %11 : vector<8xf32> to vector<8x1xf32>
    %13 = arith.addf %9, %12 : vector<8x1xf32>
    %c0_9 = arith.constant 0 : index
    %c0_10 = arith.constant 0 : index
    %14 = vector.load %arg4[%c0_9, %c0_10] : memref<8x1xf32, #tpu.memory_space<vmem>>, vector<8x1xf32>
    tpu.vector_store %arg4[%c0_9, %c0_10], %13 {strides = array<i32>} : memref<8x1xf32, #tpu.memory_space<vmem>>, vector<8x1xf32>,
    %c0_i32_11 = arith.constant 0 : i32
    %15 = arith.cmpi eq, %arg1, %c0_i32_11 : i32
    %16 = arith.extui %15 : i1 to i32
    %c0_i32_12 = arith.constant 0 : i32
    %17 = arith.cmpi ne, %16, %c0_i32_12 : i32
    scf.if %17 {
      %c0_13 = arith.constant 0 : index
      %c0_14 = arith.constant 0 : index
      %18 = vector.load %arg3[%c0_13, %c0_14] : memref<8x1xf32, #tpu.memory_space<vmem>>, vector<8x1xf32>
      %cst_15 = arith.constant 0.001953125 : f32
      %19 = vector.broadcast %cst_15 : f32 to vector<8x1xf32>
      %20 = arith.mulf %18, %19 : vector<8x1xf32>
      %c0_16 = arith.constant 0 : index
      %c0_17 = arith.constant 0 : index
      %21 = vector.load %arg4[%c0_16, %c0_17] : memref<8x1xf32, #tpu.memory_space<vmem>>, vector<8x1xf32>
      %cst_18 = arith.constant 0.001953125 : f32
      %22 = vector.broadcast %cst_18 : f32 to vector<8x1xf32>
      %23 = arith.mulf %21, %22 : vector<8x1xf32>
      %c0_19 = arith.constant 0 : index
      %c0_20 = arith.constant 0 : index
      %24 = vector.load %arg3[%c0_19, %c0_20] : memref<8x1xf32, #tpu.memory_space<vmem>>, vector<8x1xf32>
      tpu.vector_store %arg3[%c0_19, %c0_20], %20 {strides = array<i32>} : memref<8x1xf32, #tpu.memory_space<vmem>>, vector<8x1xf32>,
      %25 = arith.mulf %20, %20 : vector<8x1xf32>
      %26 = arith.subf %23, %25 : vector<8x1xf32>
      %cst_21 = arith.constant 0.000000e+00 : f32
      %27 = vector.broadcast %cst_21 : f32 to vector<8x1xf32>
      %28 = arith.maximumf %26, %27 : vector<8x1xf32>
      %cst_22 = arith.constant 9.99999974E-6 : f32
      %29 = vector.broadcast %cst_22 : f32 to vector<8x1xf32>
      %30 = arith.addf %28, %29 : vector<8x1xf32>
      %31 = math.rsqrt %30 : vector<8x1xf32>
      %c0_23 = arith.constant 0 : index
      %c0_24 = arith.constant 0 : index
      %32 = vector.load %arg4[%c0_23, %c0_24] : memref<8x1xf32, #tpu.memory_space<vmem>>, vector<8x1xf32>
      tpu.vector_store %arg4[%c0_23, %c0_24], %31 {strides = array<i32>} : memref<8x1xf32, #tpu.memory_space<vmem>>, vector<8x1xf32>,
    } else {
    }
    return
  }
  func.func @transform_0(%arg0: i32, %arg1: i32) -> (i32, i32) {
    %c0_i32 = arith.constant 0 : i32
    return %arg0, %arg1 : i32, i32
  }
  func.func @transform_1(%arg0: i32, %arg1: i32) -> (i32, i32) {
    %c0_i32 = arith.constant 0 : i32
    %c0_i32_0 = arith.constant 0 : i32
    return %arg0, %c0_i32 : i32, i32
  }
  func.func @transform_2(%arg0: i32, %arg1: i32) -> (i32, i32) {
    %c0_i32 = arith.constant 0 : i32
    %c0_i32_0 = arith.constant 0 : i32
    return %arg0, %c0_i32 : i32, i32
  }
}

module attributes {stable_mosaic.version = 11 : i64} {
  func.func @kernel(%arg0: i32, %arg1: i32, %arg2: memref<1x4x1xf32, #tpu.memory_space<vmem>>, %arg3: memref<1x4x1xf32, #tpu.memory_space<vmem>>, %arg4: memref<9x128xf32, #tpu.memory_space<vmem>>, %arg5: memref<32x216xbf16, #tpu.memory_space<vmem>>, %arg6: memref<32x1xf32, #tpu.memory_space<vmem>>, %arg7: memref<1x1x4x4x256xbf16, #tpu.memory_space<vmem>>, %arg8: memref<1x1x4x4x256xbf16, #tpu.memory_space<vmem>>, %arg9: memref<1x1x4x4x256xbf16, #tpu.memory_space<vmem>>, %arg10: memref<1x1x32x128xf32, #tpu.memory_space<vmem>>, %arg11: memref<216x128xbf16, #tpu.memory_space<vmem>>) attributes {dimension_semantics = [#tpu.dimension_semantics<parallel>, #tpu.dimension_semantics<parallel>], iteration_bounds = array<i64: 2, 4>, scalar_prefetch = 0 : i64, scratch_operands = 1 : i64, tpu.core_type = #tpu.core_type<tc>, window_params = [{transform_indices = @transform_0, window_bounds = array<i64: 1, 4, 1>}, {transform_indices = @transform_1, window_bounds = array<i64: 1, 4, 1>}, {pipeline_mode = #tpu.pipeline_mode<synchronous>, transform_indices = @transform_2, window_bounds = array<i64: 9, 128>}, {pipeline_mode = #tpu.pipeline_mode<synchronous>, transform_indices = @transform_3, window_bounds = array<i64: 32, 216>}, {pipeline_mode = #tpu.pipeline_mode<synchronous>, transform_indices = @transform_4, window_bounds = array<i64: 32, 1>}, {transform_indices = @transform_5, window_bounds = array<i64: 1, 1, 4, 4, 256>}, {transform_indices = @transform_6, window_bounds = array<i64: 1, 1, 4, 4, 256>}, {transform_indices = @transform_7, window_bounds = array<i64: 1, 1, 4, 4, 256>}, {transform_indices = @transform_8, window_bounds = array<i64: 1, 1, 32, 128>}]} {
    %c0 = arith.constant 0 : index
    %c0_0 = arith.constant 0 : index
    %c0_1 = arith.constant 0 : index
    %0 = vector.load %arg2[%c0, %c0_0, %c0_1] : memref<1x4x1xf32, #tpu.memory_space<vmem>>, vector<1x4x1xf32>
    %1 = vector.shape_cast %0 : vector<1x4x1xf32> to vector<4x1xf32>
    %c0_2 = arith.constant 0 : index
    %c0_3 = arith.constant 0 : index
    %c0_4 = arith.constant 0 : index
    %2 = vector.load %arg3[%c0_2, %c0_3, %c0_4] : memref<1x4x1xf32, #tpu.memory_space<vmem>>, vector<1x4x1xf32>
    %3 = vector.shape_cast %2 : vector<1x4x1xf32> to vector<4x1xf32>
    %c2_i32 = arith.constant 2 : i32
    %4 = arith.muli %c2_i32, %arg1 : i32
    %c0_i32 = arith.constant 0 : i32
    %5 = arith.addi %4, %c0_i32 : i32
    %c1_i32 = arith.constant 1 : i32
    %6 = arith.cmpi sge, %5, %c1_i32 : i32
    %c8_i32 = arith.constant 8 : i32
    %7 = arith.cmpi sle, %5, %c8_i32 : i32
    %8 = arith.andi %6, %7 : i1
    %cst = arith.constant 1.000000e+00 : f32
    %cst_5 = arith.constant 0.000000e+00 : f32
    %9 = arith.select %8, %cst, %cst_5 : f32
    %c0_6 = arith.constant 0 : index
    %c0_7 = arith.constant 0 : index
    %c0_8 = arith.constant 0 : index
    %c0_9 = arith.constant 0 : index
    %c0_10 = arith.constant 0 : index
    %10 = vector.load %arg7[%c0_6, %c0_7, %c0_8, %c0_9, %c0_10] : memref<1x1x4x4x256xbf16, #tpu.memory_space<vmem>>, vector<1x1x1x4x128xbf16>
    %11 = vector.shape_cast %10 : vector<1x1x1x4x128xbf16> to vector<4x128xbf16>
    %c0_11 = arith.constant 0 : index
    %c0_12 = arith.constant 0 : index
    %12 = vector.load %arg4[%c0_11, %c0_12] : memref<9x128xf32, #tpu.memory_space<vmem>>, vector<1x128xf32>
    %13 = arith.extf %11 : vector<4x128xbf16> to vector<4x128xf32>
    %14 = vector.broadcast %1 : vector<4x1xf32> to vector<4x128xf32>
    %15 = arith.subf %13, %14 : vector<4x128xf32>
    %16 = vector.broadcast %3 : vector<4x1xf32> to vector<4x128xf32>
    %17 = arith.mulf %15, %16 : vector<4x128xf32>
    %cst_13 = arith.constant 0.000000e+00 : f32
    %18 = vector.broadcast %cst_13 : f32 to vector<4x128xf32>
    %19 = arith.maximumf %17, %18 : vector<4x128xf32>
    %20 = vector.broadcast %9 : f32 to vector<1x128xf32>
    %21 = arith.mulf %12, %20 : vector<1x128xf32>
    %22 = vector.broadcast %21 : vector<1x128xf32> to vector<4x128xf32>
    %23 = arith.mulf %19, %22 : vector<4x128xf32>
    %24 = arith.truncf %23 : vector<4x128xf32> to vector<4x128xbf16>
    %c0_14 = arith.constant 0 : index
    %c0_15 = arith.constant 0 : index
    %25 = vector.load %arg11[%c0_14, %c0_15] : memref<216x128xbf16, #tpu.memory_space<vmem>>, vector<4x128xbf16>
    tpu.vector_store %arg11[%c0_14, %c0_15], %24 {strides = array<i32>} : memref<216x128xbf16, #tpu.memory_space<vmem>>, vector<4x128xbf16>,
    %c108 = arith.constant 108 : index
    %c0_16 = arith.constant 0 : index
    %26 = vector.load %arg11[%c108, %c0_16] : memref<216x128xbf16, #tpu.memory_space<vmem>>, vector<4x128xbf16>
    tpu.vector_store %arg11[%c108, %c0_16], %11 {strides = array<i32>} : memref<216x128xbf16, #tpu.memory_space<vmem>>, vector<4x128xbf16>,
    %c0_17 = arith.constant 0 : index
    %c0_18 = arith.constant 0 : index
    %c1 = arith.constant 1 : index
    %c0_19 = arith.constant 0 : index
    %c0_20 = arith.constant 0 : index
    %27 = vector.load %arg7[%c0_17, %c0_18, %c1, %c0_19, %c0_20] : memref<1x1x4x4x256xbf16, #tpu.memory_space<vmem>>, vector<1x1x1x4x128xbf16>
    %28 = vector.shape_cast %27 : vector<1x1x1x4x128xbf16> to vector<4x128xbf16>
    %c1_21 = arith.constant 1 : index
    %c0_22 = arith.constant 0 : index
    %29 = vector.load %arg4[%c1_21, %c0_22] : memref<9x128xf32, #tpu.memory_space<vmem>>, vector<1x128xf32>
    %30 = arith.extf %28 : vector<4x128xbf16> to vector<4x128xf32>
    %31 = vector.broadcast %1 : vector<4x1xf32> to vector<4x128xf32>
    %32 = arith.subf %30, %31 : vector<4x128xf32>
    %33 = vector.broadcast %3 : vector<4x1xf32> to vector<4x128xf32>
    %34 = arith.mulf %32, %33 : vector<4x128xf32>
    %cst_23 = arith.constant 0.000000e+00 : f32
    %35 = vector.broadcast %cst_23 : f32 to vector<4x128xf32>
    %36 = arith.maximumf %34, %35 : vector<4x128xf32>
    %37 = vector.broadcast %9 : f32 to vector<1x128xf32>
    %38 = arith.mulf %29, %37 : vector<1x128xf32>
    %39 = vector.broadcast %38 : vector<1x128xf32> to vector<4x128xf32>
    %40 = arith.mulf %36, %39 : vector<4x128xf32>
    %41 = arith.truncf %40 : vector<4x128xf32> to vector<4x128xbf16>
    %c4 = arith.constant 4 : index
    %c0_24 = arith.constant 0 : index
    %42 = vector.load %arg11[%c4, %c0_24] : memref<216x128xbf16, #tpu.memory_space<vmem>>, vector<4x128xbf16>
    tpu.vector_store %arg11[%c4, %c0_24], %41 {strides = array<i32>} : memref<216x128xbf16, #tpu.memory_space<vmem>>, vector<4x128xbf16>,
    %c112 = arith.constant 112 : index
    %c0_25 = arith.constant 0 : index
    %43 = vector.load %arg11[%c112, %c0_25] : memref<216x128xbf16, #tpu.memory_space<vmem>>, vector<4x128xbf16>
    tpu.vector_store %arg11[%c112, %c0_25], %28 {strides = array<i32>} : memref<216x128xbf16, #tpu.memory_space<vmem>>, vector<4x128xbf16>,
    %c0_26 = arith.constant 0 : index
    %c0_27 = arith.constant 0 : index
    %c0_28 = arith.constant 0 : index
    %c0_29 = arith.constant 0 : index
    %c1_30 = arith.constant 1 : index
    %44 = vector.load %arg7[%c0_26, %c0_27, %c0_28, %c0_29, %c1_30] : memref<1x1x4x4x256xbf16, #tpu.memory_space<vmem>>, vector<1x1x1x4x128xbf16>
    %45 = vector.shape_cast %44 : vector<1x1x1x4x128xbf16> to vector<4x128xbf16>
    %c2 = arith.constant 2 : index
    %c0_31 = arith.constant 0 : index
    %46 = vector.load %arg4[%c2, %c0_31] : memref<9x128xf32, #tpu.memory_space<vmem>>, vector<1x128xf32>
    %47 = arith.extf %45 : vector<4x128xbf16> to vector<4x128xf32>
    %48 = vector.broadcast %1 : vector<4x1xf32> to vector<4x128xf32>
    %49 = arith.subf %47, %48 : vector<4x128xf32>
    %50 = vector.broadcast %3 : vector<4x1xf32> to vector<4x128xf32>
    %51 = arith.mulf %49, %50 : vector<4x128xf32>
    %cst_32 = arith.constant 0.000000e+00 : f32
    %52 = vector.broadcast %cst_32 : f32 to vector<4x128xf32>
    %53 = arith.maximumf %51, %52 : vector<4x128xf32>
    %54 = vector.broadcast %9 : f32 to vector<1x128xf32>
    %55 = arith.mulf %46, %54 : vector<1x128xf32>
    %56 = vector.broadcast %55 : vector<1x128xf32> to vector<4x128xf32>
    %57 = arith.mulf %53, %56 : vector<4x128xf32>
    %58 = arith.truncf %57 : vector<4x128xf32> to vector<4x128xbf16>
    %c8 = arith.constant 8 : index
    %c0_33 = arith.constant 0 : index
    %59 = vector.load %arg11[%c8, %c0_33] : memref<216x128xbf16, #tpu.memory_space<vmem>>, vector<4x128xbf16>
    tpu.vector_store %arg11[%c8, %c0_33], %58 {strides = array<i32>} : memref<216x128xbf16, #tpu.memory_space<vmem>>, vector<4x128xbf16>,
    %c116 = arith.constant 116 : index
    %c0_34 = arith.constant 0 : index
    %60 = vector.load %arg11[%c116, %c0_34] : memref<216x128xbf16, #tpu.memory_space<vmem>>, vector<4x128xbf16>
    tpu.vector_store %arg11[%c116, %c0_34], %45 {strides = array<i32>} : memref<216x128xbf16, #tpu.memory_space<vmem>>, vector<4x128xbf16>,
    %c0_35 = arith.constant 0 : index
    %c0_36 = arith.constant 0 : index
    %c2_37 = arith.constant 2 : index
    %c0_38 = arith.constant 0 : index
    %c0_39 = arith.constant 0 : index
    %61 = vector.load %arg7[%c0_35, %c0_36, %c2_37, %c0_38, %c0_39] : memref<1x1x4x4x256xbf16, #tpu.memory_space<vmem>>, vector<1x1x1x4x128xbf16>
    %62 = vector.shape_cast %61 : vector<1x1x1x4x128xbf16> to vector<4x128xbf16>
    %c3 = arith.constant 3 : index
    %c0_40 = arith.constant 0 : index
    %63 = vector.load %arg4[%c3, %c0_40] : memref<9x128xf32, #tpu.memory_space<vmem>>, vector<1x128xf32>
    %64 = arith.extf %62 : vector<4x128xbf16> to vector<4x128xf32>
    %65 = vector.broadcast %1 : vector<4x1xf32> to vector<4x128xf32>
    %66 = arith.subf %64, %65 : vector<4x128xf32>
    %67 = vector.broadcast %3 : vector<4x1xf32> to vector<4x128xf32>
    %68 = arith.mulf %66, %67 : vector<4x128xf32>
    %cst_41 = arith.constant 0.000000e+00 : f32
    %69 = vector.broadcast %cst_41 : f32 to vector<4x128xf32>
    %70 = arith.maximumf %68, %69 : vector<4x128xf32>
    %71 = vector.broadcast %9 : f32 to vector<1x128xf32>
    %72 = arith.mulf %63, %71 : vector<1x128xf32>
    %73 = vector.broadcast %72 : vector<1x128xf32> to vector<4x128xf32>
    %74 = arith.mulf %70, %73 : vector<4x128xf32>
    %75 = arith.truncf %74 : vector<4x128xf32> to vector<4x128xbf16>
    %c12 = arith.constant 12 : index
    %c0_42 = arith.constant 0 : index
    %76 = vector.load %arg11[%c12, %c0_42] : memref<216x128xbf16, #tpu.memory_space<vmem>>, vector<4x128xbf16>
    tpu.vector_store %arg11[%c12, %c0_42], %75 {strides = array<i32>} : memref<216x128xbf16, #tpu.memory_space<vmem>>, vector<4x128xbf16>,
    %c120 = arith.constant 120 : index
    %c0_43 = arith.constant 0 : index
    %77 = vector.load %arg11[%c120, %c0_43] : memref<216x128xbf16, #tpu.memory_space<vmem>>, vector<4x128xbf16>
    tpu.vector_store %arg11[%c120, %c0_43], %62 {strides = array<i32>} : memref<216x128xbf16, #tpu.memory_space<vmem>>, vector<4x128xbf16>,
    %c0_44 = arith.constant 0 : index
    %c0_45 = arith.constant 0 : index
    %c3_46 = arith.constant 3 : index
    %c0_47 = arith.constant 0 : index
    %c0_48 = arith.constant 0 : index
    %78 = vector.load %arg7[%c0_44, %c0_45, %c3_46, %c0_47, %c0_48] : memref<1x1x4x4x256xbf16, #tpu.memory_space<vmem>>, vector<1x1x1x4x128xbf16>
    %79 = vector.shape_cast %78 : vector<1x1x1x4x128xbf16> to vector<4x128xbf16>
    %c4_49 = arith.constant 4 : index
    %c0_50 = arith.constant 0 : index
    %80 = vector.load %arg4[%c4_49, %c0_50] : memref<9x128xf32, #tpu.memory_space<vmem>>, vector<1x128xf32>
    %81 = arith.extf %79 : vector<4x128xbf16> to vector<4x128xf32>
    %82 = vector.broadcast %1 : vector<4x1xf32> to vector<4x128xf32>
    %83 = arith.subf %81, %82 : vector<4x128xf32>
    %84 = vector.broadcast %3 : vector<4x1xf32> to vector<4x128xf32>
    %85 = arith.mulf %83, %84 : vector<4x128xf32>
    %cst_51 = arith.constant 0.000000e+00 : f32
    %86 = vector.broadcast %cst_51 : f32 to vector<4x128xf32>
    %87 = arith.maximumf %85, %86 : vector<4x128xf32>
    %88 = vector.broadcast %9 : f32 to vector<1x128xf32>
    %89 = arith.mulf %80, %88 : vector<1x128xf32>
    %90 = vector.broadcast %89 : vector<1x128xf32> to vector<4x128xf32>
    %91 = arith.mulf %87, %90 : vector<4x128xf32>
    %92 = arith.truncf %91 : vector<4x128xf32> to vector<4x128xbf16>
    %c16 = arith.constant 16 : index
    %c0_52 = arith.constant 0 : index
    %93 = vector.load %arg11[%c16, %c0_52] : memref<216x128xbf16, #tpu.memory_space<vmem>>, vector<4x128xbf16>
    tpu.vector_store %arg11[%c16, %c0_52], %92 {strides = array<i32>} : memref<216x128xbf16, #tpu.memory_space<vmem>>, vector<4x128xbf16>,
    %c124 = arith.constant 124 : index
    %c0_53 = arith.constant 0 : index
    %94 = vector.load %arg11[%c124, %c0_53] : memref<216x128xbf16, #tpu.memory_space<vmem>>, vector<4x128xbf16>
    tpu.vector_store %arg11[%c124, %c0_53], %79 {strides = array<i32>} : memref<216x128xbf16, #tpu.memory_space<vmem>>, vector<4x128xbf16>,
    %c0_54 = arith.constant 0 : index
    %c0_55 = arith.constant 0 : index
    %c2_56 = arith.constant 2 : index
    %c0_57 = arith.constant 0 : index
    %c1_58 = arith.constant 1 : index
    %95 = vector.load %arg7[%c0_54, %c0_55, %c2_56, %c0_57, %c1_58] : memref<1x1x4x4x256xbf16, #tpu.memory_space<vmem>>, vector<1x1x1x4x128xbf16>
    %96 = vector.shape_cast %95 : vector<1x1x1x4x128xbf16> to vector<4x128xbf16>
    %c5 = arith.constant 5 : index
    %c0_59 = arith.constant 0 : index
    %97 = vector.load %arg4[%c5, %c0_59] : memref<9x128xf32, #tpu.memory_space<vmem>>, vector<1x128xf32>
    %98 = arith.extf %96 : vector<4x128xbf16> to vector<4x128xf32>
    %99 = vector.broadcast %1 : vector<4x1xf32> to vector<4x128xf32>
    %100 = arith.subf %98, %99 : vector<4x128xf32>
    %101 = vector.broadcast %3 : vector<4x1xf32> to vector<4x128xf32>
    %102 = arith.mulf %100, %101 : vector<4x128xf32>
    %cst_60 = arith.constant 0.000000e+00 : f32
    %103 = vector.broadcast %cst_60 : f32 to vector<4x128xf32>
    %104 = arith.maximumf %102, %103 : vector<4x128xf32>
    %105 = vector.broadcast %9 : f32 to vector<1x128xf32>
    %106 = arith.mulf %97, %105 : vector<1x128xf32>
    %107 = vector.broadcast %106 : vector<1x128xf32> to vector<4x128xf32>
    %108 = arith.mulf %104, %107 : vector<4x128xf32>
    %109 = arith.truncf %108 : vector<4x128xf32> to vector<4x128xbf16>
    %c20 = arith.constant 20 : index
    %c0_61 = arith.constant 0 : index
    %110 = vector.load %arg11[%c20, %c0_61] : memref<216x128xbf16, #tpu.memory_space<vmem>>, vector<4x128xbf16>
    tpu.vector_store %arg11[%c20, %c0_61], %109 {strides = array<i32>} : memref<216x128xbf16, #tpu.memory_space<vmem>>, vector<4x128xbf16>,
    %c128 = arith.constant 128 : index
    %c0_62 = arith.constant 0 : index
    %111 = vector.load %arg11[%c128, %c0_62] : memref<216x128xbf16, #tpu.memory_space<vmem>>, vector<4x128xbf16>
    tpu.vector_store %arg11[%c128, %c0_62], %96 {strides = array<i32>} : memref<216x128xbf16, #tpu.memory_space<vmem>>, vector<4x128xbf16>,
    %c0_63 = arith.constant 0 : index
    %c0_64 = arith.constant 0 : index
    %c0_65 = arith.constant 0 : index
    %c0_66 = arith.constant 0 : index
    %c5_67 = arith.constant 5 : index
    %112 = vector.load %arg7[%c0_63, %c0_64, %c0_65, %c0_66, %c5_67] : memref<1x1x4x4x256xbf16, #tpu.memory_space<vmem>>, vector<1x1x1x4x128xbf16>
    %113 = vector.shape_cast %112 : vector<1x1x1x4x128xbf16> to vector<4x128xbf16>
    %c6 = arith.constant 6 : index
    %c0_68 = arith.constant 0 : index
    %114 = vector.load %arg4[%c6, %c0_68] : memref<9x128xf32, #tpu.memory_space<vmem>>, vector<1x128xf32>
    %115 = arith.extf %113 : vector<4x128xbf16> to vector<4x128xf32>
    %116 = vector.broadcast %1 : vector<4x1xf32> to vector<4x128xf32>
    %117 = arith.subf %115, %116 : vector<4x128xf32>
    %118 = vector.broadcast %3 : vector<4x1xf32> to vector<4x128xf32>
    %119 = arith.mulf %117, %118 : vector<4x128xf32>
    %cst_69 = arith.constant 0.000000e+00 : f32
    %120 = vector.broadcast %cst_69 : f32 to vector<4x128xf32>
    %121 = arith.maximumf %119, %120 : vector<4x128xf32>
    %122 = vector.broadcast %9 : f32 to vector<1x128xf32>
    %123 = arith.mulf %114, %122 : vector<1x128xf32>
    %124 = vector.broadcast %123 : vector<1x128xf32> to vector<4x128xf32>
    %125 = arith.mulf %121, %124 : vector<4x128xf32>
    %126 = arith.truncf %125 : vector<4x128xf32> to vector<4x128xbf16>
    %c24 = arith.constant 24 : index
    %c0_70 = arith.constant 0 : index
    %127 = vector.load %arg11[%c24, %c0_70] : memref<216x128xbf16, #tpu.memory_space<vmem>>, vector<4x128xbf16>
    tpu.vector_store %arg11[%c24, %c0_70], %126 {strides = array<i32>} : memref<216x128xbf16, #tpu.memory_space<vmem>>, vector<4x128xbf16>,
    %c132 = arith.constant 132 : index
    %c0_71 = arith.constant 0 : index
    %128 = vector.load %arg11[%c132, %c0_71] : memref<216x128xbf16, #tpu.memory_space<vmem>>, vector<4x128xbf16>
    tpu.vector_store %arg11[%c132, %c0_71], %113 {strides = array<i32>} : memref<216x128xbf16, #tpu.memory_space<vmem>>, vector<4x128xbf16>,
    %c0_72 = arith.constant 0 : index
    %c0_73 = arith.constant 0 : index
    %c1_74 = arith.constant 1 : index
    %c0_75 = arith.constant 0 : index
    %c5_76 = arith.constant 5 : index
    %129 = vector.load %arg7[%c0_72, %c0_73, %c1_74, %c0_75, %c5_76] : memref<1x1x4x4x256xbf16, #tpu.memory_space<vmem>>, vector<1x1x1x4x128xbf16>
    %130 = vector.shape_cast %129 : vector<1x1x1x4x128xbf16> to vector<4x128xbf16>
    %c7 = arith.constant 7 : index
    %c0_77 = arith.constant 0 : index
    %131 = vector.load %arg4[%c7, %c0_77] : memref<9x128xf32, #tpu.memory_space<vmem>>, vector<1x128xf32>
    %132 = arith.extf %130 : vector<4x128xbf16> to vector<4x128xf32>
    %133 = vector.broadcast %1 : vector<4x1xf32> to vector<4x128xf32>
    %134 = arith.subf %132, %133 : vector<4x128xf32>
    %135 = vector.broadcast %3 : vector<4x1xf32> to vector<4x128xf32>
    %136 = arith.mulf %134, %135 : vector<4x128xf32>
    %cst_78 = arith.constant 0.000000e+00 : f32
    %137 = vector.broadcast %cst_78 : f32 to vector<4x128xf32>
    %138 = arith.maximumf %136, %137 : vector<4x128xf32>
    %139 = vector.broadcast %9 : f32 to vector<1x128xf32>
    %140 = arith.mulf %131, %139 : vector<1x128xf32>
    %141 = vector.broadcast %140 : vector<1x128xf32> to vector<4x128xf32>
    %142 = arith.mulf %138, %141 : vector<4x128xf32>
    %143 = arith.truncf %142 : vector<4x128xf32> to vector<4x128xbf16>
    %c28 = arith.constant 28 : index
    %c0_79 = arith.constant 0 : index
    %144 = vector.load %arg11[%c28, %c0_79] : memref<216x128xbf16, #tpu.memory_space<vmem>>, vector<4x128xbf16>
    tpu.vector_store %arg11[%c28, %c0_79], %143 {strides = array<i32>} : memref<216x128xbf16, #tpu.memory_space<vmem>>, vector<4x128xbf16>,
    %c136 = arith.constant 136 : index
    %c0_80 = arith.constant 0 : index
    %145 = vector.load %arg11[%c136, %c0_80] : memref<216x128xbf16, #tpu.memory_space<vmem>>, vector<4x128xbf16>
    tpu.vector_store %arg11[%c136, %c0_80], %130 {strides = array<i32>} : memref<216x128xbf16, #tpu.memory_space<vmem>>, vector<4x128xbf16>,
    %c0_81 = arith.constant 0 : index
    %c0_82 = arith.constant 0 : index
    %c0_83 = arith.constant 0 : index
    %c0_84 = arith.constant 0 : index
    %c6_85 = arith.constant 6 : index
    %146 = vector.load %arg7[%c0_81, %c0_82, %c0_83, %c0_84, %c6_85] : memref<1x1x4x4x256xbf16, #tpu.memory_space<vmem>>, vector<1x1x1x4x128xbf16>
    %147 = vector.shape_cast %146 : vector<1x1x1x4x128xbf16> to vector<4x128xbf16>
    %c8_86 = arith.constant 8 : index
    %c0_87 = arith.constant 0 : index
    %148 = vector.load %arg4[%c8_86, %c0_87] : memref<9x128xf32, #tpu.memory_space<vmem>>, vector<1x128xf32>
    %149 = arith.extf %147 : vector<4x128xbf16> to vector<4x128xf32>
    %150 = vector.broadcast %1 : vector<4x1xf32> to vector<4x128xf32>
    %151 = arith.subf %149, %150 : vector<4x128xf32>
    %152 = vector.broadcast %3 : vector<4x1xf32> to vector<4x128xf32>
    %153 = arith.mulf %151, %152 : vector<4x128xf32>
    %cst_88 = arith.constant 0.000000e+00 : f32
    %154 = vector.broadcast %cst_88 : f32 to vector<4x128xf32>
    %155 = arith.maximumf %153, %154 : vector<4x128xf32>
    %156 = vector.broadcast %9 : f32 to vector<1x128xf32>
    %157 = arith.mulf %148, %156 : vector<1x128xf32>
    %158 = vector.broadcast %157 : vector<1x128xf32> to vector<4x128xf32>
    %159 = arith.mulf %155, %158 : vector<4x128xf32>
    %160 = arith.truncf %159 : vector<4x128xf32> to vector<4x128xbf16>
    %c32 = arith.constant 32 : index
    %c0_89 = arith.constant 0 : index
    %161 = vector.load %arg11[%c32, %c0_89] : memref<216x128xbf16, #tpu.memory_space<vmem>>, vector<4x128xbf16>
    tpu.vector_store %arg11[%c32, %c0_89], %160 {strides = array<i32>} : memref<216x128xbf16, #tpu.memory_space<vmem>>, vector<4x128xbf16>,
    %c140 = arith.constant 140 : index
    %c0_90 = arith.constant 0 : index
    %162 = vector.load %arg11[%c140, %c0_90] : memref<216x128xbf16, #tpu.memory_space<vmem>>, vector<4x128xbf16>
    tpu.vector_store %arg11[%c140, %c0_90], %147 {strides = array<i32>} : memref<216x128xbf16, #tpu.memory_space<vmem>>, vector<4x128xbf16>,
    %c2_i32_91 = arith.constant 2 : i32
    %163 = arith.muli %c2_i32_91, %arg1 : i32
    %c1_i32_92 = arith.constant 1 : i32
    %164 = arith.addi %163, %c1_i32_92 : i32
    %c1_i32_93 = arith.constant 1 : i32
    %165 = arith.cmpi sge, %164, %c1_i32_93 : i32
    %c8_i32_94 = arith.constant 8 : i32
    %166 = arith.cmpi sle, %164, %c8_i32_94 : i32
    %167 = arith.andi %165, %166 : i1
    %cst_95 = arith.constant 1.000000e+00 : f32
    %cst_96 = arith.constant 0.000000e+00 : f32
    %168 = arith.select %167, %cst_95, %cst_96 : f32
    %c0_97 = arith.constant 0 : index
    %c0_98 = arith.constant 0 : index
    %c0_99 = arith.constant 0 : index
    %c0_100 = arith.constant 0 : index
    %c0_101 = arith.constant 0 : index
    %169 = vector.load %arg8[%c0_97, %c0_98, %c0_99, %c0_100, %c0_101] : memref<1x1x4x4x256xbf16, #tpu.memory_space<vmem>>, vector<1x1x1x4x128xbf16>
    %170 = vector.shape_cast %169 : vector<1x1x1x4x128xbf16> to vector<4x128xbf16>
    %c0_102 = arith.constant 0 : index
    %c0_103 = arith.constant 0 : index
    %171 = vector.load %arg4[%c0_102, %c0_103] : memref<9x128xf32, #tpu.memory_space<vmem>>, vector<1x128xf32>
    %172 = arith.extf %170 : vector<4x128xbf16> to vector<4x128xf32>
    %173 = vector.broadcast %1 : vector<4x1xf32> to vector<4x128xf32>
    %174 = arith.subf %172, %173 : vector<4x128xf32>
    %175 = vector.broadcast %3 : vector<4x1xf32> to vector<4x128xf32>
    %176 = arith.mulf %174, %175 : vector<4x128xf32>
    %cst_104 = arith.constant 0.000000e+00 : f32
    %177 = vector.broadcast %cst_104 : f32 to vector<4x128xf32>
    %178 = arith.maximumf %176, %177 : vector<4x128xf32>
    %179 = vector.broadcast %168 : f32 to vector<1x128xf32>
    %180 = arith.mulf %171, %179 : vector<1x128xf32>
    %181 = vector.broadcast %180 : vector<1x128xf32> to vector<4x128xf32>
    %182 = arith.mulf %178, %181 : vector<4x128xf32>
    %183 = arith.truncf %182 : vector<4x128xf32> to vector<4x128xbf16>
    %c36 = arith.constant 36 : index
    %c0_105 = arith.constant 0 : index
    %184 = vector.load %arg11[%c36, %c0_105] : memref<216x128xbf16, #tpu.memory_space<vmem>>, vector<4x128xbf16>
    tpu.vector_store %arg11[%c36, %c0_105], %183 {strides = array<i32>} : memref<216x128xbf16, #tpu.memory_space<vmem>>, vector<4x128xbf16>,
    %c144 = arith.constant 144 : index
    %c0_106 = arith.constant 0 : index
    %185 = vector.load %arg11[%c144, %c0_106] : memref<216x128xbf16, #tpu.memory_space<vmem>>, vector<4x128xbf16>
    tpu.vector_store %arg11[%c144, %c0_106], %170 {strides = array<i32>} : memref<216x128xbf16, #tpu.memory_space<vmem>>, vector<4x128xbf16>,
    %c0_107 = arith.constant 0 : index
    %c0_108 = arith.constant 0 : index
    %c1_109 = arith.constant 1 : index
    %c0_110 = arith.constant 0 : index
    %c0_111 = arith.constant 0 : index
    %186 = vector.load %arg8[%c0_107, %c0_108, %c1_109, %c0_110, %c0_111] : memref<1x1x4x4x256xbf16, #tpu.memory_space<vmem>>, vector<1x1x1x4x128xbf16>
    %187 = vector.shape_cast %186 : vector<1x1x1x4x128xbf16> to vector<4x128xbf16>
    %c1_112 = arith.constant 1 : index
    %c0_113 = arith.constant 0 : index
    %188 = vector.load %arg4[%c1_112, %c0_113] : memref<9x128xf32, #tpu.memory_space<vmem>>, vector<1x128xf32>
    %189 = arith.extf %187 : vector<4x128xbf16> to vector<4x128xf32>
    %190 = vector.broadcast %1 : vector<4x1xf32> to vector<4x128xf32>
    %191 = arith.subf %189, %190 : vector<4x128xf32>
    %192 = vector.broadcast %3 : vector<4x1xf32> to vector<4x128xf32>
    %193 = arith.mulf %191, %192 : vector<4x128xf32>
    %cst_114 = arith.constant 0.000000e+00 : f32
    %194 = vector.broadcast %cst_114 : f32 to vector<4x128xf32>
    %195 = arith.maximumf %193, %194 : vector<4x128xf32>
    %196 = vector.broadcast %168 : f32 to vector<1x128xf32>
    %197 = arith.mulf %188, %196 : vector<1x128xf32>
    %198 = vector.broadcast %197 : vector<1x128xf32> to vector<4x128xf32>
    %199 = arith.mulf %195, %198 : vector<4x128xf32>
    %200 = arith.truncf %199 : vector<4x128xf32> to vector<4x128xbf16>
    %c40 = arith.constant 40 : index
    %c0_115 = arith.constant 0 : index
    %201 = vector.load %arg11[%c40, %c0_115] : memref<216x128xbf16, #tpu.memory_space<vmem>>, vector<4x128xbf16>
    tpu.vector_store %arg11[%c40, %c0_115], %200 {strides = array<i32>} : memref<216x128xbf16, #tpu.memory_space<vmem>>, vector<4x128xbf16>,
    %c148 = arith.constant 148 : index
    %c0_116 = arith.constant 0 : index
    %202 = vector.load %arg11[%c148, %c0_116] : memref<216x128xbf16, #tpu.memory_space<vmem>>, vector<4x128xbf16>
    tpu.vector_store %arg11[%c148, %c0_116], %187 {strides = array<i32>} : memref<216x128xbf16, #tpu.memory_space<vmem>>, vector<4x128xbf16>,
    %c0_117 = arith.constant 0 : index
    %c0_118 = arith.constant 0 : index
    %c0_119 = arith.constant 0 : index
    %c0_120 = arith.constant 0 : index
    %c1_121 = arith.constant 1 : index
    %203 = vector.load %arg8[%c0_117, %c0_118, %c0_119, %c0_120, %c1_121] : memref<1x1x4x4x256xbf16, #tpu.memory_space<vmem>>, vector<1x1x1x4x128xbf16>
    %204 = vector.shape_cast %203 : vector<1x1x1x4x128xbf16> to vector<4x128xbf16>
    %c2_122 = arith.constant 2 : index
    %c0_123 = arith.constant 0 : index
    %205 = vector.load %arg4[%c2_122, %c0_123] : memref<9x128xf32, #tpu.memory_space<vmem>>, vector<1x128xf32>
    %206 = arith.extf %204 : vector<4x128xbf16> to vector<4x128xf32>
    %207 = vector.broadcast %1 : vector<4x1xf32> to vector<4x128xf32>
    %208 = arith.subf %206, %207 : vector<4x128xf32>
    %209 = vector.broadcast %3 : vector<4x1xf32> to vector<4x128xf32>
    %210 = arith.mulf %208, %209 : vector<4x128xf32>
    %cst_124 = arith.constant 0.000000e+00 : f32
    %211 = vector.broadcast %cst_124 : f32 to vector<4x128xf32>
    %212 = arith.maximumf %210, %211 : vector<4x128xf32>
    %213 = vector.broadcast %168 : f32 to vector<1x128xf32>
    %214 = arith.mulf %205, %213 : vector<1x128xf32>
    %215 = vector.broadcast %214 : vector<1x128xf32> to vector<4x128xf32>
    %216 = arith.mulf %212, %215 : vector<4x128xf32>
    %217 = arith.truncf %216 : vector<4x128xf32> to vector<4x128xbf16>
    %c44 = arith.constant 44 : index
    %c0_125 = arith.constant 0 : index
    %218 = vector.load %arg11[%c44, %c0_125] : memref<216x128xbf16, #tpu.memory_space<vmem>>, vector<4x128xbf16>
    tpu.vector_store %arg11[%c44, %c0_125], %217 {strides = array<i32>} : memref<216x128xbf16, #tpu.memory_space<vmem>>, vector<4x128xbf16>,
    %c152 = arith.constant 152 : index
    %c0_126 = arith.constant 0 : index
    %219 = vector.load %arg11[%c152, %c0_126] : memref<216x128xbf16, #tpu.memory_space<vmem>>, vector<4x128xbf16>
    tpu.vector_store %arg11[%c152, %c0_126], %204 {strides = array<i32>} : memref<216x128xbf16, #tpu.memory_space<vmem>>, vector<4x128xbf16>,
    %c0_127 = arith.constant 0 : index
    %c0_128 = arith.constant 0 : index
    %c2_129 = arith.constant 2 : index
    %c0_130 = arith.constant 0 : index
    %c0_131 = arith.constant 0 : index
    %220 = vector.load %arg8[%c0_127, %c0_128, %c2_129, %c0_130, %c0_131] : memref<1x1x4x4x256xbf16, #tpu.memory_space<vmem>>, vector<1x1x1x4x128xbf16>
    %221 = vector.shape_cast %220 : vector<1x1x1x4x128xbf16> to vector<4x128xbf16>
    %c3_132 = arith.constant 3 : index
    %c0_133 = arith.constant 0 : index
    %222 = vector.load %arg4[%c3_132, %c0_133] : memref<9x128xf32, #tpu.memory_space<vmem>>, vector<1x128xf32>
    %223 = arith.extf %221 : vector<4x128xbf16> to vector<4x128xf32>
    %224 = vector.broadcast %1 : vector<4x1xf32> to vector<4x128xf32>
    %225 = arith.subf %223, %224 : vector<4x128xf32>
    %226 = vector.broadcast %3 : vector<4x1xf32> to vector<4x128xf32>
    %227 = arith.mulf %225, %226 : vector<4x128xf32>
    %cst_134 = arith.constant 0.000000e+00 : f32
    %228 = vector.broadcast %cst_134 : f32 to vector<4x128xf32>
    %229 = arith.maximumf %227, %228 : vector<4x128xf32>
    %230 = vector.broadcast %168 : f32 to vector<1x128xf32>
    %231 = arith.mulf %222, %230 : vector<1x128xf32>
    %232 = vector.broadcast %231 : vector<1x128xf32> to vector<4x128xf32>
    %233 = arith.mulf %229, %232 : vector<4x128xf32>
    %234 = arith.truncf %233 : vector<4x128xf32> to vector<4x128xbf16>
    %c48 = arith.constant 48 : index
    %c0_135 = arith.constant 0 : index
    %235 = vector.load %arg11[%c48, %c0_135] : memref<216x128xbf16, #tpu.memory_space<vmem>>, vector<4x128xbf16>
    tpu.vector_store %arg11[%c48, %c0_135], %234 {strides = array<i32>} : memref<216x128xbf16, #tpu.memory_space<vmem>>, vector<4x128xbf16>,
    %c156 = arith.constant 156 : index
    %c0_136 = arith.constant 0 : index
    %236 = vector.load %arg11[%c156, %c0_136] : memref<216x128xbf16, #tpu.memory_space<vmem>>, vector<4x128xbf16>
    tpu.vector_store %arg11[%c156, %c0_136], %221 {strides = array<i32>} : memref<216x128xbf16, #tpu.memory_space<vmem>>, vector<4x128xbf16>,
    %c0_137 = arith.constant 0 : index
    %c0_138 = arith.constant 0 : index
    %c3_139 = arith.constant 3 : index
    %c0_140 = arith.constant 0 : index
    %c0_141 = arith.constant 0 : index
    %237 = vector.load %arg8[%c0_137, %c0_138, %c3_139, %c0_140, %c0_141] : memref<1x1x4x4x256xbf16, #tpu.memory_space<vmem>>, vector<1x1x1x4x128xbf16>
    %238 = vector.shape_cast %237 : vector<1x1x1x4x128xbf16> to vector<4x128xbf16>
    %c4_142 = arith.constant 4 : index
    %c0_143 = arith.constant 0 : index
    %239 = vector.load %arg4[%c4_142, %c0_143] : memref<9x128xf32, #tpu.memory_space<vmem>>, vector<1x128xf32>
    %240 = arith.extf %238 : vector<4x128xbf16> to vector<4x128xf32>
    %241 = vector.broadcast %1 : vector<4x1xf32> to vector<4x128xf32>
    %242 = arith.subf %240, %241 : vector<4x128xf32>
    %243 = vector.broadcast %3 : vector<4x1xf32> to vector<4x128xf32>
    %244 = arith.mulf %242, %243 : vector<4x128xf32>
    %cst_144 = arith.constant 0.000000e+00 : f32
    %245 = vector.broadcast %cst_144 : f32 to vector<4x128xf32>
    %246 = arith.maximumf %244, %245 : vector<4x128xf32>
    %247 = vector.broadcast %168 : f32 to vector<1x128xf32>
    %248 = arith.mulf %239, %247 : vector<1x128xf32>
    %249 = vector.broadcast %248 : vector<1x128xf32> to vector<4x128xf32>
    %250 = arith.mulf %246, %249 : vector<4x128xf32>
    %251 = arith.truncf %250 : vector<4x128xf32> to vector<4x128xbf16>
    %c52 = arith.constant 52 : index
    %c0_145 = arith.constant 0 : index
    %252 = vector.load %arg11[%c52, %c0_145] : memref<216x128xbf16, #tpu.memory_space<vmem>>, vector<4x128xbf16>
    tpu.vector_store %arg11[%c52, %c0_145], %251 {strides = array<i32>} : memref<216x128xbf16, #tpu.memory_space<vmem>>, vector<4x128xbf16>,
    %c160 = arith.constant 160 : index
    %c0_146 = arith.constant 0 : index
    %253 = vector.load %arg11[%c160, %c0_146] : memref<216x128xbf16, #tpu.memory_space<vmem>>, vector<4x128xbf16>
    tpu.vector_store %arg11[%c160, %c0_146], %238 {strides = array<i32>} : memref<216x128xbf16, #tpu.memory_space<vmem>>, vector<4x128xbf16>,
    %c0_147 = arith.constant 0 : index
    %c0_148 = arith.constant 0 : index
    %c2_149 = arith.constant 2 : index
    %c0_150 = arith.constant 0 : index
    %c1_151 = arith.constant 1 : index
    %254 = vector.load %arg8[%c0_147, %c0_148, %c2_149, %c0_150, %c1_151] : memref<1x1x4x4x256xbf16, #tpu.memory_space<vmem>>, vector<1x1x1x4x128xbf16>
    %255 = vector.shape_cast %254 : vector<1x1x1x4x128xbf16> to vector<4x128xbf16>
    %c5_152 = arith.constant 5 : index
    %c0_153 = arith.constant 0 : index
    %256 = vector.load %arg4[%c5_152, %c0_153] : memref<9x128xf32, #tpu.memory_space<vmem>>, vector<1x128xf32>
    %257 = arith.extf %255 : vector<4x128xbf16> to vector<4x128xf32>
    %258 = vector.broadcast %1 : vector<4x1xf32> to vector<4x128xf32>
    %259 = arith.subf %257, %258 : vector<4x128xf32>
    %260 = vector.broadcast %3 : vector<4x1xf32> to vector<4x128xf32>
    %261 = arith.mulf %259, %260 : vector<4x128xf32>
    %cst_154 = arith.constant 0.000000e+00 : f32
    %262 = vector.broadcast %cst_154 : f32 to vector<4x128xf32>
    %263 = arith.maximumf %261, %262 : vector<4x128xf32>
    %264 = vector.broadcast %168 : f32 to vector<1x128xf32>
    %265 = arith.mulf %256, %264 : vector<1x128xf32>
    %266 = vector.broadcast %265 : vector<1x128xf32> to vector<4x128xf32>
    %267 = arith.mulf %263, %266 : vector<4x128xf32>
    %268 = arith.truncf %267 : vector<4x128xf32> to vector<4x128xbf16>
    %c56 = arith.constant 56 : index
    %c0_155 = arith.constant 0 : index
    %269 = vector.load %arg11[%c56, %c0_155] : memref<216x128xbf16, #tpu.memory_space<vmem>>, vector<4x128xbf16>
    tpu.vector_store %arg11[%c56, %c0_155], %268 {strides = array<i32>} : memref<216x128xbf16, #tpu.memory_space<vmem>>, vector<4x128xbf16>,
    %c164 = arith.constant 164 : index
    %c0_156 = arith.constant 0 : index
    %270 = vector.load %arg11[%c164, %c0_156] : memref<216x128xbf16, #tpu.memory_space<vmem>>, vector<4x128xbf16>
    tpu.vector_store %arg11[%c164, %c0_156], %255 {strides = array<i32>} : memref<216x128xbf16, #tpu.memory_space<vmem>>, vector<4x128xbf16>,
    %c0_157 = arith.constant 0 : index
    %c0_158 = arith.constant 0 : index
    %c0_159 = arith.constant 0 : index
    %c0_160 = arith.constant 0 : index
    %c5_161 = arith.constant 5 : index
    %271 = vector.load %arg8[%c0_157, %c0_158, %c0_159, %c0_160, %c5_161] : memref<1x1x4x4x256xbf16, #tpu.memory_space<vmem>>, vector<1x1x1x4x128xbf16>
    %272 = vector.shape_cast %271 : vector<1x1x1x4x128xbf16> to vector<4x128xbf16>
    %c6_162 = arith.constant 6 : index
    %c0_163 = arith.constant 0 : index
    %273 = vector.load %arg4[%c6_162, %c0_163] : memref<9x128xf32, #tpu.memory_space<vmem>>, vector<1x128xf32>
    %274 = arith.extf %272 : vector<4x128xbf16> to vector<4x128xf32>
    %275 = vector.broadcast %1 : vector<4x1xf32> to vector<4x128xf32>
    %276 = arith.subf %274, %275 : vector<4x128xf32>
    %277 = vector.broadcast %3 : vector<4x1xf32> to vector<4x128xf32>
    %278 = arith.mulf %276, %277 : vector<4x128xf32>
    %cst_164 = arith.constant 0.000000e+00 : f32
    %279 = vector.broadcast %cst_164 : f32 to vector<4x128xf32>
    %280 = arith.maximumf %278, %279 : vector<4x128xf32>
    %281 = vector.broadcast %168 : f32 to vector<1x128xf32>
    %282 = arith.mulf %273, %281 : vector<1x128xf32>
    %283 = vector.broadcast %282 : vector<1x128xf32> to vector<4x128xf32>
    %284 = arith.mulf %280, %283 : vector<4x128xf32>
    %285 = arith.truncf %284 : vector<4x128xf32> to vector<4x128xbf16>
    %c60 = arith.constant 60 : index
    %c0_165 = arith.constant 0 : index
    %286 = vector.load %arg11[%c60, %c0_165] : memref<216x128xbf16, #tpu.memory_space<vmem>>, vector<4x128xbf16>
    tpu.vector_store %arg11[%c60, %c0_165], %285 {strides = array<i32>} : memref<216x128xbf16, #tpu.memory_space<vmem>>, vector<4x128xbf16>,
    %c168 = arith.constant 168 : index
    %c0_166 = arith.constant 0 : index
    %287 = vector.load %arg11[%c168, %c0_166] : memref<216x128xbf16, #tpu.memory_space<vmem>>, vector<4x128xbf16>
    tpu.vector_store %arg11[%c168, %c0_166], %272 {strides = array<i32>} : memref<216x128xbf16, #tpu.memory_space<vmem>>, vector<4x128xbf16>,
    %c0_167 = arith.constant 0 : index
    %c0_168 = arith.constant 0 : index
    %c1_169 = arith.constant 1 : index
    %c0_170 = arith.constant 0 : index
    %c5_171 = arith.constant 5 : index
    %288 = vector.load %arg8[%c0_167, %c0_168, %c1_169, %c0_170, %c5_171] : memref<1x1x4x4x256xbf16, #tpu.memory_space<vmem>>, vector<1x1x1x4x128xbf16>
    %289 = vector.shape_cast %288 : vector<1x1x1x4x128xbf16> to vector<4x128xbf16>
    %c7_172 = arith.constant 7 : index
    %c0_173 = arith.constant 0 : index
    %290 = vector.load %arg4[%c7_172, %c0_173] : memref<9x128xf32, #tpu.memory_space<vmem>>, vector<1x128xf32>
    %291 = arith.extf %289 : vector<4x128xbf16> to vector<4x128xf32>
    %292 = vector.broadcast %1 : vector<4x1xf32> to vector<4x128xf32>
    %293 = arith.subf %291, %292 : vector<4x128xf32>
    %294 = vector.broadcast %3 : vector<4x1xf32> to vector<4x128xf32>
    %295 = arith.mulf %293, %294 : vector<4x128xf32>
    %cst_174 = arith.constant 0.000000e+00 : f32
    %296 = vector.broadcast %cst_174 : f32 to vector<4x128xf32>
    %297 = arith.maximumf %295, %296 : vector<4x128xf32>
    %298 = vector.broadcast %168 : f32 to vector<1x128xf32>
    %299 = arith.mulf %290, %298 : vector<1x128xf32>
    %300 = vector.broadcast %299 : vector<1x128xf32> to vector<4x128xf32>
    %301 = arith.mulf %297, %300 : vector<4x128xf32>
    %302 = arith.truncf %301 : vector<4x128xf32> to vector<4x128xbf16>
    %c64 = arith.constant 64 : index
    %c0_175 = arith.constant 0 : index
    %303 = vector.load %arg11[%c64, %c0_175] : memref<216x128xbf16, #tpu.memory_space<vmem>>, vector<4x128xbf16>
    tpu.vector_store %arg11[%c64, %c0_175], %302 {strides = array<i32>} : memref<216x128xbf16, #tpu.memory_space<vmem>>, vector<4x128xbf16>,
    %c172 = arith.constant 172 : index
    %c0_176 = arith.constant 0 : index
    %304 = vector.load %arg11[%c172, %c0_176] : memref<216x128xbf16, #tpu.memory_space<vmem>>, vector<4x128xbf16>
    tpu.vector_store %arg11[%c172, %c0_176], %289 {strides = array<i32>} : memref<216x128xbf16, #tpu.memory_space<vmem>>, vector<4x128xbf16>,
    %c0_177 = arith.constant 0 : index
    %c0_178 = arith.constant 0 : index
    %c0_179 = arith.constant 0 : index
    %c0_180 = arith.constant 0 : index
    %c6_181 = arith.constant 6 : index
    %305 = vector.load %arg8[%c0_177, %c0_178, %c0_179, %c0_180, %c6_181] : memref<1x1x4x4x256xbf16, #tpu.memory_space<vmem>>, vector<1x1x1x4x128xbf16>
    %306 = vector.shape_cast %305 : vector<1x1x1x4x128xbf16> to vector<4x128xbf16>
    %c8_182 = arith.constant 8 : index
    %c0_183 = arith.constant 0 : index
    %307 = vector.load %arg4[%c8_182, %c0_183] : memref<9x128xf32, #tpu.memory_space<vmem>>, vector<1x128xf32>
    %308 = arith.extf %306 : vector<4x128xbf16> to vector<4x128xf32>
    %309 = vector.broadcast %1 : vector<4x1xf32> to vector<4x128xf32>
    %310 = arith.subf %308, %309 : vector<4x128xf32>
    %311 = vector.broadcast %3 : vector<4x1xf32> to vector<4x128xf32>
    %312 = arith.mulf %310, %311 : vector<4x128xf32>
    %cst_184 = arith.constant 0.000000e+00 : f32
    %313 = vector.broadcast %cst_184 : f32 to vector<4x128xf32>
    %314 = arith.maximumf %312, %313 : vector<4x128xf32>
    %315 = vector.broadcast %168 : f32 to vector<1x128xf32>
    %316 = arith.mulf %307, %315 : vector<1x128xf32>
    %317 = vector.broadcast %316 : vector<1x128xf32> to vector<4x128xf32>
    %318 = arith.mulf %314, %317 : vector<4x128xf32>
    %319 = arith.truncf %318 : vector<4x128xf32> to vector<4x128xbf16>
    %c68 = arith.constant 68 : index
    %c0_185 = arith.constant 0 : index
    %320 = vector.load %arg11[%c68, %c0_185] : memref<216x128xbf16, #tpu.memory_space<vmem>>, vector<4x128xbf16>
    tpu.vector_store %arg11[%c68, %c0_185], %319 {strides = array<i32>} : memref<216x128xbf16, #tpu.memory_space<vmem>>, vector<4x128xbf16>,
    %c176 = arith.constant 176 : index
    %c0_186 = arith.constant 0 : index
    %321 = vector.load %arg11[%c176, %c0_186] : memref<216x128xbf16, #tpu.memory_space<vmem>>, vector<4x128xbf16>
    tpu.vector_store %arg11[%c176, %c0_186], %306 {strides = array<i32>} : memref<216x128xbf16, #tpu.memory_space<vmem>>, vector<4x128xbf16>,
    %c2_i32_187 = arith.constant 2 : i32
    %322 = arith.muli %c2_i32_187, %arg1 : i32
    %c2_i32_188 = arith.constant 2 : i32
    %323 = arith.addi %322, %c2_i32_188 : i32
    %c1_i32_189 = arith.constant 1 : i32
    %324 = arith.cmpi sge, %323, %c1_i32_189 : i32
    %c8_i32_190 = arith.constant 8 : i32
    %325 = arith.cmpi sle, %323, %c8_i32_190 : i32
    %326 = arith.andi %324, %325 : i1
    %cst_191 = arith.constant 1.000000e+00 : f32
    %cst_192 = arith.constant 0.000000e+00 : f32
    %327 = arith.select %326, %cst_191, %cst_192 : f32
    %c0_193 = arith.constant 0 : index
    %c0_194 = arith.constant 0 : index
    %c0_195 = arith.constant 0 : index
    %c0_196 = arith.constant 0 : index
    %c0_197 = arith.constant 0 : index
    %328 = vector.load %arg9[%c0_193, %c0_194, %c0_195, %c0_196, %c0_197] : memref<1x1x4x4x256xbf16, #tpu.memory_space<vmem>>, vector<1x1x1x4x128xbf16>
    %329 = vector.shape_cast %328 : vector<1x1x1x4x128xbf16> to vector<4x128xbf16>
    %c0_198 = arith.constant 0 : index
    %c0_199 = arith.constant 0 : index
    %330 = vector.load %arg4[%c0_198, %c0_199] : memref<9x128xf32, #tpu.memory_space<vmem>>, vector<1x128xf32>
    %331 = arith.extf %329 : vector<4x128xbf16> to vector<4x128xf32>
    %332 = vector.broadcast %1 : vector<4x1xf32> to vector<4x128xf32>
    %333 = arith.subf %331, %332 : vector<4x128xf32>
    %334 = vector.broadcast %3 : vector<4x1xf32> to vector<4x128xf32>
    %335 = arith.mulf %333, %334 : vector<4x128xf32>
    %cst_200 = arith.constant 0.000000e+00 : f32
    %336 = vector.broadcast %cst_200 : f32 to vector<4x128xf32>
    %337 = arith.maximumf %335, %336 : vector<4x128xf32>
    %338 = vector.broadcast %327 : f32 to vector<1x128xf32>
    %339 = arith.mulf %330, %338 : vector<1x128xf32>
    %340 = vector.broadcast %339 : vector<1x128xf32> to vector<4x128xf32>
    %341 = arith.mulf %337, %340 : vector<4x128xf32>
    %342 = arith.truncf %341 : vector<4x128xf32> to vector<4x128xbf16>
    %c72 = arith.constant 72 : index
    %c0_201 = arith.constant 0 : index
    %343 = vector.load %arg11[%c72, %c0_201] : memref<216x128xbf16, #tpu.memory_space<vmem>>, vector<4x128xbf16>
    tpu.vector_store %arg11[%c72, %c0_201], %342 {strides = array<i32>} : memref<216x128xbf16, #tpu.memory_space<vmem>>, vector<4x128xbf16>,
    %c180 = arith.constant 180 : index
    %c0_202 = arith.constant 0 : index
    %344 = vector.load %arg11[%c180, %c0_202] : memref<216x128xbf16, #tpu.memory_space<vmem>>, vector<4x128xbf16>
    tpu.vector_store %arg11[%c180, %c0_202], %329 {strides = array<i32>} : memref<216x128xbf16, #tpu.memory_space<vmem>>, vector<4x128xbf16>,
    %c0_203 = arith.constant 0 : index
    %c0_204 = arith.constant 0 : index
    %c1_205 = arith.constant 1 : index
    %c0_206 = arith.constant 0 : index
    %c0_207 = arith.constant 0 : index
    %345 = vector.load %arg9[%c0_203, %c0_204, %c1_205, %c0_206, %c0_207] : memref<1x1x4x4x256xbf16, #tpu.memory_space<vmem>>, vector<1x1x1x4x128xbf16>
    %346 = vector.shape_cast %345 : vector<1x1x1x4x128xbf16> to vector<4x128xbf16>
    %c1_208 = arith.constant 1 : index
    %c0_209 = arith.constant 0 : index
    %347 = vector.load %arg4[%c1_208, %c0_209] : memref<9x128xf32, #tpu.memory_space<vmem>>, vector<1x128xf32>
    %348 = arith.extf %346 : vector<4x128xbf16> to vector<4x128xf32>
    %349 = vector.broadcast %1 : vector<4x1xf32> to vector<4x128xf32>
    %350 = arith.subf %348, %349 : vector<4x128xf32>
    %351 = vector.broadcast %3 : vector<4x1xf32> to vector<4x128xf32>
    %352 = arith.mulf %350, %351 : vector<4x128xf32>
    %cst_210 = arith.constant 0.000000e+00 : f32
    %353 = vector.broadcast %cst_210 : f32 to vector<4x128xf32>
    %354 = arith.maximumf %352, %353 : vector<4x128xf32>
    %355 = vector.broadcast %327 : f32 to vector<1x128xf32>
    %356 = arith.mulf %347, %355 : vector<1x128xf32>
    %357 = vector.broadcast %356 : vector<1x128xf32> to vector<4x128xf32>
    %358 = arith.mulf %354, %357 : vector<4x128xf32>
    %359 = arith.truncf %358 : vector<4x128xf32> to vector<4x128xbf16>
    %c76 = arith.constant 76 : index
    %c0_211 = arith.constant 0 : index
    %360 = vector.load %arg11[%c76, %c0_211] : memref<216x128xbf16, #tpu.memory_space<vmem>>, vector<4x128xbf16>
    tpu.vector_store %arg11[%c76, %c0_211], %359 {strides = array<i32>} : memref<216x128xbf16, #tpu.memory_space<vmem>>, vector<4x128xbf16>,
    %c184 = arith.constant 184 : index
    %c0_212 = arith.constant 0 : index
    %361 = vector.load %arg11[%c184, %c0_212] : memref<216x128xbf16, #tpu.memory_space<vmem>>, vector<4x128xbf16>
    tpu.vector_store %arg11[%c184, %c0_212], %346 {strides = array<i32>} : memref<216x128xbf16, #tpu.memory_space<vmem>>, vector<4x128xbf16>,
    %c0_213 = arith.constant 0 : index
    %c0_214 = arith.constant 0 : index
    %c0_215 = arith.constant 0 : index
    %c0_216 = arith.constant 0 : index
    %c1_217 = arith.constant 1 : index
    %362 = vector.load %arg9[%c0_213, %c0_214, %c0_215, %c0_216, %c1_217] : memref<1x1x4x4x256xbf16, #tpu.memory_space<vmem>>, vector<1x1x1x4x128xbf16>
    %363 = vector.shape_cast %362 : vector<1x1x1x4x128xbf16> to vector<4x128xbf16>
    %c2_218 = arith.constant 2 : index
    %c0_219 = arith.constant 0 : index
    %364 = vector.load %arg4[%c2_218, %c0_219] : memref<9x128xf32, #tpu.memory_space<vmem>>, vector<1x128xf32>
    %365 = arith.extf %363 : vector<4x128xbf16> to vector<4x128xf32>
    %366 = vector.broadcast %1 : vector<4x1xf32> to vector<4x128xf32>
    %367 = arith.subf %365, %366 : vector<4x128xf32>
    %368 = vector.broadcast %3 : vector<4x1xf32> to vector<4x128xf32>
    %369 = arith.mulf %367, %368 : vector<4x128xf32>
    %cst_220 = arith.constant 0.000000e+00 : f32
    %370 = vector.broadcast %cst_220 : f32 to vector<4x128xf32>
    %371 = arith.maximumf %369, %370 : vector<4x128xf32>
    %372 = vector.broadcast %327 : f32 to vector<1x128xf32>
    %373 = arith.mulf %364, %372 : vector<1x128xf32>
    %374 = vector.broadcast %373 : vector<1x128xf32> to vector<4x128xf32>
    %375 = arith.mulf %371, %374 : vector<4x128xf32>
    %376 = arith.truncf %375 : vector<4x128xf32> to vector<4x128xbf16>
    %c80 = arith.constant 80 : index
    %c0_221 = arith.constant 0 : index
    %377 = vector.load %arg11[%c80, %c0_221] : memref<216x128xbf16, #tpu.memory_space<vmem>>, vector<4x128xbf16>
    tpu.vector_store %arg11[%c80, %c0_221], %376 {strides = array<i32>} : memref<216x128xbf16, #tpu.memory_space<vmem>>, vector<4x128xbf16>,
    %c188 = arith.constant 188 : index
    %c0_222 = arith.constant 0 : index
    %378 = vector.load %arg11[%c188, %c0_222] : memref<216x128xbf16, #tpu.memory_space<vmem>>, vector<4x128xbf16>
    tpu.vector_store %arg11[%c188, %c0_222], %363 {strides = array<i32>} : memref<216x128xbf16, #tpu.memory_space<vmem>>, vector<4x128xbf16>,
    %c0_223 = arith.constant 0 : index
    %c0_224 = arith.constant 0 : index
    %c2_225 = arith.constant 2 : index
    %c0_226 = arith.constant 0 : index
    %c0_227 = arith.constant 0 : index
    %379 = vector.load %arg9[%c0_223, %c0_224, %c2_225, %c0_226, %c0_227] : memref<1x1x4x4x256xbf16, #tpu.memory_space<vmem>>, vector<1x1x1x4x128xbf16>
    %380 = vector.shape_cast %379 : vector<1x1x1x4x128xbf16> to vector<4x128xbf16>
    %c3_228 = arith.constant 3 : index
    %c0_229 = arith.constant 0 : index
    %381 = vector.load %arg4[%c3_228, %c0_229] : memref<9x128xf32, #tpu.memory_space<vmem>>, vector<1x128xf32>
    %382 = arith.extf %380 : vector<4x128xbf16> to vector<4x128xf32>
    %383 = vector.broadcast %1 : vector<4x1xf32> to vector<4x128xf32>
    %384 = arith.subf %382, %383 : vector<4x128xf32>
    %385 = vector.broadcast %3 : vector<4x1xf32> to vector<4x128xf32>
    %386 = arith.mulf %384, %385 : vector<4x128xf32>
    %cst_230 = arith.constant 0.000000e+00 : f32
    %387 = vector.broadcast %cst_230 : f32 to vector<4x128xf32>
    %388 = arith.maximumf %386, %387 : vector<4x128xf32>
    %389 = vector.broadcast %327 : f32 to vector<1x128xf32>
    %390 = arith.mulf %381, %389 : vector<1x128xf32>
    %391 = vector.broadcast %390 : vector<1x128xf32> to vector<4x128xf32>
    %392 = arith.mulf %388, %391 : vector<4x128xf32>
    %393 = arith.truncf %392 : vector<4x128xf32> to vector<4x128xbf16>
    %c84 = arith.constant 84 : index
    %c0_231 = arith.constant 0 : index
    %394 = vector.load %arg11[%c84, %c0_231] : memref<216x128xbf16, #tpu.memory_space<vmem>>, vector<4x128xbf16>
    tpu.vector_store %arg11[%c84, %c0_231], %393 {strides = array<i32>} : memref<216x128xbf16, #tpu.memory_space<vmem>>, vector<4x128xbf16>,
    %c192 = arith.constant 192 : index
    %c0_232 = arith.constant 0 : index
    %395 = vector.load %arg11[%c192, %c0_232] : memref<216x128xbf16, #tpu.memory_space<vmem>>, vector<4x128xbf16>
    tpu.vector_store %arg11[%c192, %c0_232], %380 {strides = array<i32>} : memref<216x128xbf16, #tpu.memory_space<vmem>>, vector<4x128xbf16>,
    %c0_233 = arith.constant 0 : index
    %c0_234 = arith.constant 0 : index
    %c3_235 = arith.constant 3 : index
    %c0_236 = arith.constant 0 : index
    %c0_237 = arith.constant 0 : index
    %396 = vector.load %arg9[%c0_233, %c0_234, %c3_235, %c0_236, %c0_237] : memref<1x1x4x4x256xbf16, #tpu.memory_space<vmem>>, vector<1x1x1x4x128xbf16>
    %397 = vector.shape_cast %396 : vector<1x1x1x4x128xbf16> to vector<4x128xbf16>
    %c4_238 = arith.constant 4 : index
    %c0_239 = arith.constant 0 : index
    %398 = vector.load %arg4[%c4_238, %c0_239] : memref<9x128xf32, #tpu.memory_space<vmem>>, vector<1x128xf32>
    %399 = arith.extf %397 : vector<4x128xbf16> to vector<4x128xf32>
    %400 = vector.broadcast %1 : vector<4x1xf32> to vector<4x128xf32>
    %401 = arith.subf %399, %400 : vector<4x128xf32>
    %402 = vector.broadcast %3 : vector<4x1xf32> to vector<4x128xf32>
    %403 = arith.mulf %401, %402 : vector<4x128xf32>
    %cst_240 = arith.constant 0.000000e+00 : f32
    %404 = vector.broadcast %cst_240 : f32 to vector<4x128xf32>
    %405 = arith.maximumf %403, %404 : vector<4x128xf32>
    %406 = vector.broadcast %327 : f32 to vector<1x128xf32>
    %407 = arith.mulf %398, %406 : vector<1x128xf32>
    %408 = vector.broadcast %407 : vector<1x128xf32> to vector<4x128xf32>
    %409 = arith.mulf %405, %408 : vector<4x128xf32>
    %410 = arith.truncf %409 : vector<4x128xf32> to vector<4x128xbf16>
    %c88 = arith.constant 88 : index
    %c0_241 = arith.constant 0 : index
    %411 = vector.load %arg11[%c88, %c0_241] : memref<216x128xbf16, #tpu.memory_space<vmem>>, vector<4x128xbf16>
    tpu.vector_store %arg11[%c88, %c0_241], %410 {strides = array<i32>} : memref<216x128xbf16, #tpu.memory_space<vmem>>, vector<4x128xbf16>,
    %c196 = arith.constant 196 : index
    %c0_242 = arith.constant 0 : index
    %412 = vector.load %arg11[%c196, %c0_242] : memref<216x128xbf16, #tpu.memory_space<vmem>>, vector<4x128xbf16>
    tpu.vector_store %arg11[%c196, %c0_242], %397 {strides = array<i32>} : memref<216x128xbf16, #tpu.memory_space<vmem>>, vector<4x128xbf16>,
    %c0_243 = arith.constant 0 : index
    %c0_244 = arith.constant 0 : index
    %c2_245 = arith.constant 2 : index
    %c0_246 = arith.constant 0 : index
    %c1_247 = arith.constant 1 : index
    %413 = vector.load %arg9[%c0_243, %c0_244, %c2_245, %c0_246, %c1_247] : memref<1x1x4x4x256xbf16, #tpu.memory_space<vmem>>, vector<1x1x1x4x128xbf16>
    %414 = vector.shape_cast %413 : vector<1x1x1x4x128xbf16> to vector<4x128xbf16>
    %c5_248 = arith.constant 5 : index
    %c0_249 = arith.constant 0 : index
    %415 = vector.load %arg4[%c5_248, %c0_249] : memref<9x128xf32, #tpu.memory_space<vmem>>, vector<1x128xf32>
    %416 = arith.extf %414 : vector<4x128xbf16> to vector<4x128xf32>
    %417 = vector.broadcast %1 : vector<4x1xf32> to vector<4x128xf32>
    %418 = arith.subf %416, %417 : vector<4x128xf32>
    %419 = vector.broadcast %3 : vector<4x1xf32> to vector<4x128xf32>
    %420 = arith.mulf %418, %419 : vector<4x128xf32>
    %cst_250 = arith.constant 0.000000e+00 : f32
    %421 = vector.broadcast %cst_250 : f32 to vector<4x128xf32>
    %422 = arith.maximumf %420, %421 : vector<4x128xf32>
    %423 = vector.broadcast %327 : f32 to vector<1x128xf32>
    %424 = arith.mulf %415, %423 : vector<1x128xf32>
    %425 = vector.broadcast %424 : vector<1x128xf32> to vector<4x128xf32>
    %426 = arith.mulf %422, %425 : vector<4x128xf32>
    %427 = arith.truncf %426 : vector<4x128xf32> to vector<4x128xbf16>
    %c92 = arith.constant 92 : index
    %c0_251 = arith.constant 0 : index
    %428 = vector.load %arg11[%c92, %c0_251] : memref<216x128xbf16, #tpu.memory_space<vmem>>, vector<4x128xbf16>
    tpu.vector_store %arg11[%c92, %c0_251], %427 {strides = array<i32>} : memref<216x128xbf16, #tpu.memory_space<vmem>>, vector<4x128xbf16>,
    %c200 = arith.constant 200 : index
    %c0_252 = arith.constant 0 : index
    %429 = vector.load %arg11[%c200, %c0_252] : memref<216x128xbf16, #tpu.memory_space<vmem>>, vector<4x128xbf16>
    tpu.vector_store %arg11[%c200, %c0_252], %414 {strides = array<i32>} : memref<216x128xbf16, #tpu.memory_space<vmem>>, vector<4x128xbf16>,
    %c0_253 = arith.constant 0 : index
    %c0_254 = arith.constant 0 : index
    %c0_255 = arith.constant 0 : index
    %c0_256 = arith.constant 0 : index
    %c5_257 = arith.constant 5 : index
    %430 = vector.load %arg9[%c0_253, %c0_254, %c0_255, %c0_256, %c5_257] : memref<1x1x4x4x256xbf16, #tpu.memory_space<vmem>>, vector<1x1x1x4x128xbf16>
    %431 = vector.shape_cast %430 : vector<1x1x1x4x128xbf16> to vector<4x128xbf16>
    %c6_258 = arith.constant 6 : index
    %c0_259 = arith.constant 0 : index
    %432 = vector.load %arg4[%c6_258, %c0_259] : memref<9x128xf32, #tpu.memory_space<vmem>>, vector<1x128xf32>
    %433 = arith.extf %431 : vector<4x128xbf16> to vector<4x128xf32>
    %434 = vector.broadcast %1 : vector<4x1xf32> to vector<4x128xf32>
    %435 = arith.subf %433, %434 : vector<4x128xf32>
    %436 = vector.broadcast %3 : vector<4x1xf32> to vector<4x128xf32>
    %437 = arith.mulf %435, %436 : vector<4x128xf32>
    %cst_260 = arith.constant 0.000000e+00 : f32
    %438 = vector.broadcast %cst_260 : f32 to vector<4x128xf32>
    %439 = arith.maximumf %437, %438 : vector<4x128xf32>
    %440 = vector.broadcast %327 : f32 to vector<1x128xf32>
    %441 = arith.mulf %432, %440 : vector<1x128xf32>
    %442 = vector.broadcast %441 : vector<1x128xf32> to vector<4x128xf32>
    %443 = arith.mulf %439, %442 : vector<4x128xf32>
    %444 = arith.truncf %443 : vector<4x128xf32> to vector<4x128xbf16>
    %c96 = arith.constant 96 : index
    %c0_261 = arith.constant 0 : index
    %445 = vector.load %arg11[%c96, %c0_261] : memref<216x128xbf16, #tpu.memory_space<vmem>>, vector<4x128xbf16>
    tpu.vector_store %arg11[%c96, %c0_261], %444 {strides = array<i32>} : memref<216x128xbf16, #tpu.memory_space<vmem>>, vector<4x128xbf16>,
    %c204 = arith.constant 204 : index
    %c0_262 = arith.constant 0 : index
    %446 = vector.load %arg11[%c204, %c0_262] : memref<216x128xbf16, #tpu.memory_space<vmem>>, vector<4x128xbf16>
    tpu.vector_store %arg11[%c204, %c0_262], %431 {strides = array<i32>} : memref<216x128xbf16, #tpu.memory_space<vmem>>, vector<4x128xbf16>,
    %c0_263 = arith.constant 0 : index
    %c0_264 = arith.constant 0 : index
    %c1_265 = arith.constant 1 : index
    %c0_266 = arith.constant 0 : index
    %c5_267 = arith.constant 5 : index
    %447 = vector.load %arg9[%c0_263, %c0_264, %c1_265, %c0_266, %c5_267] : memref<1x1x4x4x256xbf16, #tpu.memory_space<vmem>>, vector<1x1x1x4x128xbf16>
    %448 = vector.shape_cast %447 : vector<1x1x1x4x128xbf16> to vector<4x128xbf16>
    %c7_268 = arith.constant 7 : index
    %c0_269 = arith.constant 0 : index
    %449 = vector.load %arg4[%c7_268, %c0_269] : memref<9x128xf32, #tpu.memory_space<vmem>>, vector<1x128xf32>
    %450 = arith.extf %448 : vector<4x128xbf16> to vector<4x128xf32>
    %451 = vector.broadcast %1 : vector<4x1xf32> to vector<4x128xf32>
    %452 = arith.subf %450, %451 : vector<4x128xf32>
    %453 = vector.broadcast %3 : vector<4x1xf32> to vector<4x128xf32>
    %454 = arith.mulf %452, %453 : vector<4x128xf32>
    %cst_270 = arith.constant 0.000000e+00 : f32
    %455 = vector.broadcast %cst_270 : f32 to vector<4x128xf32>
    %456 = arith.maximumf %454, %455 : vector<4x128xf32>
    %457 = vector.broadcast %327 : f32 to vector<1x128xf32>
    %458 = arith.mulf %449, %457 : vector<1x128xf32>
    %459 = vector.broadcast %458 : vector<1x128xf32> to vector<4x128xf32>
    %460 = arith.mulf %456, %459 : vector<4x128xf32>
    %461 = arith.truncf %460 : vector<4x128xf32> to vector<4x128xbf16>
    %c100 = arith.constant 100 : index
    %c0_271 = arith.constant 0 : index
    %462 = vector.load %arg11[%c100, %c0_271] : memref<216x128xbf16, #tpu.memory_space<vmem>>, vector<4x128xbf16>
    tpu.vector_store %arg11[%c100, %c0_271], %461 {strides = array<i32>} : memref<216x128xbf16, #tpu.memory_space<vmem>>, vector<4x128xbf16>,
    %c208 = arith.constant 208 : index
    %c0_272 = arith.constant 0 : index
    %463 = vector.load %arg11[%c208, %c0_272] : memref<216x128xbf16, #tpu.memory_space<vmem>>, vector<4x128xbf16>
    tpu.vector_store %arg11[%c208, %c0_272], %448 {strides = array<i32>} : memref<216x128xbf16, #tpu.memory_space<vmem>>, vector<4x128xbf16>,
    %c0_273 = arith.constant 0 : index
    %c0_274 = arith.constant 0 : index
    %c0_275 = arith.constant 0 : index
    %c0_276 = arith.constant 0 : index
    %c6_277 = arith.constant 6 : index
    %464 = vector.load %arg9[%c0_273, %c0_274, %c0_275, %c0_276, %c6_277] : memref<1x1x4x4x256xbf16, #tpu.memory_space<vmem>>, vector<1x1x1x4x128xbf16>
    %465 = vector.shape_cast %464 : vector<1x1x1x4x128xbf16> to vector<4x128xbf16>
    %c8_278 = arith.constant 8 : index
    %c0_279 = arith.constant 0 : index
    %466 = vector.load %arg4[%c8_278, %c0_279] : memref<9x128xf32, #tpu.memory_space<vmem>>, vector<1x128xf32>
    %467 = arith.extf %465 : vector<4x128xbf16> to vector<4x128xf32>
    %468 = vector.broadcast %1 : vector<4x1xf32> to vector<4x128xf32>
    %469 = arith.subf %467, %468 : vector<4x128xf32>
    %470 = vector.broadcast %3 : vector<4x1xf32> to vector<4x128xf32>
    %471 = arith.mulf %469, %470 : vector<4x128xf32>
    %cst_280 = arith.constant 0.000000e+00 : f32
    %472 = vector.broadcast %cst_280 : f32 to vector<4x128xf32>
    %473 = arith.maximumf %471, %472 : vector<4x128xf32>
    %474 = vector.broadcast %327 : f32 to vector<1x128xf32>
    %475 = arith.mulf %466, %474 : vector<1x128xf32>
    %476 = vector.broadcast %475 : vector<1x128xf32> to vector<4x128xf32>
    %477 = arith.mulf %473, %476 : vector<4x128xf32>
    %478 = arith.truncf %477 : vector<4x128xf32> to vector<4x128xbf16>
    %c104 = arith.constant 104 : index
    %c0_281 = arith.constant 0 : index
    %479 = vector.load %arg11[%c104, %c0_281] : memref<216x128xbf16, #tpu.memory_space<vmem>>, vector<4x128xbf16>
    tpu.vector_store %arg11[%c104, %c0_281], %478 {strides = array<i32>} : memref<216x128xbf16, #tpu.memory_space<vmem>>, vector<4x128xbf16>,
    %c212 = arith.constant 212 : index
    %c0_282 = arith.constant 0 : index
    %480 = vector.load %arg11[%c212, %c0_282] : memref<216x128xbf16, #tpu.memory_space<vmem>>, vector<4x128xbf16>
    tpu.vector_store %arg11[%c212, %c0_282], %465 {strides = array<i32>} : memref<216x128xbf16, #tpu.memory_space<vmem>>, vector<4x128xbf16>,
    %c0_283 = arith.constant 0 : index
    %c0_284 = arith.constant 0 : index
    %481 = vector.load %arg5[%c0_283, %c0_284] : memref<32x216xbf16, #tpu.memory_space<vmem>>, vector<32x216xbf16>
    %c0_285 = arith.constant 0 : index
    %c0_286 = arith.constant 0 : index
    %482 = vector.load %arg11[%c0_285, %c0_286] : memref<216x128xbf16, #tpu.memory_space<vmem>>, vector<216x128xbf16>
    %cst_287 = arith.constant dense<0.000000e+00> : vector<32x128xf32>
    %483 = tpu.matmul %481, %482, %cst_287 {dimension_numbers = #tpu.dot_dimension_numbers<[1], [0], [0], [1], [0, 0, 1, 1], [], []>} : vector<32x216xbf16>, vector<216x128xbf16>, vector<32x128xf32> -> vector<32x128xf32>
    %c0_288 = arith.constant 0 : index
    %c0_289 = arith.constant 0 : index
    %484 = vector.load %arg6[%c0_288, %c0_289] : memref<32x1xf32, #tpu.memory_space<vmem>>, vector<32x1xf32>
    %485 = vector.broadcast %484 : vector<32x1xf32> to vector<32x128xf32>
    %486 = arith.addf %483, %485 : vector<32x128xf32>
    %cst_290 = arith.constant 0.000000e+00 : f32
    %487 = vector.broadcast %cst_290 : f32 to vector<32x128xf32>
    %488 = arith.maximumf %486, %487 : vector<32x128xf32>
    %c0_291 = arith.constant 0 : index
    %c0_292 = arith.constant 0 : index
    %c0_293 = arith.constant 0 : index
    %c0_294 = arith.constant 0 : index
    %489 = vector.load %arg10[%c0_291, %c0_292, %c0_293, %c0_294] : memref<1x1x32x128xf32, #tpu.memory_space<vmem>>, vector<1x1x32x128xf32>
    %490 = vector.shape_cast %489 : vector<1x1x32x128xf32> to vector<32x128xf32>
    %491 = vector.shape_cast %488 : vector<32x128xf32> to vector<1x1x32x128xf32>
    tpu.vector_store %arg10[%c0_291, %c0_292, %c0_293, %c0_294], %491 {strides = array<i32>} : memref<1x1x32x128xf32, #tpu.memory_space<vmem>>, vector<1x1x32x128xf32>,
    return
  }
  func.func @transform_0(%arg0: i32, %arg1: i32) -> (i32, i32, i32) {
    %c0_i32 = arith.constant 0 : i32
    %c0_i32_0 = arith.constant 0 : i32
    %c0_i32_1 = arith.constant 0 : i32
    return %arg0, %c0_i32, %c0_i32_0 : i32, i32, i32
  }
  func.func @transform_1(%arg0: i32, %arg1: i32) -> (i32, i32, i32) {
    %c0_i32 = arith.constant 0 : i32
    %c0_i32_0 = arith.constant 0 : i32
    %c0_i32_1 = arith.constant 0 : i32
    return %arg0, %c0_i32, %c0_i32_0 : i32, i32, i32
  }
  func.func @transform_2(%arg0: i32, %arg1: i32) -> (i32, i32) {
    %c0_i32 = arith.constant 0 : i32
    %c0_i32_0 = arith.constant 0 : i32
    %c0_i32_1 = arith.constant 0 : i32
    return %c0_i32, %c0_i32_0 : i32, i32
  }
  func.func @transform_3(%arg0: i32, %arg1: i32) -> (i32, i32) {
    %c0_i32 = arith.constant 0 : i32
    %c0_i32_0 = arith.constant 0 : i32
    %c0_i32_1 = arith.constant 0 : i32
    return %c0_i32, %c0_i32_0 : i32, i32
  }
  func.func @transform_4(%arg0: i32, %arg1: i32) -> (i32, i32) {
    %c0_i32 = arith.constant 0 : i32
    %c0_i32_0 = arith.constant 0 : i32
    %c0_i32_1 = arith.constant 0 : i32
    return %c0_i32, %c0_i32_0 : i32, i32
  }
  func.func @transform_5(%arg0: i32, %arg1: i32) -> (i32, i32, i32, i32, i32) {
    %c2_i32 = arith.constant 2 : i32
    %0 = arith.muli %c2_i32, %arg1 : i32
    %c0_i32 = arith.constant 0 : i32
    %1 = arith.addi %0, %c0_i32 : i32
    %c0_i32_0 = arith.constant 0 : i32
    %c0_i32_1 = arith.constant 0 : i32
    %c0_i32_2 = arith.constant 0 : i32
    %c0_i32_3 = arith.constant 0 : i32
    return %arg0, %1, %c0_i32_0, %c0_i32_1, %c0_i32_2 : i32, i32, i32, i32, i32
  }
  func.func @transform_6(%arg0: i32, %arg1: i32) -> (i32, i32, i32, i32, i32) {
    %c2_i32 = arith.constant 2 : i32
    %0 = arith.muli %c2_i32, %arg1 : i32
    %c1_i32 = arith.constant 1 : i32
    %1 = arith.addi %0, %c1_i32 : i32
    %c0_i32 = arith.constant 0 : i32
    %c0_i32_0 = arith.constant 0 : i32
    %c0_i32_1 = arith.constant 0 : i32
    %c0_i32_2 = arith.constant 0 : i32
    return %arg0, %1, %c0_i32, %c0_i32_0, %c0_i32_1 : i32, i32, i32, i32, i32
  }
  func.func @transform_7(%arg0: i32, %arg1: i32) -> (i32, i32, i32, i32, i32) {
    %c2_i32 = arith.constant 2 : i32
    %0 = arith.muli %c2_i32, %arg1 : i32
    %c2_i32_0 = arith.constant 2 : i32
    %1 = arith.addi %0, %c2_i32_0 : i32
    %c0_i32 = arith.constant 0 : i32
    %c0_i32_1 = arith.constant 0 : i32
    %c0_i32_2 = arith.constant 0 : i32
    %c0_i32_3 = arith.constant 0 : i32
    return %arg0, %1, %c0_i32, %c0_i32_1, %c0_i32_2 : i32, i32, i32, i32, i32
  }
  func.func @transform_8(%arg0: i32, %arg1: i32) -> (i32, i32, i32, i32) {
    %c0_i32 = arith.constant 0 : i32
    %c0_i32_0 = arith.constant 0 : i32
    %c0_i32_1 = arith.constant 0 : i32
    return %arg0, %arg1, %c0_i32, %c0_i32_0 : i32, i32, i32, i32
  }
}

</mosaic_0001>

<llo_original>
// kernel: resnet_encoder_half_forward.2
$region0: #{resnet_encoder_half_forward.2}
  #allocation0 [shape = 'u32[]', space=smem, size = 0x4, offset = 0x4, fixed_abs, tag = 'smem constant byte address 0x4 - core index']
  #allocation1 [shape = 'u32[144,128]{1,0:T(1,128)}', space=vmem, size = 0x12000, scoped, tag = 'internal scratch']
  %s0 = inlined_call_operand.vmem [shape: f32[8,512], index: 0, kind: input, shape index: {}]
  %s1 = inlined_call_operand.vmem [shape: f32[8,1], index: 1, kind: output, shape index: {0}]
  %s2 = inlined_call_operand.vmem [shape: f32[8,1], index: 2, kind: output, shape index: {1}]
  %3 = xla_tuple %s1, %s2
  %s4 = sld [smem:[#allocation0]]
  $region30: #{resnet_encoder_half_forward.2} parent=0
    _
  %s6 = ssub.s32 1, %s4
  %s7 = scalar_select 0, %s6, %s4
  // Predicated region
  $region2: #{resnet_encoder_half_forward.2} parent=0 // pred_check
    _
  $region3: #{resnet_encoder_half_forward.2} parent=0 // pred_check_branch
    %9 = sbr.rel (0) target = $region5
  $region4: #{resnet_encoder_half_forward.2} parent=0 // pred_region
    _
  $region5: #{resnet_encoder_half_forward.2} parent=0 // pred_fallthru
    _
  %p10 = scmp.eq.s32.totalorder 0, 0
  // Predicated region
  $region6: #{resnet_encoder_half_forward.2} parent=0 // pred_check
    %p11 = pneg %p10
  $region7: #{resnet_encoder_half_forward.2} parent=0 // pred_check_branch
    %13 = sbr.rel (%p11) target = $region9
  $region8: #{resnet_encoder_half_forward.2} parent=0 // pred_region
    %vm14 = vcmask 7168
    %15 = vst.msk [vmem:[%s1] sm:$0xff] %vm14, 0.0
    %16 = vst.msk [vmem:[%s2] sm:$0xff] %vm14, 0.0
  $region9: #{resnet_encoder_half_forward.2} parent=0 // pred_fallthru
    _
  %v17 = vld [vmem:[%s0] sm:$0xff]
  %v18 = vld [vmem:[%s0 + $0x8] sm:$0xff]
  %v19 = vld [vmem:[%s0 + $0x10] sm:$0xff]
  %v20 = vld [vmem:[%s0 + $0x18] sm:$0xff]
  %v21 = vld [vmem:[%s1] sm:$0xff]
  %v22 = vadd.f32 %v17, %v18
  %v23 = vadd.f32 %v22, %v19
  %v24 = vadd.f32 %v23, %v20
  %25 = vadd.xlane.f32.xlu0 %v24
  %v26 = vpop.xlane.xlu0 %25
  %v27 = vadd.f32 %v21, %v26
  %vm28 = vcmask 7168
  %29 = vst.msk [vmem:[%s1] sm:$0xff] %vm28, %v27
  %v30 = vld [vmem:[%s2] sm:$0xff]
  %v31 = vmul.f32 %v17, %v17
  %v32 = vmul.f32 %v18, %v18
  %v33 = vmul.f32 %v19, %v19
  %v34 = vmul.f32 %v20, %v20
  %v35 = vadd.f32 %v31, %v32
  %v36 = vadd.f32 %v35, %v33
  %v37 = vadd.f32 %v36, %v34
  %38 = vadd.xlane.f32.xlu0 %v37
  %v39 = vpop.xlane.xlu0 %38
  %v40 = vadd.f32 %v30, %v39
  %41 = vst.msk [vmem:[%s2] sm:$0xff] %vm28, %v40
  // Predicated region
  $region10: #{resnet_encoder_half_forward.2} parent=0 // pred_check
    %p42 = pneg %p10
  $region11: #{resnet_encoder_half_forward.2} parent=0 // pred_check_branch
    %44 = sbr.rel (%p42) target = $region13
  $region12: #{resnet_encoder_half_forward.2} parent=0 // pred_region
    %v45 = vld [vmem:[%s1] sm:$0xff]
    %v46 = vmul.f32 %v45, 0.001953125
    %v47 = vld [vmem:[%s2] sm:$0xff]
    %v48 = vmul.f32 %v47, 0.001953125
    %49 = vst.msk [vmem:[%s1] sm:$0xff] %vm28, %v46
    %v50 = vmul.f32 %v46, %v46
    %v51 = vsub.f32 %v48, %v50
    %v52 = vmax.f32 %v51, 0.0
    %v53 = vadd.f32 %v52, 1e-05
    %v54 = vrsqrt.pop %v53
    %55 = vst.msk [vmem:[%s2] sm:$0xff] %vm28, %v54
  $region13: #{resnet_encoder_half_forward.2} parent=0 // pred_fallthru
    _
  // Predicated region
  $region14: #{resnet_encoder_half_forward.2} parent=0 // pred_check
    _
  $region15: #{resnet_encoder_half_forward.2} parent=0 // pred_check_branch
    %57 = sbr.rel (0) target = $region17
  $region16: #{resnet_encoder_half_forward.2} parent=0 // pred_region
    _
  $region17: #{resnet_encoder_half_forward.2} parent=0 // pred_fallthru
    _
  // Predicated region
  $region18: #{resnet_encoder_half_forward.2} parent=0 // pred_check
    _
  $region19: #{resnet_encoder_half_forward.2} parent=0 // pred_check_branch
    %59 = sbr.rel (0) target = $region21
  $region20: #{resnet_encoder_half_forward.2} parent=0 // pred_region
    _
  $region21: #{resnet_encoder_half_forward.2} parent=0 // pred_fallthru
    _
  // Predicated region
  $region22: #{resnet_encoder_half_forward.2} parent=0 // pred_check
    _
  $region23: #{resnet_encoder_half_forward.2} parent=0 // pred_check_branch
    %61 = sbr.rel (0) target = $region25
  $region24: #{resnet_encoder_half_forward.2} parent=0 // pred_region
    _
  $region25: #{resnet_encoder_half_forward.2} parent=0 // pred_fallthru
    _
  // Predicated region
  $region26: #{resnet_encoder_half_forward.2} parent=0 // pred_check
    _
  $region27: #{resnet_encoder_half_forward.2} parent=0 // pred_check_branch
    %63 = sbr.rel (0) target = $region29
  $region28: #{resnet_encoder_half_forward.2} parent=0 // pred_region
    _
  $region29: #{resnet_encoder_half_forward.2} parent=0 // pred_fallthru
    _

// kernel: resnet_encoder_half_forward.3
$region0: #{resnet_encoder_half_forward.3}
  #allocation0 [shape = 'u32[]', space=smem, size = 0x4, offset = 0x4, fixed_abs, tag = 'smem constant byte address 0x4 - core index']
  #allocation1 [shape = 'u32[144,128]{1,0:T(1,128)}', space=vmem, size = 0x12000, scoped, tag = 'internal scratch']
  #allocation2 [shape = 'bf16[216,128]{1,0:T(8,128)(2,1)}', space=vmem, size = 0xd800, scoped, tag = 'scratch operand']
  %s0 = inlined_call_operand.vmem [shape: f32[2,4,1], index: 0, kind: input, shape index: {}]
  %s1 = inlined_call_operand.vmem [shape: f32[2,4,1], index: 1, kind: input, shape index: {}]
  %s2 = inlined_call_operand.vmem [shape: f32[9,128], index: 2, kind: input, shape index: {}]
  %s3 = inlined_call_operand.vmem [shape: bf16[32,216], index: 3, kind: input, shape index: {}]
  %s4 = inlined_call_operand.vmem [shape: f32[32,1], index: 4, kind: input, shape index: {}]
  %s5 = inlined_call_operand.vmem [shape: bf16[2,10,4,4,256], index: 5, kind: input, shape index: {}, may-alias: {5,6,7}]
  %s6 = inlined_call_operand.vmem [shape: bf16[2,10,4,4,256], index: 6, kind: input, shape index: {}, may-alias: {5,6,7}]
  %s7 = inlined_call_operand.vmem [shape: bf16[2,10,4,4,256], index: 7, kind: input, shape index: {}, may-alias: {5,6,7}]
  %s8 = inlined_call_operand.vmem [shape: f32[2,4,32,128], index: 8, kind: output, shape index: {}]
  %s9 = sld [smem:[#allocation0]]
  $region65: #{resnet_encoder_half_forward.3} parent=0
    _
  %s11 = ssub.s32 1, %s9
  %s12 = scalar_select 0, %s11, %s9
  loop: start=0, step=1, limit=10
  $region2: #{resnet_encoder_half_forward.3} parent=0 // loop_pre_header
    _
  $region3: #{resnet_encoder_half_forward.3} parent=0 // loop_header
    %s14 = sphi 0, %s18
    %p15 = scmp.ge.s32.totalorder %s14, 10
    %s21 = sphi 0, %s33
    %s22 = sphi 0, %s29
    %s23 = sphi 0, %s21
    %s24 = sphi 0, %s22
    %s25 = sphi 0, %s23
    %s26 = sphi 0, %s24
    %s36 = sphi 0, %s38
    %s39 = sphi 0, %s36
    %s40 = sphi 0, %s39
    %s56 = sphi 0, %s40
    %s62 = sphi 0, %s64
    %s65 = sphi 0, %s62
    %s66 = sphi 0, %s65
    %s82 = sphi 0, %s66
    %s86 = sphi 0, %s86
    %s88 = sphi 0, %s86
    %s89 = sphi 0, %s88
    %s103 = sphi 0, %s89
    %s107 = sphi 0, %s107
    %s109 = sphi 0, %s107
    %s110 = sphi 0, %s109
    %s124 = sphi 0, %s110
    %s128 = sphi 0, %s128
    %s130 = sphi 0, %s128
    %s131 = sphi 0, %s130
    %s145 = sphi 0, %s131
    %s155 = sphi 0, %s157
    %s158 = sphi 0, %s155
    %s159 = sphi 0, %s158
    %s175 = sphi 0, %s159
    %s187 = sphi 0, %s189
    %s190 = sphi 0, %s187
    %s191 = sphi 0, %s190
    %s207 = sphi 0, %s191
    %s219 = sphi 0, %s221
    %s222 = sphi 0, %s219
    %s223 = sphi 0, %s222
    %s239 = sphi 0, %s223
    %s247 = sphi 0, %s249
    %s250 = sphi 0, %s247
    %s251 = sphi 0, %s250
    %s267 = sphi 0, %s251
  $region4: #{resnet_encoder_half_forward.3} parent=0 // loop_header_branch
    %17 = sbr.rel (%p15) target = $region8
  $region5: #{resnet_encoder_half_forward.3} parent=0 // loop_body
    %s19 = ssub.s32 %s14, 1
    %s20 = ssub.s32 %s14, 2
    %s27 = sadd.s32 1, %s22
    %p28 = scmp.ge.s32.totalorder %s27, 4
    %s29 = scalar_select %p28, 0, %s27
    %s30 = sadd.s32 1, %s21
    %s31 = scalar_select %p28, %s30, %s21
    %p32 = scmp.ge.s32.totalorder %s31, 2
    %s33 = scalar_select %p32, 0, %s31
    %s34 = ssub.s32 %s21, %s33
    %p35 = scmp.eq.s32.totalorder %s34, 0
    %s37 = sadd.s32 %s36, 1
    %s38 = scalar_select %p35, %s36, %s37
    %p41 = pneg %p35
    %p42 = scmp.eq.s32.totalorder %s14, 7
    %p43 = por %p41, %p42
    %p44 = scmp.ne.s32.totalorder %s36, %s39
    %p45 = scmp.eq.s32.totalorder %s14, 0
    %p46 = por %p44, %p45
    %p47 = scmp.ne.s32.totalorder %s36, %s39
    %p48 = scmp.eq.s32.totalorder %s19, 7
    %p49 = por %p47, %p48
    %p50 = scmp.ne.s32.totalorder %s39, %s40
    %p51 = scmp.eq.s32.totalorder %s19, 0
    %p52 = por %p50, %p51
    %p53 = scmp.ne.s32.totalorder %s39, %s40
    %p54 = scmp.eq.s32.totalorder %s20, 7
    %p55 = por %p53, %p54
    %p57 = scmp.ne.s32.totalorder %s40, %s56
    %p58 = scmp.eq.s32.totalorder %s20, 0
    %p59 = por %p57, %p58
    %s60 = ssub.s32 %s21, %s33
    %p61 = scmp.eq.s32.totalorder %s60, 0
    %s63 = sadd.s32 %s62, 1
    %s64 = scalar_select %p61, %s62, %s63
    %p67 = pneg %p61
    %p68 = scmp.eq.s32.totalorder %s14, 7
    %p69 = por %p67, %p68
    %p70 = scmp.ne.s32.totalorder %s62, %s65
    %p71 = scmp.eq.s32.totalorder %s14, 0
    %p72 = por %p70, %p71
    %p73 = scmp.ne.s32.totalorder %s62, %s65
    %p74 = scmp.eq.s32.totalorder %s19, 7
    %p75 = por %p73, %p74
    %p76 = scmp.ne.s32.totalorder %s65, %s66
    %p77 = scmp.eq.s32.totalorder %s19, 0
    %p78 = por %p76, %p77
    %p79 = scmp.ne.s32.totalorder %s65, %s66
    %p80 = scmp.eq.s32.totalorder %s20, 7
    %p81 = por %p79, %p80
    %p83 = scmp.ne.s32.totalorder %s66, %s82
    %p84 = scmp.eq.s32.totalorder %s20, 0
    %p85 = por %p83, %p84
    %s87 = sadd.s32 %s86, 1
    %p90 = scmp.eq.s32.totalorder %s14, 7
    %p91 = scmp.ne.s32.totalorder %s86, %s88
    %p92 = scmp.eq.s32.totalorder %s14, 0
    %p93 = por %p91, %p92
    %p94 = scmp.ne.s32.totalorder %s86, %s88
    %p95 = scmp.eq.s32.totalorder %s19, 7
    %p96 = por %p94, %p95
    %p97 = scmp.ne.s32.totalorder %s88, %s89
    %p98 = scmp.eq.s32.totalorder %s19, 0
    %p99 = por %p97, %p98
    %p100 = scmp.ne.s32.totalorder %s88, %s89
    %p101 = scmp.eq.s32.totalorder %s20, 7
    %p102 = por %p100, %p101
    %p104 = scmp.ne.s32.totalorder %s89, %s103
    %p105 = scmp.eq.s32.totalorder %s20, 0
    %p106 = por %p104, %p105
    %s108 = sadd.s32 %s107, 1
    %p111 = scmp.eq.s32.totalorder %s14, 7
    %p112 = scmp.ne.s32.totalorder %s107, %s109
    %p113 = scmp.eq.s32.totalorder %s14, 0
    %p114 = por %p112, %p113
    %p115 = scmp.ne.s32.totalorder %s107, %s109
    %p116 = scmp.eq.s32.totalorder %s19, 7
    %p117 = por %p115, %p116
    %p118 = scmp.ne.s32.totalorder %s109, %s110
    %p119 = scmp.eq.s32.totalorder %s19, 0
    %p120 = por %p118, %p119
    %p121 = scmp.ne.s32.totalorder %s109, %s110
    %p122 = scmp.eq.s32.totalorder %s20, 7
    %p123 = por %p121, %p122
    %p125 = scmp.ne.s32.totalorder %s110, %s124
    %p126 = scmp.eq.s32.totalorder %s20, 0
    %p127 = por %p125, %p126
    %s129 = sadd.s32 %s128, 1
    %p132 = scmp.eq.s32.totalorder %s14, 7
    %p133 = scmp.ne.s32.totalorder %s128, %s130
    %p134 = scmp.eq.s32.totalorder %s14, 0
    %p135 = por %p133, %p134
    %p136 = scmp.ne.s32.totalorder %s128, %s130
    %p137 = scmp.eq.s32.totalorder %s19, 7
    %p138 = por %p136, %p137
    %p139 = scmp.ne.s32.totalorder %s130, %s131
    %p140 = scmp.eq.s32.totalorder %s19, 0
    %p141 = por %p139, %p140
    %p142 = scmp.ne.s32.totalorder %s130, %s131
    %p143 = scmp.eq.s32.totalorder %s20, 7
    %p144 = por %p142, %p143
    %p146 = scmp.ne.s32.totalorder %s131, %s145
    %p147 = scmp.eq.s32.totalorder %s20, 0
    %p148 = por %p146, %p147
    %s149 = smul.u32 %s22, 2
    %s150 = smul.u32 %s29, 2
    %s151 = ssub.s32 %s21, %s33
    %s152 = ssub.s32 %s149, %s150
    %s153 = sor.u32 %s151, %s152
    %p154 = scmp.eq.s32.totalorder %s153, 0
    %s156 = sadd.s32 %s155, 1
    %s157 = scalar_select %p154, %s155, %s156
    %p160 = pneg %p154
    %p161 = scmp.eq.s32.totalorder %s14, 7
    %p162 = por %p160, %p161
    %p163 = scmp.ne.s32.totalorder %s155, %s158
    %p164 = scmp.eq.s32.totalorder %s14, 0
    %p165 = por %p163, %p164
    %p166 = scmp.ne.s32.totalorder %s155, %s158
    %p167 = scmp.eq.s32.totalorder %s19, 7
    %p168 = por %p166, %p167
    %p169 = scmp.ne.s32.totalorder %s158, %s159
    %p170 = scmp.eq.s32.totalorder %s19, 0
    %p171 = por %p169, %p170
    %p172 = scmp.ne.s32.totalorder %s158, %s159
    %p173 = scmp.eq.s32.totalorder %s20, 7
    %p174 = por %p172, %p173
    %p176 = scmp.ne.s32.totalorder %s159, %s175
    %p177 = scmp.eq.s32.totalorder %s20, 0
    %p178 = por %p176, %p177
    %s179 = smul.u32 %s22, 2
    %s180 = sadd.s32 %s179, 1
    %s181 = smul.u32 %s29, 2
    %s182 = sadd.s32 %s181, 1
    %s183 = ssub.s32 %s21, %s33
    %s184 = ssub.s32 %s180, %s182
    %s185 = sor.u32 %s183, %s184
    %p186 = scmp.eq.s32.totalorder %s185, 0
    %s188 = sadd.s32 %s187, 1
    %s189 = scalar_select %p186, %s187, %s188
    %p192 = pneg %p186
    %p193 = scmp.eq.s32.totalorder %s14, 7
    %p194 = por %p192, %p193
    %p195 = scmp.ne.s32.totalorder %s187, %s190
    %p196 = scmp.eq.s32.totalorder %s14, 0
    %p197 = por %p195, %p196
    %p198 = scmp.ne.s32.totalorder %s187, %s190
    %p199 = scmp.eq.s32.totalorder %s19, 7
    %p200 = por %p198, %p199
    %p201 = scmp.ne.s32.totalorder %s190, %s191
    %p202 = scmp.eq.s32.totalorder %s19, 0
    %p203 = por %p201, %p202
    %p204 = scmp.ne.s32.totalorder %s190, %s191
    %p205 = scmp.eq.s32.totalorder %s20, 7
    %p206 = por %p204, %p205
    %p208 = scmp.ne.s32.totalorder %s191, %s207
    %p209 = scmp.eq.s32.totalorder %s20, 0
    %p210 = por %p208, %p209
    %s211 = smul.u32 %s22, 2
    %s212 = sadd.s32 %s211, 2
    %s213 = smul.u32 %s29, 2
    %s214 = sadd.s32 %s213, 2
    %s215 = ssub.s32 %s21, %s33
    %s216 = ssub.s32 %s212, %s214
    %s217 = sor.u32 %s215, %s216
    %p218 = scmp.eq.s32.totalorder %s217, 0
    %s220 = sadd.s32 %s219, 1
    %s221 = scalar_select %p218, %s219, %s220
    %p224 = pneg %p218
    %p225 = scmp.eq.s32.totalorder %s14, 7
    %p226 = por %p224, %p225
    %p227 = scmp.ne.s32.totalorder %s219, %s222
    %p228 = scmp.eq.s32.totalorder %s14, 0
    %p229 = por %p227, %p228
    %p230 = scmp.ne.s32.totalorder %s219, %s222
    %p231 = scmp.eq.s32.totalorder %s19, 7
    %p232 = por %p230, %p231
    %p233 = scmp.ne.s32.totalorder %s222, %s223
    %p234 = scmp.eq.s32.totalorder %s19, 0
    %p235 = por %p233, %p234
    %p236 = scmp.ne.s32.totalorder %s222, %s223
    %p237 = scmp.eq.s32.totalorder %s20, 7
    %p238 = por %p236, %p237
    %p240 = scmp.ne.s32.totalorder %s223, %s239
    %p241 = scmp.eq.s32.totalorder %s20, 0
    %p242 = por %p240, %p241
    %s243 = ssub.s32 %s21, %s33
    %s244 = ssub.s32 %s22, %s29
    %s245 = sor.u32 %s243, %s244
    %p246 = scmp.eq.s32.totalorder %s245, 0
    %s248 = sadd.s32 %s247, 1
    %s249 = scalar_select %p246, %s247, %s248
    %p252 = pneg %p246
    %p253 = scmp.eq.s32.totalorder %s14, 7
    %p254 = por %p252, %p253
    %p255 = scmp.ne.s32.totalorder %s247, %s250
    %p256 = scmp.eq.s32.totalorder %s14, 0
    %p257 = por %p255, %p256
    %p258 = scmp.ne.s32.totalorder %s247, %s250
    %p259 = scmp.eq.s32.totalorder %s19, 7
    %p260 = por %p258, %p259
    %p261 = scmp.ne.s32.totalorder %s250, %s251
    %p262 = scmp.eq.s32.totalorder %s19, 0
    %p263 = por %p261, %p262
    %p264 = scmp.ne.s32.totalorder %s250, %s251
    %p265 = scmp.eq.s32.totalorder %s20, 7
    %p266 = por %p264, %p265
    %p268 = scmp.ne.s32.totalorder %s251, %s267
    %p269 = scmp.eq.s32.totalorder %s20, 0
    %p270 = por %p268, %p269
    %p271 = scmp.le.s32.totalorder 1, %s14
    %p272 = scmp.lt.s32.totalorder %s14, 9
    %p273 = pnand %p271, %p272
    %p274 = pneg %p273
    // Predicated region
    $region9: #{resnet_encoder_half_forward.3} parent=5 // pred_check
      _
    $region10: #{resnet_encoder_half_forward.3} parent=5 // pred_check_branch
      %276 = sbr.rel (%p273) target = $region12
    $region11: #{resnet_encoder_half_forward.3} parent=5 // pred_region
      %s277 = ssub.s32 %s14, 1
      // Predicated region
      $region13: #{resnet_encoder_half_forward.3} parent=11 // pred_check
        %p278 = pneg %p99
      $region14: #{resnet_encoder_half_forward.3} parent=11 // pred_check_branch
        %280 = sbr.rel (%p278) target = $region16
      $region15: #{resnet_encoder_half_forward.3} parent=11 // pred_region
        _
      $region16: #{resnet_encoder_half_forward.3} parent=11 // pred_fallthru
        _
      // Predicated region
      $region17: #{resnet_encoder_half_forward.3} parent=11 // pred_check
        %p281 = pneg %p120
      $region18: #{resnet_encoder_half_forward.3} parent=11 // pred_check_branch
        %283 = sbr.rel (%p281) target = $region20
      $region19: #{resnet_encoder_half_forward.3} parent=11 // pred_region
        _
      $region20: #{resnet_encoder_half_forward.3} parent=11 // pred_fallthru
        _
      // Predicated region
      $region21: #{resnet_encoder_half_forward.3} parent=11 // pred_check
        %p284 = pneg %p141
      $region22: #{resnet_encoder_half_forward.3} parent=11 // pred_check_branch
        %286 = sbr.rel (%p284) target = $region24
      $region23: #{resnet_encoder_half_forward.3} parent=11 // pred_region
        _
      $region24: #{resnet_encoder_half_forward.3} parent=11 // pred_fallthru
        _
    $region12: #{resnet_encoder_half_forward.3} parent=5 // pred_fallthru
      _
    %p287 = scmp.lt.s32.totalorder %s14, 8
    // Predicated region
    $region25: #{resnet_encoder_half_forward.3} parent=5 // pred_check
      %p288 = pneg %p287
    $region26: #{resnet_encoder_half_forward.3} parent=5 // pred_check_branch
      %290 = sbr.rel (%p288) target = $region28
    $region27: #{resnet_encoder_half_forward.3} parent=5 // pred_region
      // Predicated region
      $region29: #{resnet_encoder_half_forward.3} parent=27 // pred_check
        %p291 = pneg %p46
      $region30: #{resnet_encoder_half_forward.3} parent=27 // pred_check_branch
        %293 = sbr.rel (%p291) target = $region32
      $region31: #{resnet_encoder_half_forward.3} parent=27 // pred_region
        %p294 = scmp.lt.s32.totalorder %s21, 1
        %s295 = scalar_select %p294, %s21, 1
        %s296 = smul.addr %s295, 4
        %s297 = scalar_lea.vmem %s0, %s296
      $region32: #{resnet_encoder_half_forward.3} parent=27 // pred_fallthru
        _
      // Predicated region
      $region33: #{resnet_encoder_half_forward.3} parent=27 // pred_check
        %p298 = pneg %p72
      $region34: #{resnet_encoder_half_forward.3} parent=27 // pred_check_branch
        %300 = sbr.rel (%p298) target = $region36
      $region35: #{resnet_encoder_half_forward.3} parent=27 // pred_region
        %p301 = scmp.lt.s32.totalorder %s21, 1
        %s302 = scalar_select %p301, %s21, 1
        %s303 = smul.addr %s302, 4
        %s304 = scalar_lea.vmem %s1, %s303
      $region36: #{resnet_encoder_half_forward.3} parent=27 // pred_fallthru
        _
      // Predicated region
      $region37: #{resnet_encoder_half_forward.3} parent=27 // pred_check
        %p305 = pneg %p165
      $region38: #{resnet_encoder_half_forward.3} parent=27 // pred_check_branch
        %307 = sbr.rel (%p305) target = $region40
      $region39: #{resnet_encoder_half_forward.3} parent=27 // pred_region
        %s308 = smul.u32 %s22, 2
        %p309 = scmp.lt.s32.totalorder %s21, 1
        %s310 = scalar_select %p309, %s21, 1
        %p311 = scmp.lt.s32.totalorder %s308, 9
        %s312 = scalar_select %p311, %s308, 9
        %s313 = smul.addr %s312, 8
        %s314 = smul.addr %s310, 80
        %s315 = sadd.s32 %s313, %s314
        %s316 = smul.addr %s315, 2
        %s317 = scalar_lea.vmem %s5, %s316
        %s318 = smul.u32 %s22, 2
      $region40: #{resnet_encoder_half_forward.3} parent=27 // pred_fallthru
        _
      // Predicated region
      $region41: #{resnet_encoder_half_forward.3} parent=27 // pred_check
        %p319 = pneg %p197
      $region42: #{resnet_encoder_half_forward.3} parent=27 // pred_check_branch
        %321 = sbr.rel (%p319) target = $region44
      $region43: #{resnet_encoder_half_forward.3} parent=27 // pred_region
        %s322 = smul.u32 %s22, 2
        %s323 = sadd.s32 %s322, 1
        %p324 = scmp.lt.s32.totalorder %s21, 1
        %s325 = scalar_select %p324, %s21, 1
        %p326 = scmp.lt.s32.totalorder %s323, 9
        %s327 = scalar_select %p326, %s323, 9
        %s328 = smul.addr %s327, 8
        %s329 = smul.addr %s325, 80
        %s330 = sadd.s32 %s328, %s329
        %s331 = smul.addr %s330, 2
        %s332 = scalar_lea.vmem %s6, %s331
        %s333 = smul.u32 %s22, 2
        %s334 = sadd.s32 %s333, 1
      $region44: #{resnet_encoder_half_forward.3} parent=27 // pred_fallthru
        _
      // Predicated region
      $region45: #{resnet_encoder_half_forward.3} parent=27 // pred_check
        %p335 = pneg %p229
      $region46: #{resnet_encoder_half_forward.3} parent=27 // pred_check_branch
        %337 = sbr.rel (%p335) target = $region48
      $region47: #{resnet_encoder_half_forward.3} parent=27 // pred_region
        %s338 = smul.u32 %s22, 2
        %s339 = sadd.s32 %s338, 2
        %p340 = scmp.lt.s32.totalorder %s21, 1
        %s341 = scalar_select %p340, %s21, 1
        %p342 = scmp.lt.s32.totalorder %s339, 9
        %s343 = scalar_select %p342, %s339, 9
        %s344 = smul.addr %s343, 8
        %s345 = smul.addr %s341, 80
        %s346 = sadd.s32 %s344, %s345
        %s347 = smul.addr %s346, 2
        %s348 = scalar_lea.vmem %s7, %s347
        %s349 = smul.u32 %s22, 2
        %s350 = sadd.s32 %s349, 2
      $region48: #{resnet_encoder_half_forward.3} parent=27 // pred_fallthru
        _
    $region28: #{resnet_encoder_half_forward.3} parent=5 // pred_fallthru
      _
    %p351 = scmp.le.s32.totalorder 1, %s14
    %p352 = scmp.lt.s32.totalorder %s14, 9
    %p353 = pnand %p351, %p352
    %p354 = pneg %p353
    // Predicated region
    $region49: #{resnet_encoder_half_forward.3} parent=5 // pred_check
      _
    $region50: #{resnet_encoder_half_forward.3} parent=5 // pred_check_branch
      %356 = sbr.rel (%p353) target = $region52
    $region51: #{resnet_encoder_half_forward.3} parent=5 // pred_region
      %s357 = ssub.s32 %s14, 1
      %p358 = scmp.lt.s32.totalorder %s23, 1
      %s359 = scalar_select %p358, %s23, 1
      %s360 = smul.addr %s359, 4
      %s361 = scalar_lea.vmem %s0, %s360
      %p362 = pneg %p52
      %p363 = pneg %p49
      %p364 = scmp.lt.s32.totalorder %s23, 1
      %s365 = scalar_select %p364, %s23, 1
      %s366 = smul.addr %s365, 4
      %s367 = scalar_lea.vmem %s1, %s366
      %p368 = pneg %p78
      %p369 = pneg %p75
      %p370 = pneg %p99
      %p371 = pneg %p96
      %p372 = pneg %p120
      %p373 = pneg %p117
      %p374 = pneg %p141
      %p375 = pneg %p138
      %s376 = smul.u32 %s24, 2
      %p377 = scmp.lt.s32.totalorder %s23, 1
      %s378 = scalar_select %p377, %s23, 1
      %p379 = scmp.lt.s32.totalorder %s376, 9
      %s380 = scalar_select %p379, %s376, 9
      %s381 = smul.addr %s380, 8
      %s382 = smul.addr %s378, 80
      %s383 = sadd.s32 %s381, %s382
      %s384 = smul.addr %s383, 2
      %s385 = scalar_lea.vmem %s5, %s384
      %p386 = pneg %p171
      %p387 = pneg %p168
      %s388 = smul.u32 %s24, 2
      %s389 = sadd.s32 %s388, 1
      %p390 = scmp.lt.s32.totalorder %s23, 1
      %s391 = scalar_select %p390, %s23, 1
      %p392 = scmp.lt.s32.totalorder %s389, 9
      %s393 = scalar_select %p392, %s389, 9
      %s394 = smul.addr %s393, 8
      %s395 = smul.addr %s391, 80
      %s396 = sadd.s32 %s394, %s395
      %s397 = smul.addr %s396, 2
      %s398 = scalar_lea.vmem %s6, %s397
      %p399 = pneg %p203
      %p400 = pneg %p200
      %s401 = smul.u32 %s24, 2
      %s402 = sadd.s32 %s401, 2
      %p403 = scmp.lt.s32.totalorder %s23, 1
      %s404 = scalar_select %p403, %s23, 1
      %p405 = scmp.lt.s32.totalorder %s402, 9
      %s406 = scalar_select %p405, %s402, 9
      %s407 = smul.addr %s406, 8
      %s408 = smul.addr %s404, 80
      %s409 = sadd.s32 %s407, %s408
      %s410 = smul.addr %s409, 2
      %s411 = scalar_lea.vmem %s7, %s410
      %p412 = pneg %p235
      %p413 = pneg %p232
      %p414 = pneg %p263
      %p415 = pneg %p260
      %p416 = scmp.lt.s32.totalorder %s23, 1
      %s417 = scalar_select %p416, %s23, 1
      %p418 = scmp.lt.s32.totalorder %s24, 3
      %s419 = scalar_select %p418, %s24, 3
      %s420 = smul.addr %s419, 4
      %s421 = smul.addr %s417, 16
      %s422 = sadd.s32 %s420, %s421
      %s423 = smul.addr %s422, 8
      %s424 = scalar_lea.vmem %s8, %s423
      %p425 = scmp.lt.s32.totalorder %s23, 1
      %s426 = scalar_select %p425, %s23, 1
      %s427 = smul.addr %s426, 4
      %s428 = scalar_lea.vmem %s0, %s427
      %p429 = scmp.lt.s32.totalorder %s23, 1
      %s430 = scalar_select %p429, %s23, 1
      %s431 = smul.addr %s430, 4
      %s432 = scalar_lea.vmem %s1, %s431
      %s433 = smul.u32 %s24, 2
      %p434 = scmp.lt.s32.totalorder %s23, 1
      %s435 = scalar_select %p434, %s23, 1
      %p436 = scmp.lt.s32.totalorder %s433, 9
      %s437 = scalar_select %p436, %s433, 9
      %s438 = smul.addr %s437, 8
      %s439 = smul.addr %s435, 80
      %s440 = sadd.s32 %s438, %s439
      %s441 = smul.addr %s440, 2
      %s442 = scalar_lea.vmem %s5, %s441
      %s443 = smul.u32 %s24, 2
      %s444 = smul.u32 %s24, 2
      %s445 = sadd.s32 %s444, 1
      %p446 = scmp.lt.s32.totalorder %s23, 1
      %s447 = scalar_select %p446, %s23, 1
      %p448 = scmp.lt.s32.totalorder %s445, 9
      %s449 = scalar_select %p448, %s445, 9
      %s450 = smul.addr %s449, 8
      %s451 = smul.addr %s447, 80
      %s452 = sadd.s32 %s450, %s451
      %s453 = smul.addr %s452, 2
      %s454 = scalar_lea.vmem %s6, %s453
      %s455 = smul.u32 %s24, 2
      %s456 = sadd.s32 %s455, 1
      %s457 = smul.u32 %s24, 2
      %s458 = sadd.s32 %s457, 2
      %p459 = scmp.lt.s32.totalorder %s23, 1
      %s460 = scalar_select %p459, %s23, 1
      %p461 = scmp.lt.s32.totalorder %s458, 9
      %s462 = scalar_select %p461, %s458, 9
      %s463 = smul.addr %s462, 8
      %s464 = smul.addr %s460, 80
      %s465 = sadd.s32 %s463, %s464
      %s466 = smul.addr %s465, 2
      %s467 = scalar_lea.vmem %s7, %s466
      %s468 = smul.u32 %s24, 2
      %s469 = sadd.s32 %s468, 2
      %p470 = scmp.lt.s32.totalorder %s23, 1
      %s471 = scalar_select %p470, %s23, 1
      %p472 = scmp.lt.s32.totalorder %s24, 3
      %s473 = scalar_select %p472, %s24, 3
      %s474 = smul.addr %s473, 4
      %s475 = smul.addr %s471, 16
      %s476 = sadd.s32 %s474, %s475
      %s477 = smul.addr %s476, 8
      %s478 = scalar_lea.vmem %s8, %s477
      %v480 = vld [vmem:[%s428] sm:$0xf]
      %v481 = vld [vmem:[%s432] sm:$0xf]
      %s482 = smul.u32 %s24, 2
      %p483 = scmp.ge.s32.totalorder %s482, 1
      %p484 = scmp.le.s32.totalorder %s482, 8
      %p485 = pnand %p483, %p484
      %p486 = pneg %p485
      %s487 = scalar_select %p486, 1.0, 0.0
      %v488 = vld [vmem:[%s442] sm:$0x3]
      %v489 = vld [vmem:[%s2] sm:$0x1]
      %v490 = vunpack.c.l.bf16 %v488
      %492 = vset.pattern.permute.xlu0 0
      %493 = vperm.xlu0 %492, %v480
      %v494 = vpop.permute.xlu0 %493
      %v496 = vsub.f32 %v490, %v494
      %498 = vset.pattern.permute.xlu0 0
      %499 = vperm.xlu0 %498, %v481
      %v500 = vpop.permute.xlu0 %499
      %v502 = vmul.f32 %v496, %v500
      %v503 = vmax.f32 %v502, 0.0
      %v504 = vstv %s487
      %v505 = vmul.f32 %v489, %v504
      %v506 = vlaneseq
      %v507 = vshrl.u32 %v506, 7
      %v508 = vsub.s32 0, %v507
      %v509 = vrot.slane %v505, %v508
      %v510 = vmul.f32 %v503, %v509
      %v511 = vpack.c.bf16 %v510, %v510
      %512 = vst [vmem:[#allocation2] sm:$0x3] %v511
      %v514 = vcombine.low %v488, %v488
      %v516 = vunpack.c.l.s4 1983009808
      %v517 = vunpack.c.0.s8 %v516
      %v518 = vlaneseq
      %v519 = vshrl.u32 %v518, 7
      %v520 = vsub.s32 %v517, %v519
      %v521 = vrot.slane %v514, %v520
      %523 = vst [vmem:[#allocation2 + $0x34] sm:$0xc] %v521
      %s524 = scalar_lea.vmem %s442, 4
      %v525 = vld [vmem:[%s524] sm:$0x3]
      %v526 = vld [vmem:[%s2 + $0x1] sm:$0x1]
      %v527 = vunpack.c.l.bf16 %v525
      %v528 = vsub.f32 %v527, %v494
      %v529 = vmul.f32 %v528, %v500
      %v530 = vmax.f32 %v529, 0.0
      %v531 = vmul.f32 %v526, %v504
      %v532 = vlaneseq
      %v533 = vshrl.u32 %v532, 7
      %v534 = vsub.s32 0, %v533
      %v535 = vrot.slane %v531, %v534
      %v536 = vmul.f32 %v530, %v535
      %v537 = vpack.c.bf16 %v536, %v536
      %v539 = vunpack.c.l.b16 %v537
      %v540 = vpack.c.b16 %v539, %v539
      %v541 = vrot.slane %v540, 6
      %543 = vst [vmem:[#allocation2] sm:$0xc] %v541
      %544 = vst [vmem:[#allocation2 + $0x38] sm:$0x3] %v525
      %v545 = vld [vmem:[%s442] sm:$0xf]
      %v546 = vld [vmem:[%s2 + $0x2] sm:$0x1]
      %v547 = vunpack.c.l.bf16 %v545
      %v548 = vsub.f32 %v547, %v494
      %v549 = vmul.f32 %v548, %v500
      %v550 = vmax.f32 %v549, 0.0
      %v551 = vmul.f32 %v546, %v504
      %v552 = vlaneseq
      %v553 = vshrl.u32 %v552, 7
      %v554 = vsub.s32 0, %v553
      %v555 = vrot.slane %v551, %v554
      %557 = vrot.lane.b32.xlu0 %v555, 1
      %v558 = vpop.permute.xlu0 %557
      %v559 = vrot.slane %v558, 4
      %vm560 = vcmask 7168
      %v561 = vsel %vm560, %v559, %v558
      %v563 = vmul.f32 %v550, %v561
      %v565 = vcombine.high %v563, %v563
      %v567 = vpack.c.bf16 %v563, %v563
      %v568 = vpack.c.bf16 %v565, %v565
      %v571 = vunpack.c.l.b16 %v567
      %v572 = vunpack.c.l.b16 %v568
      %v573 = vpack.c.b16 %v572, %v571
      %574 = vrot.lane.b32.xlu0 %v573, 127
      %v575 = vpop.permute.xlu0 %574
      %v576 = vrot.slane %v575, 4
      %vm577 = vcmask 1039360
      %v578 = vsel %vm577, %v575, %v576
      %580 = vst [vmem:[#allocation2 + $0x4] sm:$0x3] %v578
      %v582 = vcombine.low %v545, %v545
      %v584 = vunpack.c.l.s4 1983009808
      %v585 = vunpack.c.0.s8 %v584
      %v586 = vlaneseq
      %v587 = vshrl.u32 %v586, 7
      %v588 = vsub.s32 %v585, %v587
      %v589 = vrot.slane %v582, %v588
      %590 = vrot.lane.b32.xlu0 %v589, 127
      %v591 = vpop.permute.xlu0 %590
      %v592 = vrot.slane %v591, 4
      %v593 = vsel %vm577, %v591, %v592
      %595 = vst [vmem:[#allocation2 + $0x38] sm:$0xc] %v593
      %s596 = scalar_lea.vmem %s442, 8
      %v597 = vld [vmem:[%s596] sm:$0x3]
      %v598 = vld [vmem:[%s2 + $0x3] sm:$0x1]
      %v599 = vunpack.c.l.bf16 %v597
      %v600 = vsub.f32 %v599, %v494
      %v601 = vmul.f32 %v600, %v500
      %v602 = vmax.f32 %v601, 0.0
      %v603 = vmul.f32 %v598, %v504
      %v604 = vlaneseq
      %v605 = vshrl.u32 %v604, 7
      %v606 = vsub.s32 0, %v605
      %v607 = vrot.slane %v603, %v606
      %v608 = vmul.f32 %v602, %v607
      %v609 = vpack.c.bf16 %v608, %v608
      %v611 = vunpack.c.l.b16 %v609
      %v612 = vpack.c.b16 %v611, %v611
      %v613 = vrot.slane %v612, 6
      %615 = vst [vmem:[#allocation2 + $0x4] sm:$0xc] %v613
      %616 = vst [vmem:[#allocation2 + $0x3c] sm:$0x3] %v597
      %s617 = scalar_lea.vmem %s442, 12
      %v618 = vld [vmem:[%s617] sm:$0x3]
      %v619 = vld [vmem:[%s2 + $0x4] sm:$0x1]
      %v620 = vunpack.c.l.bf16 %v618
      %v621 = vsub.f32 %v620, %v494
      %v622 = vmul.f32 %v621, %v500
      %v623 = vmax.f32 %v622, 0.0
      %v624 = vmul.f32 %v619, %v504
      %v625 = vlaneseq
      %v626 = vshrl.u32 %v625, 7
      %v627 = vsub.s32 0, %v626
      %v628 = vrot.slane %v624, %v627
      %v629 = vmul.f32 %v623, %v628
      %v630 = vpack.c.bf16 %v629, %v629
      %631 = vst [vmem:[#allocation2 + $0x8] sm:$0x3] %v630
      %v633 = vcombine.low %v618, %v618
      %v635 = vunpack.c.l.s4 1983009808
      %v636 = vunpack.c.0.s8 %v635
      %v637 = vlaneseq
      %v638 = vshrl.u32 %v637, 7
      %v639 = vsub.s32 %v636, %v638
      %v640 = vrot.slane %v633, %v639
      %642 = vst [vmem:[#allocation2 + $0x3c] sm:$0xc] %v640
      %v643 = vld [vmem:[%s596] sm:$0xf]
      %v644 = vld [vmem:[%s2 + $0x5] sm:$0x1]
      %v645 = vunpack.c.l.bf16 %v643
      %v646 = vsub.f32 %v645, %v494
      %v647 = vmul.f32 %v646, %v500
      %v648 = vmax.f32 %v647, 0.0
      %v649 = vmul.f32 %v644, %v504
      %v650 = vlaneseq
      %v651 = vshrl.u32 %v650, 7
      %v652 = vsub.s32 0, %v651
      %v653 = vrot.slane %v649, %v652
      %655 = vrot.lane.b32.xlu0 %v653, 1
      %v656 = vpop.permute.xlu0 %655
      %v657 = vrot.slane %v656, 4
      %v658 = vsel %vm560, %v657, %v656
      %v660 = vmul.f32 %v648, %v658
      %v662 = vcombine.high %v660, %v660
      %v664 = vpack.c.bf16 %v660, %v660
      %v665 = vpack.c.bf16 %v662, %v662
      %v668 = vunpack.c.l.b16 %v664
      %v669 = vunpack.c.l.b16 %v665
      %v670 = vpack.c.b16 %v669, %v668
      %v671 = vrot.slane %v670, 6
      %672 = vrot.lane.b32.xlu0 %v671, 127
      %v673 = vpop.permute.xlu0 %672
      %v674 = vrot.slane %v673, 4
      %v675 = vsel %vm577, %v673, %v674
      %677 = vst [vmem:[#allocation2 + $0x8] sm:$0xc] %v675
      %v680 = vunpack.c.l.s4 1983009808
      %v681 = vunpack.c.0.s8 %v680
      %v682 = vlaneseq
      %v683 = vshrl.u32 %v682, 7
      %v684 = vsub.s32 %v681, %v683
      %v685 = vrot.slane %v643, %v684
      %686 = vrot.lane.b32.xlu0 %v685, 127
      %v687 = vpop.permute.xlu0 %686
      %v688 = vrot.slane %v687, 4
      %v689 = vsel %vm577, %v687, %v688
      %691 = vst [vmem:[#allocation2 + $0x40] sm:$0x3] %v689
      %v692 = vld [vmem:[%s442] sm:$0xf]
      %v693 = vld [vmem:[%s2 + $0x6] sm:$0x1]
      %v694 = vunpack.c.l.bf16 %v692
      %v695 = vsub.f32 %v694, %v494
      %v696 = vmul.f32 %v695, %v500
      %v697 = vmax.f32 %v696, 0.0
      %v698 = vmul.f32 %v693, %v504
      %v699 = vlaneseq
      %v700 = vshrl.u32 %v699, 7
      %v701 = vsub.s32 0, %v700
      %v702 = vrot.slane %v698, %v701
      %704 = vrot.lane.b32.xlu0 %v702, 5
      %v705 = vpop.permute.xlu0 %704
      %v706 = vrot.slane %v705, 4
      %vm707 = vcmask 39936
      %v708 = vsel %vm707, %v706, %v705
      %v710 = vmul.f32 %v697, %v708
      %v712 = vcombine.high %v710, %v710
      %v714 = vpack.c.bf16 %v710, %v710
      %v715 = vpack.c.bf16 %v712, %v712
      %v718 = vunpack.c.l.b16 %v714
      %v719 = vunpack.c.l.b16 %v715
      %v720 = vpack.c.b16 %v719, %v718
      %721 = vrot.lane.b32.xlu0 %v720, 123
      %v722 = vpop.permute.xlu0 %721
      %v723 = vrot.slane %v722, 4
      %vm724 = vcmask 1006592
      %v725 = vsel %vm724, %v722, %v723
      %727 = vst [vmem:[#allocation2 + $0xc] sm:$0x3] %v725
      %v729 = vcombine.low %v692, %v692
      %v731 = vunpack.c.l.s4 1983009808
      %v732 = vunpack.c.0.s8 %v731
      %v733 = vlaneseq
      %v734 = vshrl.u32 %v733, 7
      %v735 = vsub.s32 %v732, %v734
      %v736 = vrot.slane %v729, %v735
      %737 = vrot.lane.b32.xlu0 %v736, 123
      %v738 = vpop.permute.xlu0 %737
      %v739 = vrot.slane %v738, 4
      %v740 = vsel %vm724, %v738, %v739
      %742 = vst [vmem:[#allocation2 + $0x40] sm:$0xc] %v740
      %v743 = vld [vmem:[%s524] sm:$0xf]
      %v744 = vld [vmem:[%s2 + $0x7] sm:$0x1]
      %v745 = vunpack.c.l.bf16 %v743
      %v746 = vsub.f32 %v745, %v494
      %v747 = vmul.f32 %v746, %v500
      %v748 = vmax.f32 %v747, 0.0
      %v749 = vmul.f32 %v744, %v504
      %v750 = vlaneseq
      %v751 = vshrl.u32 %v750, 7
      %v752 = vsub.s32 0, %v751
      %v753 = vrot.slane %v749, %v752
      %755 = vrot.lane.b32.xlu0 %v753, 5
      %v756 = vpop.permute.xlu0 %755
      %v757 = vrot.slane %v756, 4
      %v758 = vsel %vm707, %v757, %v756
      %v760 = vmul.f32 %v748, %v758
      %v762 = vcombine.high %v760, %v760
      %v764 = vpack.c.bf16 %v760, %v760
      %v765 = vpack.c.bf16 %v762, %v762
      %v768 = vunpack.c.l.b16 %v764
      %v769 = vunpack.c.l.b16 %v765
      %v770 = vpack.c.b16 %v769, %v768
      %v771 = vrot.slane %v770, 6
      %772 = vrot.lane.b32.xlu0 %v771, 123
      %v773 = vpop.permute.xlu0 %772
      %v774 = vrot.slane %v773, 4
      %v775 = vsel %vm724, %v773, %v774
      %777 = vst [vmem:[#allocation2 + $0xc] sm:$0xc] %v775
      %v780 = vunpack.c.l.s4 1983009808
      %v781 = vunpack.c.0.s8 %v780
      %v782 = vlaneseq
      %v783 = vshrl.u32 %v782, 7
      %v784 = vsub.s32 %v781, %v783
      %v785 = vrot.slane %v743, %v784
      %786 = vrot.lane.b32.xlu0 %v785, 123
      %v787 = vpop.permute.xlu0 %786
      %v788 = vrot.slane %v787, 4
      %v789 = vsel %vm724, %v787, %v788
      %791 = vst [vmem:[#allocation2 + $0x44] sm:$0x3] %v789
      %v792 = vld [vmem:[%s442] sm:$0xf]
      %v793 = vld [vmem:[%s2 + $0x8] sm:$0x1]
      %v794 = vunpack.c.l.bf16 %v792
      %v795 = vsub.f32 %v794, %v494
      %v796 = vmul.f32 %v795, %v500
      %v797 = vmax.f32 %v796, 0.0
      %v798 = vmul.f32 %v793, %v504
      %v799 = vlaneseq
      %v800 = vshrl.u32 %v799, 7
      %v801 = vsub.s32 0, %v800
      %v802 = vrot.slane %v798, %v801
      %804 = vrot.lane.b32.xlu0 %v802, 6
      %v805 = vpop.permute.xlu0 %804
      %v806 = vrot.slane %v805, 4
      %vm807 = vcmask 48128
      %v808 = vsel %vm807, %v806, %v805
      %v810 = vmul.f32 %v797, %v808
      %v812 = vcombine.high %v810, %v810
      %v814 = vpack.c.bf16 %v810, %v810
      %v815 = vpack.c.bf16 %v812, %v812
      %v818 = vunpack.c.l.b16 %v814
      %v819 = vunpack.c.l.b16 %v815
      %v820 = vpack.c.b16 %v819, %v818
      %821 = vrot.lane.b32.xlu0 %v820, 122
      %v822 = vpop.permute.xlu0 %821
      %v823 = vrot.slane %v822, 4
      %vm824 = vcmask 998400
      %v825 = vsel %vm824, %v822, %v823
      %827 = vst [vmem:[#allocation2 + $0x10] sm:$0x3] %v825
      %v829 = vcombine.low %v792, %v792
      %v831 = vunpack.c.l.s4 1983009808
      %v832 = vunpack.c.0.s8 %v831
      %v833 = vlaneseq
      %v834 = vshrl.u32 %v833, 7
      %v835 = vsub.s32 %v832, %v834
      %v836 = vrot.slane %v829, %v835
      %837 = vrot.lane.b32.xlu0 %v836, 122
      %v838 = vpop.permute.xlu0 %837
      %v839 = vrot.slane %v838, 4
      %v840 = vsel %vm824, %v838, %v839
      %842 = vst [vmem:[#allocation2 + $0x44] sm:$0xc] %v840
      %s843 = sadd.s32 %s482, 1
      %p844 = scmp.ge.s32.totalorder %s843, 1
      %p845 = scmp.le.s32.totalorder %s843, 8
      %p846 = pnand %p844, %p845
      %p847 = pneg %p846
      %s848 = scalar_select %p847, 1.0, 0.0
      %v849 = vld [vmem:[%s454] sm:$0x3]
      %v850 = vld [vmem:[%s2] sm:$0x1]
      %v851 = vunpack.c.l.bf16 %v849
      %v852 = vsub.f32 %v851, %v494
      %v853 = vmul.f32 %v852, %v500
      %v854 = vmax.f32 %v853, 0.0
      %v855 = vstv %s848
      %v856 = vmul.f32 %v850, %v855
      %v857 = vlaneseq
      %v858 = vshrl.u32 %v857, 7
      %v859 = vsub.s32 0, %v858
      %v860 = vrot.slane %v856, %v859
      %v861 = vmul.f32 %v854, %v860
      %v862 = vpack.c.bf16 %v861, %v861
      %v864 = vunpack.c.l.b16 %v862
      %v865 = vpack.c.b16 %v864, %v864
      %v866 = vrot.slane %v865, 6
      %868 = vst [vmem:[#allocation2 + $0x10] sm:$0xc] %v866
      %869 = vst [vmem:[#allocation2 + $0x48] sm:$0x3] %v849
      %s870 = scalar_lea.vmem %s454, 4
      %v871 = vld [vmem:[%s870] sm:$0x3]
      %v872 = vld [vmem:[%s2 + $0x1] sm:$0x1]
      %v873 = vunpack.c.l.bf16 %v871
      %v874 = vsub.f32 %v873, %v494
      %v875 = vmul.f32 %v874, %v500
      %v876 = vmax.f32 %v875, 0.0
      %v877 = vmul.f32 %v872, %v855
      %v878 = vlaneseq
      %v879 = vshrl.u32 %v878, 7
      %v880 = vsub.s32 0, %v879
      %v881 = vrot.slane %v877, %v880
      %v882 = vmul.f32 %v876, %v881
      %v883 = vpack.c.bf16 %v882, %v882
      %884 = vst [vmem:[#allocation2 + $0x14] sm:$0x3] %v883
      %v886 = vcombine.low %v871, %v871
      %v888 = vunpack.c.l.s4 1983009808
      %v889 = vunpack.c.0.s8 %v888
      %v890 = vlaneseq
      %v891 = vshrl.u32 %v890, 7
      %v892 = vsub.s32 %v889, %v891
      %v893 = vrot.slane %v886, %v892
      %895 = vst [vmem:[#allocation2 + $0x48] sm:$0xc] %v893
      %v896 = vld [vmem:[%s454] sm:$0xf]
      %v897 = vld [vmem:[%s2 + $0x2] sm:$0x1]
      %v898 = vunpack.c.l.bf16 %v896
      %v899 = vsub.f32 %v898, %v494
      %v900 = vmul.f32 %v899, %v500
      %v901 = vmax.f32 %v900, 0.0
      %v902 = vmul.f32 %v897, %v855
      %v903 = vlaneseq
      %v904 = vshrl.u32 %v903, 7
      %v905 = vsub.s32 0, %v904
      %v906 = vrot.slane %v902, %v905
      %908 = vrot.lane.b32.xlu0 %v906, 1
      %v909 = vpop.permute.xlu0 %908
      %v910 = vrot.slane %v909, 4
      %v911 = vsel %vm560, %v910, %v909
      %v913 = vmul.f32 %v901, %v911
      %v915 = vcombine.high %v913, %v913
      %v917 = vpack.c.bf16 %v913, %v913
      %v918 = vpack.c.bf16 %v915, %v915
      %v921 = vunpack.c.l.b16 %v917
      %v922 = vunpack.c.l.b16 %v918
      %v923 = vpack.c.b16 %v922, %v921
      %v924 = vrot.slane %v923, 6
      %925 = vrot.lane.b32.xlu0 %v924, 127
      %v926 = vpop.permute.xlu0 %925
      %v927 = vrot.slane %v926, 4
      %v928 = vsel %vm577, %v926, %v927
      %930 = vst [vmem:[#allocation2 + $0x14] sm:$0xc] %v928
      %v933 = vunpack.c.l.s4 1983009808
      %v934 = vunpack.c.0.s8 %v933
      %v935 = vlaneseq
      %v936 = vshrl.u32 %v935, 7
      %v937 = vsub.s32 %v934, %v936
      %v938 = vrot.slane %v896, %v937
      %939 = vrot.lane.b32.xlu0 %v938, 127
      %v940 = vpop.permute.xlu0 %939
      %v941 = vrot.slane %v940, 4
      %v942 = vsel %vm577, %v940, %v941
      %944 = vst [vmem:[#allocation2 + $0x4c] sm:$0x3] %v942
      %s945 = scalar_lea.vmem %s454, 8
      %v946 = vld [vmem:[%s945] sm:$0x3]
      %v947 = vld [vmem:[%s2 + $0x3] sm:$0x1]
      %v948 = vunpack.c.l.bf16 %v946
      %v949 = vsub.f32 %v948, %v494
      %v950 = vmul.f32 %v949, %v500
      %v951 = vmax.f32 %v950, 0.0
      %v952 = vmul.f32 %v947, %v855
      %v953 = vlaneseq
      %v954 = vshrl.u32 %v953, 7
      %v955 = vsub.s32 0, %v954
      %v956 = vrot.slane %v952, %v955
      %v957 = vmul.f32 %v951, %v956
      %v958 = vpack.c.bf16 %v957, %v957
      %959 = vst [vmem:[#allocation2 + $0x18] sm:$0x3] %v958
      %v961 = vcombine.low %v946, %v946
      %v963 = vunpack.c.l.s4 1983009808
      %v964 = vunpack.c.0.s8 %v963
      %v965 = vlaneseq
      %v966 = vshrl.u32 %v965, 7
      %v967 = vsub.s32 %v964, %v966
      %v968 = vrot.slane %v961, %v967
      %970 = vst [vmem:[#allocation2 + $0x4c] sm:$0xc] %v968
      %s971 = scalar_lea.vmem %s454, 12
      %v972 = vld [vmem:[%s971] sm:$0x3]
      %v973 = vld [vmem:[%s2 + $0x4] sm:$0x1]
      %v974 = vunpack.c.l.bf16 %v972
      %v975 = vsub.f32 %v974, %v494
      %v976 = vmul.f32 %v975, %v500
      %v977 = vmax.f32 %v976, 0.0
      %v978 = vmul.f32 %v973, %v855
      %v979 = vlaneseq
      %v980 = vshrl.u32 %v979, 7
      %v981 = vsub.s32 0, %v980
      %v982 = vrot.slane %v978, %v981
      %v983 = vmul.f32 %v977, %v982
      %v984 = vpack.c.bf16 %v983, %v983
      %v986 = vunpack.c.l.b16 %v984
      %v987 = vpack.c.b16 %v986, %v986
      %v988 = vrot.slane %v987, 6
      %990 = vst [vmem:[#allocation2 + $0x18] sm:$0xc] %v988
      %991 = vst [vmem:[#allocation2 + $0x50] sm:$0x3] %v972
      %v992 = vld [vmem:[%s945] sm:$0xf]
      %v993 = vld [vmem:[%s2 + $0x5] sm:$0x1]
      %v994 = vunpack.c.l.bf16 %v992
      %v995 = vsub.f32 %v994, %v494
      %v996 = vmul.f32 %v995, %v500
      %v997 = vmax.f32 %v996, 0.0
      %v998 = vmul.f32 %v993, %v855
      %v999 = vlaneseq
      %v1000 = vshrl.u32 %v999, 7
      %v1001 = vsub.s32 0, %v1000
      %v1002 = vrot.slane %v998, %v1001
      %1004 = vrot.lane.b32.xlu0 %v1002, 1
      %v1005 = vpop.permute.xlu0 %1004
      %v1006 = vrot.slane %v1005, 4
      %v1007 = vsel %vm560, %v1006, %v1005
      %v1009 = vmul.f32 %v997, %v1007
      %v1011 = vcombine.high %v1009, %v1009
      %v1013 = vpack.c.bf16 %v1009, %v1009
      %v1014 = vpack.c.bf16 %v1011, %v1011
      %v1017 = vunpack.c.l.b16 %v1013
      %v1018 = vunpack.c.l.b16 %v1014
      %v1019 = vpack.c.b16 %v1018, %v1017
      %1020 = vrot.lane.b32.xlu0 %v1019, 127
      %v1021 = vpop.permute.xlu0 %1020
      %v1022 = vrot.slane %v1021, 4
      %v1023 = vsel %vm577, %v1021, %v1022
      %1025 = vst [vmem:[#allocation2 + $0x1c] sm:$0x3] %v1023
      %v1027 = vcombine.low %v992, %v992
      %v1029 = vunpack.c.l.s4 1983009808
      %v1030 = vunpack.c.0.s8 %v1029
      %v1031 = vlaneseq
      %v1032 = vshrl.u32 %v1031, 7
      %v1033 = vsub.s32 %v1030, %v1032
      %v1034 = vrot.slane %v1027, %v1033
      %1035 = vrot.lane.b32.xlu0 %v1034, 127
      %v1036 = vpop.permute.xlu0 %1035
      %v1037 = vrot.slane %v1036, 4
      %v1038 = vsel %vm577, %v1036, %v1037
      %1040 = vst [vmem:[#allocation2 + $0x50] sm:$0xc] %v1038
      %v1041 = vld [vmem:[%s454] sm:$0xf]
      %v1042 = vld [vmem:[%s2 + $0x6] sm:$0x1]
      %v1043 = vunpack.c.l.bf16 %v1041
      %v1044 = vsub.f32 %v1043, %v494
      %v1045 = vmul.f32 %v1044, %v500
      %v1046 = vmax.f32 %v1045, 0.0
      %v1047 = vmul.f32 %v1042, %v855
      %v1048 = vlaneseq
      %v1049 = vshrl.u32 %v1048, 7
      %v1050 = vsub.s32 0, %v1049
      %v1051 = vrot.slane %v1047, %v1050
      %1053 = vrot.lane.b32.xlu0 %v1051, 5
      %v1054 = vpop.permute.xlu0 %1053
      %v1055 = vrot.slane %v1054, 4
      %v1056 = vsel %vm707, %v1055, %v1054
      %v1058 = vmul.f32 %v1046, %v1056
      %v1060 = vcombine.high %v1058, %v1058
      %v1062 = vpack.c.bf16 %v1058, %v1058
      %v1063 = vpack.c.bf16 %v1060, %v1060
      %v1066 = vunpack.c.l.b16 %v1062
      %v1067 = vunpack.c.l.b16 %v1063
      %v1068 = vpack.c.b16 %v1067, %v1066
      %v1069 = vrot.slane %v1068, 6
      %1070 = vrot.lane.b32.xlu0 %v1069, 123
      %v1071 = vpop.permute.xlu0 %1070
      %v1072 = vrot.slane %v1071, 4
      %v1073 = vsel %vm724, %v1071, %v1072
      %1075 = vst [vmem:[#allocation2 + $0x1c] sm:$0xc] %v1073
      %v1078 = vunpack.c.l.s4 1983009808
      %v1079 = vunpack.c.0.s8 %v1078
      %v1080 = vlaneseq
      %v1081 = vshrl.u32 %v1080, 7
      %v1082 = vsub.s32 %v1079, %v1081
      %v1083 = vrot.slane %v1041, %v1082
      %1084 = vrot.lane.b32.xlu0 %v1083, 123
      %v1085 = vpop.permute.xlu0 %1084
      %v1086 = vrot.slane %v1085, 4
      %v1087 = vsel %vm724, %v1085, %v1086
      %1089 = vst [vmem:[#allocation2 + $0x54] sm:$0x3] %v1087
      %v1090 = vld [vmem:[%s870] sm:$0xf]
      %v1091 = vld [vmem:[%s2 + $0x7] sm:$0x1]
      %v1092 = vunpack.c.l.bf16 %v1090
      %v1093 = vsub.f32 %v1092, %v494
      %v1094 = vmul.f32 %v1093, %v500
      %v1095 = vmax.f32 %v1094, 0.0
      %v1096 = vmul.f32 %v1091, %v855
      %v1097 = vlaneseq
      %v1098 = vshrl.u32 %v1097, 7
      %v1099 = vsub.s32 0, %v1098
      %v1100 = vrot.slane %v1096, %v1099
      %1102 = vrot.lane.b32.xlu0 %v1100, 5
      %v1103 = vpop.permute.xlu0 %1102
      %v1104 = vrot.slane %v1103, 4
      %v1105 = vsel %vm707, %v1104, %v1103
      %v1107 = vmul.f32 %v1095, %v1105
      %v1109 = vcombine.high %v1107, %v1107
      %v1111 = vpack.c.bf16 %v1107, %v1107
      %v1112 = vpack.c.bf16 %v1109, %v1109
      %v1115 = vunpack.c.l.b16 %v1111
      %v1116 = vunpack.c.l.b16 %v1112
      %v1117 = vpack.c.b16 %v1116, %v1115
      %1118 = vrot.lane.b32.xlu0 %v1117, 123
      %v1119 = vpop.permute.xlu0 %1118
      %v1120 = vrot.slane %v1119, 4
      %v1121 = vsel %vm724, %v1119, %v1120
      %1123 = vst [vmem:[#allocation2 + $0x20] sm:$0x3] %v1121
      %v1125 = vcombine.low %v1090, %v1090
      %v1127 = vunpack.c.l.s4 1983009808
      %v1128 = vunpack.c.0.s8 %v1127
      %v1129 = vlaneseq
      %v1130 = vshrl.u32 %v1129, 7
      %v1131 = vsub.s32 %v1128, %v1130
      %v1132 = vrot.slane %v1125, %v1131
      %1133 = vrot.lane.b32.xlu0 %v1132, 123
      %v1134 = vpop.permute.xlu0 %1133
      %v1135 = vrot.slane %v1134, 4
      %v1136 = vsel %vm724, %v1134, %v1135
      %1138 = vst [vmem:[#allocation2 + $0x54] sm:$0xc] %v1136
      %v1139 = vld [vmem:[%s454] sm:$0xf]
      %v1140 = vld [vmem:[%s2 + $0x8] sm:$0x1]
      %v1141 = vunpack.c.l.bf16 %v1139
      %v1142 = vsub.f32 %v1141, %v494
      %v1143 = vmul.f32 %v1142, %v500
      %v1144 = vmax.f32 %v1143, 0.0
      %v1145 = vmul.f32 %v1140, %v855
      %v1146 = vlaneseq
      %v1147 = vshrl.u32 %v1146, 7
      %v1148 = vsub.s32 0, %v1147
      %v1149 = vrot.slane %v1145, %v1148
      %1151 = vrot.lane.b32.xlu0 %v1149, 6
      %v1152 = vpop.permute.xlu0 %1151
      %v1153 = vrot.slane %v1152, 4
      %v1154 = vsel %vm807, %v1153, %v1152
      %v1156 = vmul.f32 %v1144, %v1154
      %v1158 = vcombine.high %v1156, %v1156
      %v1160 = vpack.c.bf16 %v1156, %v1156
      %v1161 = vpack.c.bf16 %v1158, %v1158
      %v1164 = vunpack.c.l.b16 %v1160
      %v1165 = vunpack.c.l.b16 %v1161
      %v1166 = vpack.c.b16 %v1165, %v1164
      %v1167 = vrot.slane %v1166, 6
      %1168 = vrot.lane.b32.xlu0 %v1167, 122
      %v1169 = vpop.permute.xlu0 %1168
      %v1170 = vrot.slane %v1169, 4
      %v1171 = vsel %vm824, %v1169, %v1170
      %1173 = vst [vmem:[#allocation2 + $0x20] sm:$0xc] %v1171
      %v1176 = vunpack.c.l.s4 1983009808
      %v1177 = vunpack.c.0.s8 %v1176
      %v1178 = vlaneseq
      %v1179 = vshrl.u32 %v1178, 7
      %v1180 = vsub.s32 %v1177, %v1179
      %v1181 = vrot.slane %v1139, %v1180
      %1182 = vrot.lane.b32.xlu0 %v1181, 122
      %v1183 = vpop.permute.xlu0 %1182
      %v1184 = vrot.slane %v1183, 4
      %v1185 = vsel %vm824, %v1183, %v1184
      %1187 = vst [vmem:[#allocation2 + $0x58] sm:$0x3] %v1185
      %s1188 = sadd.s32 %s482, 2
      %p1189 = scmp.ge.s32.totalorder %s1188, 1
      %p1190 = scmp.le.s32.totalorder %s1188, 8
      %p1191 = pnand %p1189, %p1190
      %p1192 = pneg %p1191
      %s1193 = scalar_select %p1192, 1.0, 0.0
      %v1194 = vld [vmem:[%s467] sm:$0x3]
      %v1195 = vld [vmem:[%s2] sm:$0x1]
      %v1196 = vunpack.c.l.bf16 %v1194
      %v1197 = vsub.f32 %v1196, %v494
      %v1198 = vmul.f32 %v1197, %v500
      %v1199 = vmax.f32 %v1198, 0.0
      %v1200 = vstv %s1193
      %v1201 = vmul.f32 %v1195, %v1200
      %v1202 = vlaneseq
      %v1203 = vshrl.u32 %v1202, 7
      %v1204 = vsub.s32 0, %v1203
      %v1205 = vrot.slane %v1201, %v1204
      %v1206 = vmul.f32 %v1199, %v1205
      %v1207 = vpack.c.bf16 %v1206, %v1206
      %1208 = vst [vmem:[#allocation2 + $0x24] sm:$0x3] %v1207
      %v1210 = vcombine.low %v1194, %v1194
      %v1212 = vunpack.c.l.s4 1983009808
      %v1213 = vunpack.c.0.s8 %v1212
      %v1214 = vlaneseq
      %v1215 = vshrl.u32 %v1214, 7
      %v1216 = vsub.s32 %v1213, %v1215
      %v1217 = vrot.slane %v1210, %v1216
      %1219 = vst [vmem:[#allocation2 + $0x58] sm:$0xc] %v1217
      %s1220 = scalar_lea.vmem %s467, 4
      %v1221 = vld [vmem:[%s1220] sm:$0x3]
      %v1222 = vld [vmem:[%s2 + $0x1] sm:$0x1]
      %v1223 = vunpack.c.l.bf16 %v1221
      %v1224 = vsub.f32 %v1223, %v494
      %v1225 = vmul.f32 %v1224, %v500
      %v1226 = vmax.f32 %v1225, 0.0
      %v1227 = vmul.f32 %v1222, %v1200
      %v1228 = vlaneseq
      %v1229 = vshrl.u32 %v1228, 7
      %v1230 = vsub.s32 0, %v1229
      %v1231 = vrot.slane %v1227, %v1230
      %v1232 = vmul.f32 %v1226, %v1231
      %v1233 = vpack.c.bf16 %v1232, %v1232
      %v1235 = vunpack.c.l.b16 %v1233
      %v1236 = vpack.c.b16 %v1235, %v1235
      %v1237 = vrot.slane %v1236, 6
      %1239 = vst [vmem:[#allocation2 + $0x24] sm:$0xc] %v1237
      %1240 = vst [vmem:[#allocation2 + $0x5c] sm:$0x3] %v1221
      %v1241 = vld [vmem:[%s467] sm:$0xf]
      %v1242 = vld [vmem:[%s2 + $0x2] sm:$0x1]
      %v1243 = vunpack.c.l.bf16 %v1241
      %v1244 = vsub.f32 %v1243, %v494
      %v1245 = vmul.f32 %v1244, %v500
      %v1246 = vmax.f32 %v1245, 0.0
      %v1247 = vmul.f32 %v1242, %v1200
      %v1248 = vlaneseq
      %v1249 = vshrl.u32 %v1248, 7
      %v1250 = vsub.s32 0, %v1249
      %v1251 = vrot.slane %v1247, %v1250
      %1253 = vrot.lane.b32.xlu0 %v1251, 1
      %v1254 = vpop.permute.xlu0 %1253
      %v1255 = vrot.slane %v1254, 4
      %v1256 = vsel %vm560, %v1255, %v1254
      %v1258 = vmul.f32 %v1246, %v1256
      %v1260 = vcombine.high %v1258, %v1258
      %v1262 = vpack.c.bf16 %v1258, %v1258
      %v1263 = vpack.c.bf16 %v1260, %v1260
      %v1266 = vunpack.c.l.b16 %v1262
      %v1267 = vunpack.c.l.b16 %v1263
      %v1268 = vpack.c.b16 %v1267, %v1266
      %1269 = vrot.lane.b32.xlu0 %v1268, 127
      %v1270 = vpop.permute.xlu0 %1269
      %v1271 = vrot.slane %v1270, 4
      %v1272 = vsel %vm577, %v1270, %v1271
      %1274 = vst [vmem:[#allocation2 + $0x28] sm:$0x3] %v1272
      %v1276 = vcombine.low %v1241, %v1241
      %v1278 = vunpack.c.l.s4 1983009808
      %v1279 = vunpack.c.0.s8 %v1278
      %v1280 = vlaneseq
      %v1281 = vshrl.u32 %v1280, 7
      %v1282 = vsub.s32 %v1279, %v1281
      %v1283 = vrot.slane %v1276, %v1282
      %1284 = vrot.lane.b32.xlu0 %v1283, 127
      %v1285 = vpop.permute.xlu0 %1284
      %v1286 = vrot.slane %v1285, 4
      %v1287 = vsel %vm577, %v1285, %v1286
      %1289 = vst [vmem:[#allocation2 + $0x5c] sm:$0xc] %v1287
      %s1290 = scalar_lea.vmem %s467, 8
      %v1291 = vld [vmem:[%s1290] sm:$0x3]
      %v1292 = vld [vmem:[%s2 + $0x3] sm:$0x1]
      %v1293 = vunpack.c.l.bf16 %v1291
      %v1294 = vsub.f32 %v1293, %v494
      %v1295 = vmul.f32 %v1294, %v500
      %v1296 = vmax.f32 %v1295, 0.0
      %v1297 = vmul.f32 %v1292, %v1200
      %v1298 = vlaneseq
      %v1299 = vshrl.u32 %v1298, 7
      %v1300 = vsub.s32 0, %v1299
      %v1301 = vrot.slane %v1297, %v1300
      %v1302 = vmul.f32 %v1296, %v1301
      %v1303 = vpack.c.bf16 %v1302, %v1302
      %v1305 = vunpack.c.l.b16 %v1303
      %v1306 = vpack.c.b16 %v1305, %v1305
      %v1307 = vrot.slane %v1306, 6
      %1309 = vst [vmem:[#allocation2 + $0x28] sm:$0xc] %v1307
      %1310 = vst [vmem:[#allocation2 + $0x60] sm:$0x3] %v1291
      %s1311 = scalar_lea.vmem %s467, 12
      %v1312 = vld [vmem:[%s1311] sm:$0x3]
      %v1313 = vld [vmem:[%s2 + $0x4] sm:$0x1]
      %v1314 = vunpack.c.l.bf16 %v1312
      %v1315 = vsub.f32 %v1314, %v494
      %v1316 = vmul.f32 %v1315, %v500
      %v1317 = vmax.f32 %v1316, 0.0
      %v1318 = vmul.f32 %v1313, %v1200
      %v1319 = vlaneseq
      %v1320 = vshrl.u32 %v1319, 7
      %v1321 = vsub.s32 0, %v1320
      %v1322 = vrot.slane %v1318, %v1321
      %v1323 = vmul.f32 %v1317, %v1322
      %v1324 = vpack.c.bf16 %v1323, %v1323
      %1325 = vst [vmem:[#allocation2 + $0x2c] sm:$0x3] %v1324
      %v1327 = vcombine.low %v1312, %v1312
      %v1329 = vunpack.c.l.s4 1983009808
      %v1330 = vunpack.c.0.s8 %v1329
      %v1331 = vlaneseq
      %v1332 = vshrl.u32 %v1331, 7
      %v1333 = vsub.s32 %v1330, %v1332
      %v1334 = vrot.slane %v1327, %v1333
      %1336 = vst [vmem:[#allocation2 + $0x60] sm:$0xc] %v1334
      %v1337 = vld [vmem:[%s1290] sm:$0xf]
      %v1338 = vld [vmem:[%s2 + $0x5] sm:$0x1]
      %v1339 = vunpack.c.l.bf16 %v1337
      %v1340 = vsub.f32 %v1339, %v494
      %v1341 = vmul.f32 %v1340, %v500
      %v1342 = vmax.f32 %v1341, 0.0
      %v1343 = vmul.f32 %v1338, %v1200
      %v1344 = vlaneseq
      %v1345 = vshrl.u32 %v1344, 7
      %v1346 = vsub.s32 0, %v1345
      %v1347 = vrot.slane %v1343, %v1346
      %1349 = vrot.lane.b32.xlu0 %v1347, 1
      %v1350 = vpop.permute.xlu0 %1349
      %v1351 = vrot.slane %v1350, 4
      %v1352 = vsel %vm560, %v1351, %v1350
      %v1354 = vmul.f32 %v1342, %v1352
      %v1356 = vcombine.high %v1354, %v1354
      %v1358 = vpack.c.bf16 %v1354, %v1354
      %v1359 = vpack.c.bf16 %v1356, %v1356
      %v1362 = vunpack.c.l.b16 %v1358
      %v1363 = vunpack.c.l.b16 %v1359
      %v1364 = vpack.c.b16 %v1363, %v1362
      %v1365 = vrot.slane %v1364, 6
      %1366 = vrot.lane.b32.xlu0 %v1365, 127
      %v1367 = vpop.permute.xlu0 %1366
      %v1368 = vrot.slane %v1367, 4
      %v1369 = vsel %vm577, %v1367, %v1368
      %1371 = vst [vmem:[#allocation2 + $0x2c] sm:$0xc] %v1369
      %v1374 = vunpack.c.l.s4 1983009808
      %v1375 = vunpack.c.0.s8 %v1374
      %v1376 = vlaneseq
      %v1377 = vshrl.u32 %v1376, 7
      %v1378 = vsub.s32 %v1375, %v1377
      %v1379 = vrot.slane %v1337, %v1378
      %1380 = vrot.lane.b32.xlu0 %v1379, 127
      %v1381 = vpop.permute.xlu0 %1380
      %v1382 = vrot.slane %v1381, 4
      %v1383 = vsel %vm577, %v1381, %v1382
      %1385 = vst [vmem:[#allocation2 + $0x64] sm:$0x3] %v1383
      %v1386 = vld [vmem:[%s467] sm:$0xf]
      %v1387 = vld [vmem:[%s2 + $0x6] sm:$0x1]
      %v1388 = vunpack.c.l.bf16 %v1386
      %v1389 = vsub.f32 %v1388, %v494
      %v1390 = vmul.f32 %v1389, %v500
      %v1391 = vmax.f32 %v1390, 0.0
      %v1392 = vmul.f32 %v1387, %v1200
      %v1393 = vlaneseq
      %v1394 = vshrl.u32 %v1393, 7
      %v1395 = vsub.s32 0, %v1394
      %v1396 = vrot.slane %v1392, %v1395
      %1398 = vrot.lane.b32.xlu0 %v1396, 5
      %v1399 = vpop.permute.xlu0 %1398
      %v1400 = vrot.slane %v1399, 4
      %v1401 = vsel %vm707, %v1400, %v1399
      %v1403 = vmul.f32 %v1391, %v1401
      %v1405 = vcombine.high %v1403, %v1403
      %v1407 = vpack.c.bf16 %v1403, %v1403
      %v1408 = vpack.c.bf16 %v1405, %v1405
      %v1411 = vunpack.c.l.b16 %v1407
      %v1412 = vunpack.c.l.b16 %v1408
      %v1413 = vpack.c.b16 %v1412, %v1411
      %1414 = vrot.lane.b32.xlu0 %v1413, 123
      %v1415 = vpop.permute.xlu0 %1414
      %v1416 = vrot.slane %v1415, 4
      %v1417 = vsel %vm724, %v1415, %v1416
      %1419 = vst [vmem:[#allocation2 + $0x30] sm:$0x3] %v1417
      %v1421 = vcombine.low %v1386, %v1386
      %v1423 = vunpack.c.l.s4 1983009808
      %v1424 = vunpack.c.0.s8 %v1423
      %v1425 = vlaneseq
      %v1426 = vshrl.u32 %v1425, 7
      %v1427 = vsub.s32 %v1424, %v1426
      %v1428 = vrot.slane %v1421, %v1427
      %1429 = vrot.lane.b32.xlu0 %v1428, 123
      %v1430 = vpop.permute.xlu0 %1429
      %v1431 = vrot.slane %v1430, 4
      %v1432 = vsel %vm724, %v1430, %v1431
      %1434 = vst [vmem:[#allocation2 + $0x64] sm:$0xc] %v1432
      %v1435 = vld [vmem:[%s1220] sm:$0xf]
      %v1436 = vld [vmem:[%s2 + $0x7] sm:$0x1]
      %v1437 = vunpack.c.l.bf16 %v1435
      %v1438 = vsub.f32 %v1437, %v494
      %v1439 = vmul.f32 %v1438, %v500
      %v1440 = vmax.f32 %v1439, 0.0
      %v1441 = vmul.f32 %v1436, %v1200
      %v1442 = vlaneseq
      %v1443 = vshrl.u32 %v1442, 7
      %v1444 = vsub.s32 0, %v1443
      %v1445 = vrot.slane %v1441, %v1444
      %1447 = vrot.lane.b32.xlu0 %v1445, 5
      %v1448 = vpop.permute.xlu0 %1447
      %v1449 = vrot.slane %v1448, 4
      %v1450 = vsel %vm707, %v1449, %v1448
      %v1452 = vmul.f32 %v1440, %v1450
      %v1454 = vcombine.high %v1452, %v1452
      %v1456 = vpack.c.bf16 %v1452, %v1452
      %v1457 = vpack.c.bf16 %v1454, %v1454
      %v1460 = vunpack.c.l.b16 %v1456
      %v1461 = vunpack.c.l.b16 %v1457
      %v1462 = vpack.c.b16 %v1461, %v1460
      %v1463 = vrot.slane %v1462, 6
      %1464 = vrot.lane.b32.xlu0 %v1463, 123
      %v1465 = vpop.permute.xlu0 %1464
      %v1466 = vrot.slane %v1465, 4
      %v1467 = vsel %vm724, %v1465, %v1466
      %1469 = vst [vmem:[#allocation2 + $0x30] sm:$0xc] %v1467
      %v1472 = vunpack.c.l.s4 1983009808
      %v1473 = vunpack.c.0.s8 %v1472
      %v1474 = vlaneseq
      %v1475 = vshrl.u32 %v1474, 7
      %v1476 = vsub.s32 %v1473, %v1475
      %v1477 = vrot.slane %v1435, %v1476
      %1478 = vrot.lane.b32.xlu0 %v1477, 123
      %v1479 = vpop.permute.xlu0 %1478
      %v1480 = vrot.slane %v1479, 4
      %v1481 = vsel %vm724, %v1479, %v1480
      %1483 = vst [vmem:[#allocation2 + $0x68] sm:$0x3] %v1481
      %v1484 = vld [vmem:[%s467] sm:$0xf]
      %v1485 = vld [vmem:[%s2 + $0x8] sm:$0x1]
      %v1486 = vunpack.c.l.bf16 %v1484
      %v1487 = vsub.f32 %v1486, %v494
      %v1488 = vmul.f32 %v1487, %v500
      %v1489 = vmax.f32 %v1488, 0.0
      %v1490 = vmul.f32 %v1485, %v1200
      %v1491 = vlaneseq
      %v1492 = vshrl.u32 %v1491, 7
      %v1493 = vsub.s32 0, %v1492
      %v1494 = vrot.slane %v1490, %v1493
      %1496 = vrot.lane.b32.xlu0 %v1494, 6
      %v1497 = vpop.permute.xlu0 %1496
      %v1498 = vrot.slane %v1497, 4
      %v1499 = vsel %vm807, %v1498, %v1497
      %v1501 = vmul.f32 %v1489, %v1499
      %v1503 = vcombine.high %v1501, %v1501
      %v1505 = vpack.c.bf16 %v1501, %v1501
      %v1506 = vpack.c.bf16 %v1503, %v1503
      %v1509 = vunpack.c.l.b16 %v1505
      %v1510 = vunpack.c.l.b16 %v1506
      %v1511 = vpack.c.b16 %v1510, %v1509
      %1512 = vrot.lane.b32.xlu0 %v1511, 122
      %v1513 = vpop.permute.xlu0 %1512
      %v1514 = vrot.slane %v1513, 4
      %v1515 = vsel %vm824, %v1513, %v1514
      %1517 = vst [vmem:[#allocation2 + $0x34] sm:$0x3] %v1515
      %v1519 = vcombine.low %v1484, %v1484
      %v1521 = vunpack.c.l.s4 1983009808
      %v1522 = vunpack.c.0.s8 %v1521
      %v1523 = vlaneseq
      %v1524 = vshrl.u32 %v1523, 7
      %v1525 = vsub.s32 %v1522, %v1524
      %v1526 = vrot.slane %v1519, %v1525
      %1527 = vrot.lane.b32.xlu0 %v1526, 122
      %v1528 = vpop.permute.xlu0 %1527
      %v1529 = vrot.slane %v1528, 4
      %v1530 = vsel %vm824, %v1528, %v1529
      %1532 = vst [vmem:[#allocation2 + $0x68] sm:$0xc] %v1530
      %v1533 = vld [vmem:[%s3] sm:$0xff]
      %v1534 = vld [vmem:[%s3 + $0x8] sm:$0xff]
      %v1535 = vld [vmem:[%s3 + $0x10] sm:$0xff]
      %v1536 = vld [vmem:[%s3 + $0x18] sm:$0xff]
      %v1537 = vld [vmem:[#allocation2] sm:$0xf]
      %v1538 = vld [vmem:[#allocation2 + $0x4] sm:$0xf]
      %v1539 = vld [vmem:[#allocation2 + $0x8] sm:$0xf]
      %v1540 = vld [vmem:[#allocation2 + $0xc] sm:$0xf]
      %v1541 = vld [vmem:[#allocation2 + $0x10] sm:$0xf]
      %v1542 = vld [vmem:[#allocation2 + $0x14] sm:$0xf]
      %v1543 = vld [vmem:[#allocation2 + $0x18] sm:$0xf]
      %v1544 = vld [vmem:[#allocation2 + $0x1c] sm:$0xf]
      %v1545 = vld [vmem:[#allocation2 + $0x20] sm:$0xf]
      %v1546 = vld [vmem:[#allocation2 + $0x24] sm:$0xf]
      %v1547 = vld [vmem:[#allocation2 + $0x28] sm:$0xf]
      %v1548 = vld [vmem:[#allocation2 + $0x2c] sm:$0xf]
      %v1549 = vld [vmem:[#allocation2 + $0x30] sm:$0xf]
      %v1550 = vld [vmem:[#allocation2 + $0x34] sm:$0xf]
      %v1551 = vld [vmem:[#allocation2 + $0x38] sm:$0xf]
      %v1552 = vld [vmem:[#allocation2 + $0x3c] sm:$0xf]
      %v1553 = vld [vmem:[#allocation2 + $0x40] sm:$0xf]
      %v1554 = vld [vmem:[#allocation2 + $0x44] sm:$0xf]
      %v1555 = vld [vmem:[#allocation2 + $0x48] sm:$0xf]
      %v1556 = vld [vmem:[#allocation2 + $0x4c] sm:$0xf]
      %v1557 = vld [vmem:[#allocation2 + $0x50] sm:$0xf]
      %v1558 = vld [vmem:[#allocation2 + $0x54] sm:$0xf]
      %v1559 = vld [vmem:[#allocation2 + $0x58] sm:$0xf]
      %v1560 = vld [vmem:[#allocation2 + $0x5c] sm:$0xf]
      %v1561 = vld [vmem:[#allocation2 + $0x60] sm:$0xf]
      %v1562 = vld [vmem:[#allocation2 + $0x64] sm:$0xf]
      %v1563 = vld [vmem:[#allocation2 + $0x68] sm:$0xf]
      %v1564 = vld [vmem:[%s4] sm:$0xff]
      %v1565 = vld [vmem:[%s4 + $0x8] sm:$0xff]
      %v1566 = vld [vmem:[%s4 + $0x10] sm:$0xff]
      %v1567 = vld [vmem:[%s4 + $0x18] sm:$0xff]
      %1569 = vset.pattern.permute.xlu0 0
      %1570 = vperm.xlu0 %1569, %v1564
      %v1571 = vpop.permute.xlu0 %1570
      %1574 = vset.pattern.permute.xlu0 0
      %1575 = vperm.xlu0 %1574, %v1565
      %v1576 = vpop.permute.xlu0 %1575
      %1579 = vset.pattern.permute.xlu0 0
      %1580 = vperm.xlu0 %1579, %v1566
      %v1581 = vpop.permute.xlu0 %1580
      %1584 = vset.pattern.permute.xlu0 0
      %1585 = vperm.xlu0 %1584, %v1567
      %v1586 = vpop.permute.xlu0 %1585
      %v1592 = vunpack.c.l.b16 %v1533
      %v1593 = vunpack.c.h.b16 %v1533
      %v1594 = vunpack.c.l.b16 %v1534
      %v1595 = vunpack.c.h.b16 %v1534
      %v1596 = vunpack.c.l.b16 %v1535
      %v1597 = vunpack.c.h.b16 %v1535
      %v1598 = vunpack.c.l.b16 %v1536
      %v1599 = vunpack.c.h.b16 %v1536
      %v1600 = vpack.c.b16 %v1594, %v1592
      %v1601 = vpack.c.b16 %v1595, %v1593
      %v1602 = vpack.c.b16 %v1598, %v1596
      %v1603 = vpack.c.b16 %v1599, %v1597
      %v1633 = vunpack.c.l.b16 %v1537
      %v1634 = vunpack.c.l.b16 %v1538
      %v1635 = vunpack.c.l.b16 %v1539
      %v1636 = vunpack.c.l.b16 %v1540
      %v1637 = vunpack.c.l.b16 %v1541
      %v1638 = vunpack.c.l.b16 %v1542
      %v1639 = vunpack.c.l.b16 %v1543
      %v1640 = vunpack.c.l.b16 %v1544
      %v1641 = vunpack.c.l.b16 %v1545
      %v1642 = vunpack.c.l.b16 %v1546
      %v1643 = vunpack.c.l.b16 %v1547
      %v1644 = vunpack.c.l.b16 %v1548
      %v1645 = vunpack.c.l.b16 %v1549
      %v1646 = vunpack.c.l.b16 %v1550
      %v1647 = vunpack.c.l.b16 %v1551
      %v1648 = vunpack.c.l.b16 %v1552
      %v1649 = vunpack.c.l.b16 %v1553
      %v1650 = vunpack.c.l.b16 %v1554
      %v1651 = vunpack.c.l.b16 %v1555
      %v1652 = vunpack.c.l.b16 %v1556
      %v1653 = vunpack.c.l.b16 %v1557
      %v1654 = vunpack.c.l.b16 %v1558
      %v1655 = vunpack.c.l.b16 %v1559
      %v1656 = vunpack.c.l.b16 %v1560
      %v1657 = vunpack.c.l.b16 %v1561
      %v1658 = vunpack.c.l.b16 %v1562
      %v1659 = vunpack.c.l.b16 %v1563
      %v1660 = vpack.c.b16 %v1634, %v1633
      %v1661 = vpack.c.b16 %v1636, %v1635
      %v1662 = vpack.c.b16 %v1638, %v1637
      %v1663 = vpack.c.b16 %v1640, %v1639
      %v1664 = vpack.c.b16 %v1642, %v1641
      %v1665 = vpack.c.b16 %v1644, %v1643
      %v1666 = vpack.c.b16 %v1646, %v1645
      %v1667 = vpack.c.b16 %v1648, %v1647
      %v1668 = vpack.c.b16 %v1650, %v1649
      %v1669 = vpack.c.b16 %v1652, %v1651
      %v1670 = vpack.c.b16 %v1654, %v1653
      %v1671 = vpack.c.b16 %v1656, %v1655
      %v1672 = vpack.c.b16 %v1658, %v1657
      %v1673 = vpack.c.b16 %v1659, %v1659
      %vm1687 = vcmask 719872
      %v1689 = vsel %vm1687, %v1601, 0
      %v1692 = vsel %vm1687, %v1603, 0
      %vm1694 = vcmask 1043456
      %v1696 = vsel %vm1694, %v1673, 0
      %1698 = vmatprep.subr.bf16.mxu0 0
      %1699 = vmatpush1.bf16.msra.mxu0 %v1660
      %1700 = vmatprep.subr.bf16.mxu0 0
      %1701 = vmatpush1.bf16.msra.mxu0 %v1661
      %1702 = vmatprep.subr.bf16.mxu0 0
      %1703 = vmatpush1.bf16.msra.mxu0 %v1662
      %1704 = vmatprep.subr.bf16.mxu0 0
      %1705 = vmatpush1.bf16.msra.mxu0 %v1663
      %1706 = vmatprep.subr.bf16.mxu0 0
      %1707 = vmatpush1.bf16.msra.mxu0 %v1664
      %1708 = vmatprep.subr.bf16.mxu0 0
      %1709 = vmatpush1.bf16.msra.mxu0 %v1665
      %1710 = vmatprep.subr.bf16.mxu0 0
      %1711 = vmatpush1.bf16.msra.mxu0 %v1666
      %1712 = vmatprep.subr.bf16.mxu0 0
      %1713 = vmatpush1.bf16.msra.mxu0 %v1667
      %1714 = vmatprep.subr.bf16.mxu0 0
      %1715 = vmatpush1.bf16.msra.mxu0 %v1668
      %1716 = vmatprep.subr.bf16.mxu0 0
      %1717 = vmatpush1.bf16.msra.mxu0 %v1669
      %1718 = vmatprep.subr.bf16.mxu0 0
      %1719 = vmatpush1.bf16.msra.mxu0 %v1670
      %1720 = vmatprep.subr.bf16.mxu0 0
      %1721 = vmatpush1.bf16.msra.mxu0 %v1671
      %1722 = vmatprep.subr.bf16.mxu0 0
      %1723 = vmatpush1.bf16.msra.mxu0 %v1672
      %1724 = vmatprep.subr.bf16.mxu0 0
      %1725 = vmatpush1.bf16.msra.mxu0 %v1696
      %1726 = vmatprep.subr.bf16.mxu0 0
      %1727 = vmatpush1.bf16.msra.mxu0 0
      %1728 = vmatprep.subr.bf16.mxu0 0
      %1729 = vmatpush1.bf16.msra.mxu0 0
      %1730 = vmatprep.mubr.bf16.mxu0 %v1689
      %1731 = vmatmul.mubr.bf16.gmra.mrb[0].mxu0 %v1600
      %v1732 = vpop.f32.mrb[0].mxu0
      %v1733 = vadd.f32 %v1571, %v1732
      %v1734 = vpop.f32.mrb[0].mxu0
      %v1735 = vpop.f32.mrb[0].mxu0
      %v1736 = vadd.f32 %v1576, %v1735
      %v1737 = vpop.f32.mrb[0].mxu0
      %1738 = vmatprep.mubr.bf16.mxu0 %v1692
      %1739 = vmatmul.mubr.bf16.gmra.mrb[0].mxu0 %v1602
      %v1740 = vpop.f32.mrb[0].mxu0
      %v1741 = vadd.f32 %v1581, %v1740
      %v1742 = vpop.f32.mrb[0].mxu0
      %v1743 = vpop.f32.mrb[0].mxu0
      %v1744 = vadd.f32 %v1586, %v1743
      %v1745 = vpop.f32.mrb[0].mxu0
      %1746 = vdwg.mxu0
      %v1747 = vmax.f32 %v1733, 0.0
      %v1748 = vmax.f32 %v1736, 0.0
      %v1749 = vmax.f32 %v1741, 0.0
      %v1750 = vmax.f32 %v1744, 0.0
      %1751 = vst [vmem:[%s478] sm:$0xff] %v1747
      %1752 = vst [vmem:[%s478 + $0x8] sm:$0xff] %v1748
      %1753 = vst [vmem:[%s478 + $0x10] sm:$0xff] %v1749
      %1754 = vst [vmem:[%s478 + $0x18] sm:$0xff] %v1750
      %p1755 = scmp.lt.s32.totalorder %s23, 1
      %s1756 = scalar_select %p1755, %s23, 1
      %p1757 = scmp.lt.s32.totalorder %s24, 3
      %s1758 = scalar_select %p1757, %s24, 3
      %s1759 = smul.addr %s1758, 4
      %s1760 = smul.addr %s1756, 16
      %s1761 = sadd.s32 %s1759, %s1760
      %s1762 = smul.addr %s1761, 8
      %s1763 = scalar_lea.vmem %s8, %s1762
      // Predicated region
      $region53: #{resnet_encoder_half_forward.3} parent=51 // pred_check
        %p1764 = pneg %p260
      $region54: #{resnet_encoder_half_forward.3} parent=51 // pred_check_branch
        %1766 = sbr.rel (%p1764) target = $region56
      $region55: #{resnet_encoder_half_forward.3} parent=51 // pred_region
        _
      $region56: #{resnet_encoder_half_forward.3} parent=51 // pred_fallthru
        _
    $region52: #{resnet_encoder_half_forward.3} parent=5 // pred_fallthru
      _
    %p1767 = scmp.le.s32.totalorder 2, %s14
    // Predicated region
    $region57: #{resnet_encoder_half_forward.3} parent=5 // pred_check
      %p1768 = pneg %p1767
    $region58: #{resnet_encoder_half_forward.3} parent=5 // pred_check_branch
      %1770 = sbr.rel (%p1768) target = $region60
    $region59: #{resnet_encoder_half_forward.3} parent=5 // pred_region
      %s1771 = ssub.s32 %s14, 2
      // Predicated region
      $region61: #{resnet_encoder_half_forward.3} parent=59 // pred_check
        %p1772 = pneg %p266
      $region62: #{resnet_encoder_half_forward.3} parent=59 // pred_check_branch
        %1774 = sbr.rel (%p1772) target = $region64
      $region63: #{resnet_encoder_half_forward.3} parent=59 // pred_region
        %p1775 = scmp.lt.s32.totalorder %s25, 1
        %s1776 = scalar_select %p1775, %s25, 1
        %p1777 = scmp.lt.s32.totalorder %s26, 3
        %s1778 = scalar_select %p1777, %s26, 3
        %s1779 = smul.addr %s1778, 4
        %s1780 = smul.addr %s1776, 16
        %s1781 = sadd.s32 %s1779, %s1780
        %s1782 = smul.addr %s1781, 8
        %s1783 = scalar_lea.vmem %s8, %s1782
      $region64: #{resnet_encoder_half_forward.3} parent=59 // pred_fallthru
        _
    $region60: #{resnet_encoder_half_forward.3} parent=5 // pred_fallthru
      _
  $region6: #{resnet_encoder_half_forward.3} parent=0 // loop_footer
    %s18 = sadd.s32 1, %s14
  $region7: #{resnet_encoder_half_forward.3} parent=0 // loop_footer_branch
    %13 = sbr.rel target = $region3
  $region8: #{resnet_encoder_half_forward.3} parent=0 // loop_exit
    _

</llo_original>
